<compile_context>
chip_gen: v5e
topology: v5e:2x2
jax: 0.10.0
libtpu: 0.0.40
codegen_flags: <defaults>
</compile_context>

<pallas_src>
import numpy as np
import jax
import jax.numpy as jnp
from jax.experimental import pallas as pl
from jax.experimental.pallas import tpu as pltpu


def _round_up(x, m):
    return (x + m - 1) // m * m


def _cdiv(a, b):
    return -(-a // b)


def critic_kernel(state_t_ref, action_t_ref,
                  w1t_ref, b1t_ref,
                  w2st_ref, w2at_ref, b2t_ref,
                  w3t_ref, b3_ref,
                  out_ref):
    # Feature-major layout: features on sublanes, batch on lanes -> the per-row
    # Q values land lane-dense in a (1, TB) row with no in-kernel relayout.
    st = state_t_ref[...].astype(jnp.bfloat16)                     # (S_pad, TB)

    # fcs1 + ReLU:  xs^T = relu(W1 @ s^T + b1)      (MXU, f32 accumulation)
    xs = jnp.dot(w1t_ref[...], st,
                 preferred_element_type=jnp.float32) + b1t_ref[...]
    xs = jnp.maximum(xs, 0.0).astype(jnp.bfloat16)                 # (H1p, TB)

    # fc2 on concat([xs, a]):  h^T = relu(W2s @ xs^T + W2a @ a^T + b2)
    h = jnp.dot(w2st_ref[...], xs,
                preferred_element_type=jnp.float32) + b2t_ref[...]
    at = action_t_ref[...]                                         # (A, TB)  f32
    w2at = w2at_ref[...]                                           # (H2p, A) f32
    for k in range(w2at.shape[1]):       # A is tiny & static: unrolled VPU rank-1
        h = h + w2at[:, k:k + 1] * at[k:k + 1, :]                  # updates, off the MXU
    h = jnp.maximum(h, 0.0)                                        # (H2p, TB)

    # fc3 -> Q: VPU multiply (bf16) + sublane reduce (f32); N=1 stays off the MXU.
    prod = (h.astype(jnp.bfloat16) * w3t_ref[...]).astype(jnp.float32)
    q_row = jnp.sum(prod, axis=0, keepdims=True) + b3_ref[0, 0]    # (1, TB)
    out_ref[...] = q_row.astype(out_ref.dtype)


def critic_forward(state, action, params):
    """state: (B, S) f32, action: (B, A) f32 -> (B, 1) f32."""
    B, S = state.shape
    A = action.shape[1]
    w1t, b1t, w2st, w2at, b2t, w3t, b3 = params
    H1p, S_pad = w1t.shape
    H2p = w2st.shape[0]

    # Balanced, lane-aligned batch tiles (batch lives on the lane axis).
    TB_MAX = 1024
    num_tiles = max(1, _cdiv(B, TB_MAX))
    if B > 512 and num_tiles % 2 == 1:
        num_tiles += 1        # even tile count so v7x's two TensorCores split the batch
    TB = _round_up(_cdiv(B, num_tiles), 128)
    B_pad = num_tiles * TB

    # Feature-major (transposed) inputs, zero padded.  Layout plumbing only;
    # the f32->bf16 cast stays inside the kernel where it hides under the MXU.
    state_t = jnp.zeros((S_pad, B_pad), jnp.float32).at[:S, :B].set(state.T)
    action_t = jnp.zeros((A, B_pad), jnp.float32).at[:, :B].set(action.T)

    resident = lambda shape: pl.BlockSpec(shape, lambda i: (0, 0))  # VMEM-resident weights

    out = pl.pallas_call(
        critic_kernel,
        out_shape=jax.ShapeDtypeStruct((num_tiles, TB), jnp.float32),
        grid=(num_tiles,),
        in_specs=[
            pl.BlockSpec((S_pad, TB), lambda i: (0, i)),       # state^T tile
            pl.BlockSpec((A, TB), lambda i: (0, i)),           # action^T tile
            resident((H1p, S_pad)),                            # W1 (bf16)
            resident((H1p, 1)),                                # b1
            resident((H2p, H1p)),                              # W2 state part (bf16)
            resident((H2p, A)),                                # W2 action part (f32, VPU)
            resident((H2p, 1)),                                # b2
            resident((H2p, 1)),                                # w3 (bf16)
            pl.BlockSpec(memory_space=pltpu.MemorySpace.SMEM),  # b3 scalar
        ],
        out_specs=pl.BlockSpec((1, TB), lambda i: (i, 0)),     # lane-dense Q row per tile
        compiler_params=pltpu.CompilerParams(
            dimension_semantics=("parallel",),
            vmem_limit_bytes=32 << 20,
        ),
    )(state_t, action_t, w1t, b1t, w2st, w2at, b2t, w3t, b3)

    # (num_tiles, TB) row-major == batch order; drop padded rows.
    return out.reshape(B_pad, 1)[:B]


def init_critic_params(key, state_size, action_size,
                       fcs1_units=400, fc2_units=300):
    """Deterministic init mirroring the PyTorch module's reset_parameters.

    hidden_init uses weight.size()[0] == out_features as 'fan_in' (that is what the
    reference code does), so lim = 1/sqrt(out_features).  Biases keep nn.Linear's
    default U(-1/sqrt(in), 1/sqrt(in)).  Params are stored feature-major
    ((out_features, in_features), i.e. the PyTorch layout), zero-padded to
    lane/sublane-aligned sizes; the big matrices and w3 are bf16.
    """
    H1, H2 = fcs1_units, fc2_units
    H1p = _round_up(H1, 128)               # 400 -> 512
    H2p = _round_up(H2, 128)               # 300 -> 384
    S_pad = _round_up(state_size, 16)      # bf16 sublane pack for the first contraction
    ks = jax.random.split(key, 6)
    lim1 = 1.0 / np.sqrt(fcs1_units)
    lim2 = 1.0 / np.sqrt(fc2_units)

    w1 = jax.random.uniform(ks[0], (H1, state_size),
                            minval=-lim1, maxval=lim1, dtype=jnp.float32)
    b1 = jax.random.uniform(ks[1], (H1,),
                            minval=-1.0 / np.sqrt(state_size),
                            maxval=1.0 / np.sqrt(state_size), dtype=jnp.float32)

    in2 = H1 + action_size
    w2 = jax.random.uniform(ks[2], (H2, in2),
                            minval=-lim2, maxval=lim2, dtype=jnp.float32)
    b2 = jax.random.uniform(ks[3], (H2,),
                            minval=-1.0 / np.sqrt(in2),
                            maxval=1.0 / np.sqrt(in2), dtype=jnp.float32)

    w3 = jax.random.uniform(ks[4], (1, H2),
                            minval=-0.003, maxval=0.003, dtype=jnp.float32)
    b3 = jax.random.uniform(ks[5], (1, 1),
                            minval=-1.0 / np.sqrt(fc2_units),
                            maxval=1.0 / np.sqrt(fc2_units), dtype=jnp.float32)

    # Zero padding is exactly neutral through ReLU, the matmuls and the reduce.
    w1t = jnp.zeros((H1p, S_pad), jnp.float32).at[:H1, :state_size].set(w1)
    b1t = jnp.zeros((H1p, 1), jnp.float32).at[:H1, 0].set(b1)
    w2st = jnp.zeros((H2p, H1p), jnp.float32).at[:H2, :H1].set(w2[:, :H1])
    w2at = jnp.zeros((H2p, action_size), jnp.float32).at[:H2, :].set(w2[:, H1:])
    b2t = jnp.zeros((H2p, 1), jnp.float32).at[:H2, 0].set(b2)
    w3t = jnp.zeros((H2p, 1), jnp.float32).at[:H2, 0].set(w3[0])

    return (w1t.astype(jnp.bfloat16), b1t,
            w2st.astype(jnp.bfloat16), w2at, b2t,
            w3t.astype(jnp.bfloat16), b3)


def critic_reference(state, action, params):
    """Pure-JAX mirror of the kernel math (same bf16 rounding, f32 accumulation).

    Because padded rows/cols are zero, this is the PyTorch forward pass up to
    bf16 weight/activation rounding.
    """
    w1t, b1t, w2st, w2at, b2t, w3t, b3 = params
    S_pad = w1t.shape[1]
    S, B = state.shape[1], state.shape[0]
    st = jnp.zeros((S_pad, B), jnp.float32).at[:S, :].set(state.T).astype(jnp.bfloat16)
    at = action.T

    xs = jnp.maximum(jnp.dot(w1t, st, preferred_element_type=jnp.float32) + b1t, 0.0)
    xs = xs.astype(jnp.bfloat16)
    h = jnp.dot(w2st, xs, preferred_element_type=jnp.float32) + b2t
    for k in range(w2at.shape[1]):
        h = h + w2at[:, k:k + 1] * at[k:k + 1, :]
    h = jnp.maximum(h, 0.0)
    prod = (h.astype(jnp.bfloat16) * w3t).astype(jnp.float32)
    q = jnp.sum(prod, axis=0, keepdims=True) + b3[0, 0]
    return q.T                                                     # (B, 1)


if __name__ == "__main__":
    batch = 8
    state_size = 33
    action_size = 4

    key = jax.random.PRNGKey(0)
    kp, ks, ka = jax.random.split(key, 3)

    params = init_critic_params(kp, state_size, action_size)
    state = jax.random.normal(ks, (batch, state_size), dtype=jnp.float32)
    action = jax.random.normal(ka, (batch, action_size), dtype=jnp.float32)

    q = jax.block_until_ready(critic_forward(state, action, params))
    q_ref = jax.block_until_ready(critic_reference(state, action, params))

    assert q.shape == (batch, 1)
    np.testing.assert_allclose(np.asarray(q), np.asarray(q_ref),
                               rtol=1e-4, atol=2e-4)

    print("KERNEL_OK")
</pallas_src>

<mosaic_0001>
module attributes {stable_mosaic.version = 11 : i64} {
  func.func @critic_kernel(%arg0: i32, %arg1: memref<48x128xf32, #tpu.memory_space<vmem>>, %arg2: memref<4x128xf32, #tpu.memory_space<vmem>>, %arg3: memref<512x48xbf16, #tpu.memory_space<vmem>>, %arg4: memref<512x1xf32, #tpu.memory_space<vmem>>, %arg5: memref<384x512xbf16, #tpu.memory_space<vmem>>, %arg6: memref<384x4xf32, #tpu.memory_space<vmem>>, %arg7: memref<384x1xf32, #tpu.memory_space<vmem>>, %arg8: memref<384x1xbf16, #tpu.memory_space<vmem>>, %arg9: memref<1x1xf32, #tpu.memory_space<smem>>, %arg10: memref<1x128xf32, #tpu.memory_space<vmem>>) attributes {dimension_semantics = [#tpu.dimension_semantics<parallel>], iteration_bounds = array<i64: 1>, scalar_prefetch = 0 : i64, scratch_operands = 0 : i64, tpu.core_type = #tpu.core_type<tc>, window_params = [{transform_indices = @transform_0, window_bounds = array<i64: 48, 128>}, {transform_indices = @transform_1, window_bounds = array<i64: 4, 128>}, {pipeline_mode = #tpu.pipeline_mode<synchronous>, transform_indices = @transform_2, window_bounds = array<i64: 512, 48>}, {pipeline_mode = #tpu.pipeline_mode<synchronous>, transform_indices = @transform_3, window_bounds = array<i64: 512, 1>}, {pipeline_mode = #tpu.pipeline_mode<synchronous>, transform_indices = @transform_4, window_bounds = array<i64: 384, 512>}, {pipeline_mode = #tpu.pipeline_mode<synchronous>, transform_indices = @transform_5, window_bounds = array<i64: 384, 4>}, {pipeline_mode = #tpu.pipeline_mode<synchronous>, transform_indices = @transform_6, window_bounds = array<i64: 384, 1>}, {pipeline_mode = #tpu.pipeline_mode<synchronous>, transform_indices = @transform_7, window_bounds = array<i64: 384, 1>}, {transform_indices = @transform_8, window_bounds = array<i64: 1, 1>}, {transform_indices = @transform_9, window_bounds = array<i64: 1, 128>}]} {
    %c0 = arith.constant 0 : index
    %c0_0 = arith.constant 0 : index
    %0 = vector.load %arg1[%c0, %c0_0] : memref<48x128xf32, #tpu.memory_space<vmem>>, vector<48x128xf32>
    %1 = arith.truncf %0 : vector<48x128xf32> to vector<48x128xbf16>
    %c0_1 = arith.constant 0 : index
    %c0_2 = arith.constant 0 : index
    %2 = vector.load %arg3[%c0_1, %c0_2] : memref<512x48xbf16, #tpu.memory_space<vmem>>, vector<512x48xbf16>
    %cst = arith.constant dense<0.000000e+00> : vector<512x128xf32>
    %3 = tpu.matmul %2, %1, %cst {dimension_numbers = #tpu.dot_dimension_numbers<[1], [0], [0], [1], [0, 0, 1, 1], [], []>} : vector<512x48xbf16>, vector<48x128xbf16>, vector<512x128xf32> -> vector<512x128xf32>
    %c0_3 = arith.constant 0 : index
    %c0_4 = arith.constant 0 : index
    %4 = vector.load %arg4[%c0_3, %c0_4] : memref<512x1xf32, #tpu.memory_space<vmem>>, vector<512x1xf32>
    %5 = vector.broadcast %4 : vector<512x1xf32> to vector<512x128xf32>
    %6 = arith.addf %3, %5 : vector<512x128xf32>
    %cst_5 = arith.constant 0.000000e+00 : f32
    %7 = vector.broadcast %cst_5 : f32 to vector<512x128xf32>
    %8 = arith.maximumf %6, %7 : vector<512x128xf32>
    %9 = arith.truncf %8 : vector<512x128xf32> to vector<512x128xbf16>
    %c0_6 = arith.constant 0 : index
    %c0_7 = arith.constant 0 : index
    %10 = vector.load %arg5[%c0_6, %c0_7] : memref<384x512xbf16, #tpu.memory_space<vmem>>, vector<384x512xbf16>
    %cst_8 = arith.constant dense<0.000000e+00> : vector<384x128xf32>
    %11 = tpu.matmul %10, %9, %cst_8 {dimension_numbers = #tpu.dot_dimension_numbers<[1], [0], [0], [1], [0, 0, 1, 1], [], []>} : vector<384x512xbf16>, vector<512x128xbf16>, vector<384x128xf32> -> vector<384x128xf32>
    %c0_9 = arith.constant 0 : index
    %c0_10 = arith.constant 0 : index
    %12 = vector.load %arg7[%c0_9, %c0_10] : memref<384x1xf32, #tpu.memory_space<vmem>>, vector<384x1xf32>
    %13 = vector.broadcast %12 : vector<384x1xf32> to vector<384x128xf32>
    %14 = arith.addf %11, %13 : vector<384x128xf32>
    %c0_11 = arith.constant 0 : index
    %c0_12 = arith.constant 0 : index
    %15 = vector.load %arg2[%c0_11, %c0_12] : memref<4x128xf32, #tpu.memory_space<vmem>>, vector<4x128xf32>
    %c0_13 = arith.constant 0 : index
    %c0_14 = arith.constant 0 : index
    %16 = vector.load %arg6[%c0_13, %c0_14] : memref<384x4xf32, #tpu.memory_space<vmem>>, vector<384x4xf32>
    %17 = vector.extract_strided_slice %16 {offsets = [0, 0], sizes = [384, 1], strides = [1, 1]} : vector<384x4xf32> to vector<384x1xf32>
    %18 = vector.extract_strided_slice %15 {offsets = [0, 0], sizes = [1, 128], strides = [1, 1]} : vector<4x128xf32> to vector<1x128xf32>
    %19 = vector.broadcast %17 : vector<384x1xf32> to vector<384x128xf32>
    %20 = vector.broadcast %18 : vector<1x128xf32> to vector<384x128xf32>
    %21 = arith.mulf %19, %20 : vector<384x128xf32>
    %22 = arith.addf %14, %21 : vector<384x128xf32>
    %23 = vector.extract_strided_slice %16 {offsets = [0, 1], sizes = [384, 1], strides = [1, 1]} : vector<384x4xf32> to vector<384x1xf32>
    %24 = vector.extract_strided_slice %15 {offsets = [1, 0], sizes = [1, 128], strides = [1, 1]} : vector<4x128xf32> to vector<1x128xf32>
    %25 = vector.broadcast %23 : vector<384x1xf32> to vector<384x128xf32>
    %26 = vector.broadcast %24 : vector<1x128xf32> to vector<384x128xf32>
    %27 = arith.mulf %25, %26 : vector<384x128xf32>
    %28 = arith.addf %22, %27 : vector<384x128xf32>
    %29 = vector.extract_strided_slice %16 {offsets = [0, 2], sizes = [384, 1], strides = [1, 1]} : vector<384x4xf32> to vector<384x1xf32>
    %30 = vector.extract_strided_slice %15 {offsets = [2, 0], sizes = [1, 128], strides = [1, 1]} : vector<4x128xf32> to vector<1x128xf32>
    %31 = vector.broadcast %29 : vector<384x1xf32> to vector<384x128xf32>
    %32 = vector.broadcast %30 : vector<1x128xf32> to vector<384x128xf32>
    %33 = arith.mulf %31, %32 : vector<384x128xf32>
    %34 = arith.addf %28, %33 : vector<384x128xf32>
    %35 = vector.extract_strided_slice %16 {offsets = [0, 3], sizes = [384, 1], strides = [1, 1]} : vector<384x4xf32> to vector<384x1xf32>
    %36 = vector.extract_strided_slice %15 {offsets = [3, 0], sizes = [1, 128], strides = [1, 1]} : vector<4x128xf32> to vector<1x128xf32>
    %37 = vector.broadcast %35 : vector<384x1xf32> to vector<384x128xf32>
    %38 = vector.broadcast %36 : vector<1x128xf32> to vector<384x128xf32>
    %39 = arith.mulf %37, %38 : vector<384x128xf32>
    %40 = arith.addf %34, %39 : vector<384x128xf32>
    %cst_15 = arith.constant 0.000000e+00 : f32
    %41 = vector.broadcast %cst_15 : f32 to vector<384x128xf32>
    %42 = arith.maximumf %40, %41 : vector<384x128xf32>
    %43 = arith.truncf %42 : vector<384x128xf32> to vector<384x128xbf16>
    %c0_16 = arith.constant 0 : index
    %c0_17 = arith.constant 0 : index
    %44 = vector.load %arg8[%c0_16, %c0_17] : memref<384x1xbf16, #tpu.memory_space<vmem>>, vector<384x1xbf16>
    %45 = vector.broadcast %44 : vector<384x1xbf16> to vector<384x128xbf16>
    %46 = arith.mulf %43, %45 : vector<384x128xbf16>
    %47 = arith.extf %46 : vector<384x128xbf16> to vector<384x128xf32>
    %cst_18 = arith.constant dense<0.000000e+00> : vector<128xf32>
    %48 = vector.multi_reduction <add>, %47, %cst_18 [0] : vector<384x128xf32> to vector<128xf32>
    %49 = vector.shape_cast %48 : vector<128xf32> to vector<1x128xf32>
    %c0_19 = arith.constant 0 : index
    %c0_20 = arith.constant 0 : index
    %50 = memref.load %arg9[%c0_19, %c0_20] : memref<1x1xf32, #tpu.memory_space<smem>>
    %51 = vector.broadcast %50 : f32 to vector<1x128xf32>
    %52 = arith.addf %49, %51 : vector<1x128xf32>
    %c0_21 = arith.constant 0 : index
    %c0_22 = arith.constant 0 : index
    %53 = vector.load %arg10[%c0_21, %c0_22] : memref<1x128xf32, #tpu.memory_space<vmem>>, vector<1x128xf32>
    tpu.vector_store %arg10[%c0_21, %c0_22], %52 {strides = array<i32>} : memref<1x128xf32, #tpu.memory_space<vmem>>, vector<1x128xf32>,
    return
  }
  func.func @transform_0(%arg0: i32) -> (i32, i32) {
    %c0_i32 = arith.constant 0 : i32
    %c0_i32_0 = arith.constant 0 : i32
    return %c0_i32, %arg0 : i32, i32
  }
  func.func @transform_1(%arg0: i32) -> (i32, i32) {
    %c0_i32 = arith.constant 0 : i32
    %c0_i32_0 = arith.constant 0 : i32
    return %c0_i32, %arg0 : i32, i32
  }
  func.func @transform_2(%arg0: i32) -> (i32, i32) {
    %c0_i32 = arith.constant 0 : i32
    %c0_i32_0 = arith.constant 0 : i32
    %c0_i32_1 = arith.constant 0 : i32
    return %c0_i32, %c0_i32_0 : i32, i32
  }
  func.func @transform_3(%arg0: i32) -> (i32, i32) {
    %c0_i32 = arith.constant 0 : i32
    %c0_i32_0 = arith.constant 0 : i32
    %c0_i32_1 = arith.constant 0 : i32
    return %c0_i32, %c0_i32_0 : i32, i32
  }
  func.func @transform_4(%arg0: i32) -> (i32, i32) {
    %c0_i32 = arith.constant 0 : i32
    %c0_i32_0 = arith.constant 0 : i32
    %c0_i32_1 = arith.constant 0 : i32
    return %c0_i32, %c0_i32_0 : i32, i32
  }
  func.func @transform_5(%arg0: i32) -> (i32, i32) {
    %c0_i32 = arith.constant 0 : i32
    %c0_i32_0 = arith.constant 0 : i32
    %c0_i32_1 = arith.constant 0 : i32
    return %c0_i32, %c0_i32_0 : i32, i32
  }
  func.func @transform_6(%arg0: i32) -> (i32, i32) {
    %c0_i32 = arith.constant 0 : i32
    %c0_i32_0 = arith.constant 0 : i32
    %c0_i32_1 = arith.constant 0 : i32
    return %c0_i32, %c0_i32_0 : i32, i32
  }
  func.func @transform_7(%arg0: i32) -> (i32, i32) {
    %c0_i32 = arith.constant 0 : i32
    %c0_i32_0 = arith.constant 0 : i32
    %c0_i32_1 = arith.constant 0 : i32
    return %c0_i32, %c0_i32_0 : i32, i32
  }
  func.func @transform_8(%arg0: i32) -> (i32, i32) {
    %c0_i32 = arith.constant 0 : i32
    %c0_i32_0 = arith.constant 0 : i32
    %c0_i32_1 = arith.constant 0 : i32
    return %c0_i32, %c0_i32_0 : i32, i32
  }
  func.func @transform_9(%arg0: i32) -> (i32, i32) {
    %c0_i32 = arith.constant 0 : i32
    %c0_i32_0 = arith.constant 0 : i32
    return %arg0, %c0_i32 : i32, i32
  }
}

</mosaic_0001>

<llo_original>
// kernel: tpu_custom_call.1
$region0: #{tpu_custom_call.1}
  #allocation0 [shape = 'u32[]', space=smem, size = 0x4, offset = 0x4, fixed_abs, tag = 'smem constant byte address 0x4 - core index']
  #allocation1 [shape = 'u32[72,128]{1,0:T(1,128)}', space=vmem, size = 0x9000, scoped, tag = 'internal scratch']
  #allocation2 [shape = 'f32[1,1]{1,0:T(1,128)S(6)}', space=smem, size = 0x200, scoped, tag = 'scoped memory for tpu_custom_call.1']
  %s0 = inlined_call_operand.vmem [shape: f32[48,128], index: 0, kind: input, shape index: {}]
  %s1 = inlined_call_operand.vmem [shape: f32[4,128], index: 1, kind: input, shape index: {}]
  %s2 = inlined_call_operand.vmem [shape: bf16[512,48], index: 2, kind: input, shape index: {}]
  %s3 = inlined_call_operand.vmem [shape: f32[512,1], index: 3, kind: input, shape index: {}]
  %s4 = inlined_call_operand.vmem [shape: bf16[384,512], index: 4, kind: input, shape index: {}]
  %s5 = inlined_call_operand.vmem [shape: f32[384,4], index: 5, kind: input, shape index: {}]
  %s6 = inlined_call_operand.vmem [shape: f32[384,1], index: 6, kind: input, shape index: {}]
  %s7 = inlined_call_operand.vmem [shape: bf16[384,1], index: 7, kind: input, shape index: {}]
  %s8 = inlined_call_operand.<no memory space> [shape: f32[1,1], index: 8, kind: input, shape index: {}]
  %s9 = inlined_call_operand.hbm [shape: f32[1,128], index: 9, kind: output, shape index: {}]
  %s10 = sld [smem:[#allocation0]]
  $region46: #{tpu_custom_call.1} parent=0
    _
  %s12 = ssub.s32 1, %s10
  %s13 = scalar_select 0, %s12, %s10
  %14 = sst [smem:[#allocation2]] %s8
  $region1: #{tpu_custom_call.1} parent=0
    #allocation3 [shape = 'u8[512]{0}', space=vmem, size = 0x400, scoped, tag = 'output window, operand 0, single buffered']
    #allocation4 [shape = 's32[1]{0}', space=sflag, size = 0x4, scoped, tag = 'scoped memory for tpu_custom_call.1']
    %15 = vsyncpa [#allocation4], 0
    // Predicated region
    $region2: #{tpu_custom_call.1} parent=1 // pred_check
      _
    $region3: #{tpu_custom_call.1} parent=1 // pred_check_branch
      %17 = sbr.rel (0) target = $region5
    $region4: #{tpu_custom_call.1} parent=1 // pred_region
      _
    $region5: #{tpu_custom_call.1} parent=1 // pred_fallthru
      _
    // Predicated region
    $region6: #{tpu_custom_call.1} parent=1 // pred_check
      _
    $region7: #{tpu_custom_call.1} parent=1 // pred_check_branch
      %19 = sbr.rel (0) target = $region9
    $region8: #{tpu_custom_call.1} parent=1 // pred_region
      _
    $region9: #{tpu_custom_call.1} parent=1 // pred_fallthru
      _
    // Predicated region
    $region10: #{tpu_custom_call.1} parent=1 // pred_check
      _
    $region11: #{tpu_custom_call.1} parent=1 // pred_check_branch
      %21 = sbr.rel (0) target = $region13
    $region12: #{tpu_custom_call.1} parent=1 // pred_region
      _
    $region13: #{tpu_custom_call.1} parent=1 // pred_fallthru
      _
    // Predicated region
    $region14: #{tpu_custom_call.1} parent=1 // pred_check
      _
    $region15: #{tpu_custom_call.1} parent=1 // pred_check_branch
      %23 = sbr.rel (0) target = $region17
    $region16: #{tpu_custom_call.1} parent=1 // pred_region
      _
    $region17: #{tpu_custom_call.1} parent=1 // pred_fallthru
      _
    // Predicated region
    $region18: #{tpu_custom_call.1} parent=1 // pred_check
      _
    $region19: #{tpu_custom_call.1} parent=1 // pred_check_branch
      %25 = sbr.rel (0) target = $region21
    $region20: #{tpu_custom_call.1} parent=1 // pred_region
      _
    $region21: #{tpu_custom_call.1} parent=1 // pred_fallthru
      _
    // Predicated region
    $region22: #{tpu_custom_call.1} parent=1 // pred_check
      _
    $region23: #{tpu_custom_call.1} parent=1 // pred_check_branch
      %27 = sbr.rel (0) target = $region25
    $region24: #{tpu_custom_call.1} parent=1 // pred_region
      _
    $region25: #{tpu_custom_call.1} parent=1 // pred_fallthru
      _
    // Predicated region
    $region26: #{tpu_custom_call.1} parent=1 // pred_check
      _
    $region27: #{tpu_custom_call.1} parent=1 // pred_check_branch
      %29 = sbr.rel (0) target = $region29
    $region28: #{tpu_custom_call.1} parent=1 // pred_region
      _
    $region29: #{tpu_custom_call.1} parent=1 // pred_fallthru
      _
    // Predicated region
    $region30: #{tpu_custom_call.1} parent=1 // pred_check
      _
    $region31: #{tpu_custom_call.1} parent=1 // pred_check_branch
      %31 = sbr.rel (0) target = $region33
    $region32: #{tpu_custom_call.1} parent=1 // pred_region
      _
    $region33: #{tpu_custom_call.1} parent=1 // pred_fallthru
      _
    // Predicated region
    $region34: #{tpu_custom_call.1} parent=1 // pred_check
      _
    $region35: #{tpu_custom_call.1} parent=1 // pred_check_branch
      %33 = sbr.rel (0) target = $region37
    $region36: #{tpu_custom_call.1} parent=1 // pred_region
      _
    $region37: #{tpu_custom_call.1} parent=1 // pred_fallthru
      _
    %v35 = vld [vmem:[%s0] sm:$0xff]
    %v36 = vld [vmem:[%s0 + $0x8] sm:$0xff]
    %v37 = vld [vmem:[%s0 + $0x10] sm:$0xff]
    %v38 = vld [vmem:[%s0 + $0x18] sm:$0xff]
    %v39 = vld [vmem:[%s0 + $0x20] sm:$0xff]
    %v40 = vld [vmem:[%s0 + $0x28] sm:$0xff]
    %v41 = vpack.c.bf16 %v36, %v35
    %v42 = vpack.c.bf16 %v38, %v37
    %v43 = vpack.c.bf16 %v40, %v39
    %v44 = vld [vmem:[%s2] sm:$0xf]
    %v45 = vld [vmem:[%s2 + $0x4] sm:$0xf]
    %v46 = vld [vmem:[%s2 + $0x8] sm:$0xf]
    %v47 = vld [vmem:[%s2 + $0xc] sm:$0xf]
    %v48 = vld [vmem:[%s2 + $0x10] sm:$0xf]
    %v49 = vld [vmem:[%s2 + $0x14] sm:$0xf]
    %v50 = vld [vmem:[%s2 + $0x18] sm:$0xf]
    %v51 = vld [vmem:[%s2 + $0x1c] sm:$0xf]
    %v52 = vld [vmem:[%s2 + $0x20] sm:$0xf]
    %v53 = vld [vmem:[%s2 + $0x24] sm:$0xf]
    %v54 = vld [vmem:[%s2 + $0x28] sm:$0xf]
    %v55 = vld [vmem:[%s2 + $0x2c] sm:$0xf]
    %v56 = vld [vmem:[%s2 + $0x30] sm:$0xf]
    %v57 = vld [vmem:[%s2 + $0x34] sm:$0xf]
    %v58 = vld [vmem:[%s2 + $0x38] sm:$0xf]
    %v59 = vld [vmem:[%s2 + $0x3c] sm:$0xf]
    %v60 = vld [vmem:[%s2 + $0x40] sm:$0xf]
    %v61 = vld [vmem:[%s2 + $0x44] sm:$0xf]
    %v62 = vld [vmem:[%s2 + $0x48] sm:$0xf]
    %v63 = vld [vmem:[%s2 + $0x4c] sm:$0xf]
    %v64 = vld [vmem:[%s2 + $0x50] sm:$0xf]
    %v65 = vld [vmem:[%s2 + $0x54] sm:$0xf]
    %v66 = vld [vmem:[%s2 + $0x58] sm:$0xf]
    %v67 = vld [vmem:[%s2 + $0x5c] sm:$0xf]
    %v68 = vld [vmem:[%s2 + $0x60] sm:$0xf]
    %v69 = vld [vmem:[%s2 + $0x64] sm:$0xf]
    %v70 = vld [vmem:[%s2 + $0x68] sm:$0xf]
    %v71 = vld [vmem:[%s2 + $0x6c] sm:$0xf]
    %v72 = vld [vmem:[%s2 + $0x70] sm:$0xf]
    %v73 = vld [vmem:[%s2 + $0x74] sm:$0xf]
    %v74 = vld [vmem:[%s2 + $0x78] sm:$0xf]
    %v75 = vld [vmem:[%s2 + $0x7c] sm:$0xf]
    %v76 = vld [vmem:[%s2 + $0x80] sm:$0xf]
    %v77 = vld [vmem:[%s2 + $0x84] sm:$0xf]
    %v78 = vld [vmem:[%s2 + $0x88] sm:$0xf]
    %v79 = vld [vmem:[%s2 + $0x8c] sm:$0xf]
    %v80 = vld [vmem:[%s2 + $0x90] sm:$0xf]
    %v81 = vld [vmem:[%s2 + $0x94] sm:$0xf]
    %v82 = vld [vmem:[%s2 + $0x98] sm:$0xf]
    %v83 = vld [vmem:[%s2 + $0x9c] sm:$0xf]
    %v84 = vld [vmem:[%s2 + $0xa0] sm:$0xf]
    %v85 = vld [vmem:[%s2 + $0xa4] sm:$0xf]
    %v86 = vld [vmem:[%s2 + $0xa8] sm:$0xf]
    %v87 = vld [vmem:[%s2 + $0xac] sm:$0xf]
    %v88 = vld [vmem:[%s2 + $0xb0] sm:$0xf]
    %v89 = vld [vmem:[%s2 + $0xb4] sm:$0xf]
    %v90 = vld [vmem:[%s2 + $0xb8] sm:$0xf]
    %v91 = vld [vmem:[%s2 + $0xbc] sm:$0xf]
    %v92 = vld [vmem:[%s2 + $0xc0] sm:$0xf]
    %v93 = vld [vmem:[%s2 + $0xc4] sm:$0xf]
    %v94 = vld [vmem:[%s2 + $0xc8] sm:$0xf]
    %v95 = vld [vmem:[%s2 + $0xcc] sm:$0xf]
    %v96 = vld [vmem:[%s2 + $0xd0] sm:$0xf]
    %v97 = vld [vmem:[%s2 + $0xd4] sm:$0xf]
    %v98 = vld [vmem:[%s2 + $0xd8] sm:$0xf]
    %v99 = vld [vmem:[%s2 + $0xdc] sm:$0xf]
    %v100 = vld [vmem:[%s2 + $0xe0] sm:$0xf]
    %v101 = vld [vmem:[%s2 + $0xe4] sm:$0xf]
    %v102 = vld [vmem:[%s2 + $0xe8] sm:$0xf]
    %v103 = vld [vmem:[%s2 + $0xec] sm:$0xf]
    %v104 = vld [vmem:[%s2 + $0xf0] sm:$0xf]
    %v105 = vld [vmem:[%s2 + $0xf4] sm:$0xf]
    %v106 = vld [vmem:[%s2 + $0xf8] sm:$0xf]
    %v107 = vld [vmem:[%s2 + $0xfc] sm:$0xf]
    %v108 = vld [vmem:[%s3] sm:$0xff]
    %v109 = vld [vmem:[%s3 + $0x8] sm:$0xff]
    %v110 = vld [vmem:[%s3 + $0x10] sm:$0xff]
    %v111 = vld [vmem:[%s3 + $0x18] sm:$0xff]
    %v112 = vld [vmem:[%s3 + $0x20] sm:$0xff]
    %v113 = vld [vmem:[%s3 + $0x28] sm:$0xff]
    %v114 = vld [vmem:[%s3 + $0x30] sm:$0xff]
    %v115 = vld [vmem:[%s3 + $0x38] sm:$0xff]
    %v116 = vld [vmem:[%s3 + $0x40] sm:$0xff]
    %v117 = vld [vmem:[%s3 + $0x48] sm:$0xff]
    %v118 = vld [vmem:[%s3 + $0x50] sm:$0xff]
    %v119 = vld [vmem:[%s3 + $0x58] sm:$0xff]
    %v120 = vld [vmem:[%s3 + $0x60] sm:$0xff]
    %v121 = vld [vmem:[%s3 + $0x68] sm:$0xff]
    %v122 = vld [vmem:[%s3 + $0x70] sm:$0xff]
    %v123 = vld [vmem:[%s3 + $0x78] sm:$0xff]
    %v124 = vld [vmem:[%s3 + $0x80] sm:$0xff]
    %v125 = vld [vmem:[%s3 + $0x88] sm:$0xff]
    %v126 = vld [vmem:[%s3 + $0x90] sm:$0xff]
    %v127 = vld [vmem:[%s3 + $0x98] sm:$0xff]
    %v128 = vld [vmem:[%s3 + $0xa0] sm:$0xff]
    %v129 = vld [vmem:[%s3 + $0xa8] sm:$0xff]
    %v130 = vld [vmem:[%s3 + $0xb0] sm:$0xff]
    %v131 = vld [vmem:[%s3 + $0xb8] sm:$0xff]
    %v132 = vld [vmem:[%s3 + $0xc0] sm:$0xff]
    %v133 = vld [vmem:[%s3 + $0xc8] sm:$0xff]
    %v134 = vld [vmem:[%s3 + $0xd0] sm:$0xff]
    %v135 = vld [vmem:[%s3 + $0xd8] sm:$0xff]
    %v136 = vld [vmem:[%s3 + $0xe0] sm:$0xff]
    %v137 = vld [vmem:[%s3 + $0xe8] sm:$0xff]
    %v138 = vld [vmem:[%s3 + $0xf0] sm:$0xff]
    %v139 = vld [vmem:[%s3 + $0xf8] sm:$0xff]
    %v140 = vld [vmem:[%s3 + $0x100] sm:$0xff]
    %v141 = vld [vmem:[%s3 + $0x108] sm:$0xff]
    %v142 = vld [vmem:[%s3 + $0x110] sm:$0xff]
    %v143 = vld [vmem:[%s3 + $0x118] sm:$0xff]
    %v144 = vld [vmem:[%s3 + $0x120] sm:$0xff]
    %v145 = vld [vmem:[%s3 + $0x128] sm:$0xff]
    %v146 = vld [vmem:[%s3 + $0x130] sm:$0xff]
    %v147 = vld [vmem:[%s3 + $0x138] sm:$0xff]
    %v148 = vld [vmem:[%s3 + $0x140] sm:$0xff]
    %v149 = vld [vmem:[%s3 + $0x148] sm:$0xff]
    %v150 = vld [vmem:[%s3 + $0x150] sm:$0xff]
    %v151 = vld [vmem:[%s3 + $0x158] sm:$0xff]
    %v152 = vld [vmem:[%s3 + $0x160] sm:$0xff]
    %v153 = vld [vmem:[%s3 + $0x168] sm:$0xff]
    %v154 = vld [vmem:[%s3 + $0x170] sm:$0xff]
    %v155 = vld [vmem:[%s3 + $0x178] sm:$0xff]
    %v156 = vld [vmem:[%s3 + $0x180] sm:$0xff]
    %v157 = vld [vmem:[%s3 + $0x188] sm:$0xff]
    %v158 = vld [vmem:[%s3 + $0x190] sm:$0xff]
    %v159 = vld [vmem:[%s3 + $0x198] sm:$0xff]
    %v160 = vld [vmem:[%s3 + $0x1a0] sm:$0xff]
    %v161 = vld [vmem:[%s3 + $0x1a8] sm:$0xff]
    %v162 = vld [vmem:[%s3 + $0x1b0] sm:$0xff]
    %v163 = vld [vmem:[%s3 + $0x1b8] sm:$0xff]
    %v164 = vld [vmem:[%s3 + $0x1c0] sm:$0xff]
    %v165 = vld [vmem:[%s3 + $0x1c8] sm:$0xff]
    %v166 = vld [vmem:[%s3 + $0x1d0] sm:$0xff]
    %v167 = vld [vmem:[%s3 + $0x1d8] sm:$0xff]
    %v168 = vld [vmem:[%s3 + $0x1e0] sm:$0xff]
    %v169 = vld [vmem:[%s3 + $0x1e8] sm:$0xff]
    %v170 = vld [vmem:[%s3 + $0x1f0] sm:$0xff]
    %v171 = vld [vmem:[%s3 + $0x1f8] sm:$0xff]
    %173 = vset.pattern.permute.xlu0 0
    %174 = vperm.xlu0 %173, %v108
    %v175 = vpop.permute.xlu0 %174
    %178 = vset.pattern.permute.xlu0 0
    %179 = vperm.xlu0 %178, %v109
    %v180 = vpop.permute.xlu0 %179
    %183 = vset.pattern.permute.xlu0 0
    %184 = vperm.xlu0 %183, %v110
    %v185 = vpop.permute.xlu0 %184
    %188 = vset.pattern.permute.xlu0 0
    %189 = vperm.xlu0 %188, %v111
    %v190 = vpop.permute.xlu0 %189
    %193 = vset.pattern.permute.xlu0 0
    %194 = vperm.xlu0 %193, %v112
    %v195 = vpop.permute.xlu0 %194
    %198 = vset.pattern.permute.xlu0 0
    %199 = vperm.xlu0 %198, %v113
    %v200 = vpop.permute.xlu0 %199
    %203 = vset.pattern.permute.xlu0 0
    %204 = vperm.xlu0 %203, %v114
    %v205 = vpop.permute.xlu0 %204
    %208 = vset.pattern.permute.xlu0 0
    %209 = vperm.xlu0 %208, %v115
    %v210 = vpop.permute.xlu0 %209
    %213 = vset.pattern.permute.xlu0 0
    %214 = vperm.xlu0 %213, %v116
    %v215 = vpop.permute.xlu0 %214
    %218 = vset.pattern.permute.xlu0 0
    %219 = vperm.xlu0 %218, %v117
    %v220 = vpop.permute.xlu0 %219
    %223 = vset.pattern.permute.xlu0 0
    %224 = vperm.xlu0 %223, %v118
    %v225 = vpop.permute.xlu0 %224
    %228 = vset.pattern.permute.xlu0 0
    %229 = vperm.xlu0 %228, %v119
    %v230 = vpop.permute.xlu0 %229
    %233 = vset.pattern.permute.xlu0 0
    %234 = vperm.xlu0 %233, %v120
    %v235 = vpop.permute.xlu0 %234
    %238 = vset.pattern.permute.xlu0 0
    %239 = vperm.xlu0 %238, %v121
    %v240 = vpop.permute.xlu0 %239
    %243 = vset.pattern.permute.xlu0 0
    %244 = vperm.xlu0 %243, %v122
    %v245 = vpop.permute.xlu0 %244
    %248 = vset.pattern.permute.xlu0 0
    %249 = vperm.xlu0 %248, %v123
    %v250 = vpop.permute.xlu0 %249
    %253 = vset.pattern.permute.xlu0 0
    %254 = vperm.xlu0 %253, %v124
    %v255 = vpop.permute.xlu0 %254
    %258 = vset.pattern.permute.xlu0 0
    %259 = vperm.xlu0 %258, %v125
    %v260 = vpop.permute.xlu0 %259
    %263 = vset.pattern.permute.xlu0 0
    %264 = vperm.xlu0 %263, %v126
    %v265 = vpop.permute.xlu0 %264
    %268 = vset.pattern.permute.xlu0 0
    %269 = vperm.xlu0 %268, %v127
    %v270 = vpop.permute.xlu0 %269
    %273 = vset.pattern.permute.xlu0 0
    %274 = vperm.xlu0 %273, %v128
    %v275 = vpop.permute.xlu0 %274
    %278 = vset.pattern.permute.xlu0 0
    %279 = vperm.xlu0 %278, %v129
    %v280 = vpop.permute.xlu0 %279
    %283 = vset.pattern.permute.xlu0 0
    %284 = vperm.xlu0 %283, %v130
    %v285 = vpop.permute.xlu0 %284
    %288 = vset.pattern.permute.xlu0 0
    %289 = vperm.xlu0 %288, %v131
    %v290 = vpop.permute.xlu0 %289
    %293 = vset.pattern.permute.xlu0 0
    %294 = vperm.xlu0 %293, %v132
    %v295 = vpop.permute.xlu0 %294
    %298 = vset.pattern.permute.xlu0 0
    %299 = vperm.xlu0 %298, %v133
    %v300 = vpop.permute.xlu0 %299
    %303 = vset.pattern.permute.xlu0 0
    %304 = vperm.xlu0 %303, %v134
    %v305 = vpop.permute.xlu0 %304
    %308 = vset.pattern.permute.xlu0 0
    %309 = vperm.xlu0 %308, %v135
    %v310 = vpop.permute.xlu0 %309
    %313 = vset.pattern.permute.xlu0 0
    %314 = vperm.xlu0 %313, %v136
    %v315 = vpop.permute.xlu0 %314
    %318 = vset.pattern.permute.xlu0 0
    %319 = vperm.xlu0 %318, %v137
    %v320 = vpop.permute.xlu0 %319
    %323 = vset.pattern.permute.xlu0 0
    %324 = vperm.xlu0 %323, %v138
    %v325 = vpop.permute.xlu0 %324
    %328 = vset.pattern.permute.xlu0 0
    %329 = vperm.xlu0 %328, %v139
    %v330 = vpop.permute.xlu0 %329
    %333 = vset.pattern.permute.xlu0 0
    %334 = vperm.xlu0 %333, %v140
    %v335 = vpop.permute.xlu0 %334
    %338 = vset.pattern.permute.xlu0 0
    %339 = vperm.xlu0 %338, %v141
    %v340 = vpop.permute.xlu0 %339
    %343 = vset.pattern.permute.xlu0 0
    %344 = vperm.xlu0 %343, %v142
    %v345 = vpop.permute.xlu0 %344
    %348 = vset.pattern.permute.xlu0 0
    %349 = vperm.xlu0 %348, %v143
    %v350 = vpop.permute.xlu0 %349
    %353 = vset.pattern.permute.xlu0 0
    %354 = vperm.xlu0 %353, %v144
    %v355 = vpop.permute.xlu0 %354
    %358 = vset.pattern.permute.xlu0 0
    %359 = vperm.xlu0 %358, %v145
    %v360 = vpop.permute.xlu0 %359
    %363 = vset.pattern.permute.xlu0 0
    %364 = vperm.xlu0 %363, %v146
    %v365 = vpop.permute.xlu0 %364
    %368 = vset.pattern.permute.xlu0 0
    %369 = vperm.xlu0 %368, %v147
    %v370 = vpop.permute.xlu0 %369
    %373 = vset.pattern.permute.xlu0 0
    %374 = vperm.xlu0 %373, %v148
    %v375 = vpop.permute.xlu0 %374
    %378 = vset.pattern.permute.xlu0 0
    %379 = vperm.xlu0 %378, %v149
    %v380 = vpop.permute.xlu0 %379
    %383 = vset.pattern.permute.xlu0 0
    %384 = vperm.xlu0 %383, %v150
    %v385 = vpop.permute.xlu0 %384
    %388 = vset.pattern.permute.xlu0 0
    %389 = vperm.xlu0 %388, %v151
    %v390 = vpop.permute.xlu0 %389
    %393 = vset.pattern.permute.xlu0 0
    %394 = vperm.xlu0 %393, %v152
    %v395 = vpop.permute.xlu0 %394
    %398 = vset.pattern.permute.xlu0 0
    %399 = vperm.xlu0 %398, %v153
    %v400 = vpop.permute.xlu0 %399
    %403 = vset.pattern.permute.xlu0 0
    %404 = vperm.xlu0 %403, %v154
    %v405 = vpop.permute.xlu0 %404
    %408 = vset.pattern.permute.xlu0 0
    %409 = vperm.xlu0 %408, %v155
    %v410 = vpop.permute.xlu0 %409
    %413 = vset.pattern.permute.xlu0 0
    %414 = vperm.xlu0 %413, %v156
    %v415 = vpop.permute.xlu0 %414
    %418 = vset.pattern.permute.xlu0 0
    %419 = vperm.xlu0 %418, %v157
    %v420 = vpop.permute.xlu0 %419
    %423 = vset.pattern.permute.xlu0 0
    %424 = vperm.xlu0 %423, %v158
    %v425 = vpop.permute.xlu0 %424
    %428 = vset.pattern.permute.xlu0 0
    %429 = vperm.xlu0 %428, %v159
    %v430 = vpop.permute.xlu0 %429
    %433 = vset.pattern.permute.xlu0 0
    %434 = vperm.xlu0 %433, %v160
    %v435 = vpop.permute.xlu0 %434
    %438 = vset.pattern.permute.xlu0 0
    %439 = vperm.xlu0 %438, %v161
    %v440 = vpop.permute.xlu0 %439
    %443 = vset.pattern.permute.xlu0 0
    %444 = vperm.xlu0 %443, %v162
    %v445 = vpop.permute.xlu0 %444
    %448 = vset.pattern.permute.xlu0 0
    %449 = vperm.xlu0 %448, %v163
    %v450 = vpop.permute.xlu0 %449
    %453 = vset.pattern.permute.xlu0 0
    %454 = vperm.xlu0 %453, %v164
    %v455 = vpop.permute.xlu0 %454
    %458 = vset.pattern.permute.xlu0 0
    %459 = vperm.xlu0 %458, %v165
    %v460 = vpop.permute.xlu0 %459
    %463 = vset.pattern.permute.xlu0 0
    %464 = vperm.xlu0 %463, %v166
    %v465 = vpop.permute.xlu0 %464
    %468 = vset.pattern.permute.xlu0 0
    %469 = vperm.xlu0 %468, %v167
    %v470 = vpop.permute.xlu0 %469
    %473 = vset.pattern.permute.xlu0 0
    %474 = vperm.xlu0 %473, %v168
    %v475 = vpop.permute.xlu0 %474
    %478 = vset.pattern.permute.xlu0 0
    %479 = vperm.xlu0 %478, %v169
    %v480 = vpop.permute.xlu0 %479
    %483 = vset.pattern.permute.xlu0 0
    %484 = vperm.xlu0 %483, %v170
    %v485 = vpop.permute.xlu0 %484
    %488 = vset.pattern.permute.xlu0 0
    %489 = vperm.xlu0 %488, %v171
    %v490 = vpop.permute.xlu0 %489
    %v556 = vunpack.c.l.b16 %v44
    %v557 = vunpack.c.l.b16 %v45
    %v558 = vunpack.c.l.b16 %v46
    %v559 = vunpack.c.l.b16 %v47
    %v560 = vunpack.c.l.b16 %v48
    %v561 = vunpack.c.l.b16 %v49
    %v562 = vunpack.c.l.b16 %v50
    %v563 = vunpack.c.l.b16 %v51
    %v564 = vunpack.c.l.b16 %v52
    %v565 = vunpack.c.l.b16 %v53
    %v566 = vunpack.c.l.b16 %v54
    %v567 = vunpack.c.l.b16 %v55
    %v568 = vunpack.c.l.b16 %v56
    %v569 = vunpack.c.l.b16 %v57
    %v570 = vunpack.c.l.b16 %v58
    %v571 = vunpack.c.l.b16 %v59
    %v572 = vunpack.c.l.b16 %v60
    %v573 = vunpack.c.l.b16 %v61
    %v574 = vunpack.c.l.b16 %v62
    %v575 = vunpack.c.l.b16 %v63
    %v576 = vunpack.c.l.b16 %v64
    %v577 = vunpack.c.l.b16 %v65
    %v578 = vunpack.c.l.b16 %v66
    %v579 = vunpack.c.l.b16 %v67
    %v580 = vunpack.c.l.b16 %v68
    %v581 = vunpack.c.l.b16 %v69
    %v582 = vunpack.c.l.b16 %v70
    %v583 = vunpack.c.l.b16 %v71
    %v584 = vunpack.c.l.b16 %v72
    %v585 = vunpack.c.l.b16 %v73
    %v586 = vunpack.c.l.b16 %v74
    %v587 = vunpack.c.l.b16 %v75
    %v588 = vunpack.c.l.b16 %v76
    %v589 = vunpack.c.l.b16 %v77
    %v590 = vunpack.c.l.b16 %v78
    %v591 = vunpack.c.l.b16 %v79
    %v592 = vunpack.c.l.b16 %v80
    %v593 = vunpack.c.l.b16 %v81
    %v594 = vunpack.c.l.b16 %v82
    %v595 = vunpack.c.l.b16 %v83
    %v596 = vunpack.c.l.b16 %v84
    %v597 = vunpack.c.l.b16 %v85
    %v598 = vunpack.c.l.b16 %v86
    %v599 = vunpack.c.l.b16 %v87
    %v600 = vunpack.c.l.b16 %v88
    %v601 = vunpack.c.l.b16 %v89
    %v602 = vunpack.c.l.b16 %v90
    %v603 = vunpack.c.l.b16 %v91
    %v604 = vunpack.c.l.b16 %v92
    %v605 = vunpack.c.l.b16 %v93
    %v606 = vunpack.c.l.b16 %v94
    %v607 = vunpack.c.l.b16 %v95
    %v608 = vunpack.c.l.b16 %v96
    %v609 = vunpack.c.l.b16 %v97
    %v610 = vunpack.c.l.b16 %v98
    %v611 = vunpack.c.l.b16 %v99
    %v612 = vunpack.c.l.b16 %v100
    %v613 = vunpack.c.l.b16 %v101
    %v614 = vunpack.c.l.b16 %v102
    %v615 = vunpack.c.l.b16 %v103
    %v616 = vunpack.c.l.b16 %v104
    %v617 = vunpack.c.l.b16 %v105
    %v618 = vunpack.c.l.b16 %v106
    %v619 = vunpack.c.l.b16 %v107
    %v620 = vpack.c.b16 %v557, %v556
    %v621 = vpack.c.b16 %v559, %v558
    %v622 = vpack.c.b16 %v561, %v560
    %v623 = vpack.c.b16 %v563, %v562
    %v624 = vpack.c.b16 %v565, %v564
    %v625 = vpack.c.b16 %v567, %v566
    %v626 = vpack.c.b16 %v569, %v568
    %v627 = vpack.c.b16 %v571, %v570
    %v628 = vpack.c.b16 %v573, %v572
    %v629 = vpack.c.b16 %v575, %v574
    %v630 = vpack.c.b16 %v577, %v576
    %v631 = vpack.c.b16 %v579, %v578
    %v632 = vpack.c.b16 %v581, %v580
    %v633 = vpack.c.b16 %v583, %v582
    %v634 = vpack.c.b16 %v585, %v584
    %v635 = vpack.c.b16 %v587, %v586
    %v636 = vpack.c.b16 %v589, %v588
    %v637 = vpack.c.b16 %v591, %v590
    %v638 = vpack.c.b16 %v593, %v592
    %v639 = vpack.c.b16 %v595, %v594
    %v640 = vpack.c.b16 %v597, %v596
    %v641 = vpack.c.b16 %v599, %v598
    %v642 = vpack.c.b16 %v601, %v600
    %v643 = vpack.c.b16 %v603, %v602
    %v644 = vpack.c.b16 %v605, %v604
    %v645 = vpack.c.b16 %v607, %v606
    %v646 = vpack.c.b16 %v609, %v608
    %v647 = vpack.c.b16 %v611, %v610
    %v648 = vpack.c.b16 %v613, %v612
    %v649 = vpack.c.b16 %v615, %v614
    %v650 = vpack.c.b16 %v617, %v616
    %v651 = vpack.c.b16 %v619, %v618
    %vm652 = vcmask 392192
    %v654 = vsel %vm652, %v620, 0
    %v657 = vsel %vm652, %v621, 0
    %v660 = vsel %vm652, %v622, 0
    %v663 = vsel %vm652, %v623, 0
    %v666 = vsel %vm652, %v624, 0
    %v669 = vsel %vm652, %v625, 0
    %v672 = vsel %vm652, %v626, 0
    %v675 = vsel %vm652, %v627, 0
    %v678 = vsel %vm652, %v628, 0
    %v681 = vsel %vm652, %v629, 0
    %v684 = vsel %vm652, %v630, 0
    %v687 = vsel %vm652, %v631, 0
    %v690 = vsel %vm652, %v632, 0
    %v693 = vsel %vm652, %v633, 0
    %v696 = vsel %vm652, %v634, 0
    %v699 = vsel %vm652, %v635, 0
    %v702 = vsel %vm652, %v636, 0
    %v705 = vsel %vm652, %v637, 0
    %v708 = vsel %vm652, %v638, 0
    %v711 = vsel %vm652, %v639, 0
    %v714 = vsel %vm652, %v640, 0
    %v717 = vsel %vm652, %v641, 0
    %v720 = vsel %vm652, %v642, 0
    %v723 = vsel %vm652, %v643, 0
    %v726 = vsel %vm652, %v644, 0
    %v729 = vsel %vm652, %v645, 0
    %v732 = vsel %vm652, %v646, 0
    %v735 = vsel %vm652, %v647, 0
    %v738 = vsel %vm652, %v648, 0
    %v741 = vsel %vm652, %v649, 0
    %v744 = vsel %vm652, %v650, 0
    %v747 = vsel %vm652, %v651, 0
    %749 = vmatpush.bf16.msra.mxu0 0
    %750 = vmatpush.bf16.msra.mxu0 0
    %751 = vmatpush.bf16.msra.mxu0 0
    %752 = vmatpush.bf16.msra.mxu0 0
    %753 = vmatpush.bf16.msra.mxu0 0
    %754 = vmatpush.bf16.msra.mxu0 %v43
    %755 = vmatpush.bf16.msra.mxu0 %v42
    %756 = vmatpush.bf16.msra.mxu0 %v41
    %757 = vmatmul.bf16.gmra.mxu0 %v654
    %v758 = vpop.f32.mrf.mxu0
    %v759 = vadd.f32 %v175, %v758
    %v760 = vpop.f32.mrf.mxu0
    %v761 = vadd.f32 %v180, %v760
    %762 = vmatmul.bf16.gmra.mxu0 %v657
    %v763 = vpop.f32.mrf.mxu0
    %v764 = vadd.f32 %v185, %v763
    %v765 = vpop.f32.mrf.mxu0
    %v766 = vadd.f32 %v190, %v765
    %767 = vmatmul.bf16.gmra.mxu0 %v660
    %v768 = vpop.f32.mrf.mxu0
    %v769 = vadd.f32 %v195, %v768
    %v770 = vpop.f32.mrf.mxu0
    %v771 = vadd.f32 %v200, %v770
    %772 = vmatmul.bf16.gmra.mxu0 %v663
    %v773 = vpop.f32.mrf.mxu0
    %v774 = vadd.f32 %v205, %v773
    %v775 = vpop.f32.mrf.mxu0
    %v776 = vadd.f32 %v210, %v775
    %777 = vmatmul.bf16.gmra.mxu0 %v666
    %v778 = vpop.f32.mrf.mxu0
    %v779 = vadd.f32 %v215, %v778
    %v780 = vpop.f32.mrf.mxu0
    %v781 = vadd.f32 %v220, %v780
    %782 = vmatmul.bf16.gmra.mxu0 %v669
    %v783 = vpop.f32.mrf.mxu0
    %v784 = vadd.f32 %v225, %v783
    %v785 = vpop.f32.mrf.mxu0
    %v786 = vadd.f32 %v230, %v785
    %787 = vmatmul.bf16.gmra.mxu0 %v672
    %v788 = vpop.f32.mrf.mxu0
    %v789 = vadd.f32 %v235, %v788
    %v790 = vpop.f32.mrf.mxu0
    %v791 = vadd.f32 %v240, %v790
    %792 = vmatmul.bf16.gmra.mxu0 %v675
    %v793 = vpop.f32.mrf.mxu0
    %v794 = vadd.f32 %v245, %v793
    %v795 = vpop.f32.mrf.mxu0
    %v796 = vadd.f32 %v250, %v795
    %797 = vmatmul.bf16.gmra.mxu0 %v678
    %v798 = vpop.f32.mrf.mxu0
    %v799 = vadd.f32 %v255, %v798
    %v800 = vpop.f32.mrf.mxu0
    %v801 = vadd.f32 %v260, %v800
    %802 = vmatmul.bf16.gmra.mxu0 %v681
    %v803 = vpop.f32.mrf.mxu0
    %v804 = vadd.f32 %v265, %v803
    %v805 = vpop.f32.mrf.mxu0
    %v806 = vadd.f32 %v270, %v805
    %807 = vmatmul.bf16.gmra.mxu0 %v684
    %v808 = vpop.f32.mrf.mxu0
    %v809 = vadd.f32 %v275, %v808
    %v810 = vpop.f32.mrf.mxu0
    %v811 = vadd.f32 %v280, %v810
    %812 = vmatmul.bf16.gmra.mxu0 %v687
    %v813 = vpop.f32.mrf.mxu0
    %v814 = vadd.f32 %v285, %v813
    %v815 = vpop.f32.mrf.mxu0
    %v816 = vadd.f32 %v290, %v815
    %817 = vmatmul.bf16.gmra.mxu0 %v690
    %v818 = vpop.f32.mrf.mxu0
    %v819 = vadd.f32 %v295, %v818
    %v820 = vpop.f32.mrf.mxu0
    %v821 = vadd.f32 %v300, %v820
    %822 = vmatmul.bf16.gmra.mxu0 %v693
    %v823 = vpop.f32.mrf.mxu0
    %v824 = vadd.f32 %v305, %v823
    %v825 = vpop.f32.mrf.mxu0
    %v826 = vadd.f32 %v310, %v825
    %827 = vmatmul.bf16.gmra.mxu0 %v696
    %v828 = vpop.f32.mrf.mxu0
    %v829 = vadd.f32 %v315, %v828
    %v830 = vpop.f32.mrf.mxu0
    %v831 = vadd.f32 %v320, %v830
    %832 = vmatmul.bf16.gmra.mxu0 %v699
    %v833 = vpop.f32.mrf.mxu0
    %v834 = vadd.f32 %v325, %v833
    %v835 = vpop.f32.mrf.mxu0
    %v836 = vadd.f32 %v330, %v835
    %837 = vmatmul.bf16.gmra.mxu0 %v702
    %v838 = vpop.f32.mrf.mxu0
    %v839 = vadd.f32 %v335, %v838
    %v840 = vpop.f32.mrf.mxu0
    %v841 = vadd.f32 %v340, %v840
    %842 = vmatmul.bf16.gmra.mxu0 %v705
    %v843 = vpop.f32.mrf.mxu0
    %v844 = vadd.f32 %v345, %v843
    %v845 = vpop.f32.mrf.mxu0
    %v846 = vadd.f32 %v350, %v845
    %847 = vmatmul.bf16.gmra.mxu0 %v708
    %v848 = vpop.f32.mrf.mxu0
    %v849 = vadd.f32 %v355, %v848
    %v850 = vpop.f32.mrf.mxu0
    %v851 = vadd.f32 %v360, %v850
    %852 = vmatmul.bf16.gmra.mxu0 %v711
    %v853 = vpop.f32.mrf.mxu0
    %v854 = vadd.f32 %v365, %v853
    %v855 = vpop.f32.mrf.mxu0
    %v856 = vadd.f32 %v370, %v855
    %857 = vmatmul.bf16.gmra.mxu0 %v714
    %v858 = vpop.f32.mrf.mxu0
    %v859 = vadd.f32 %v375, %v858
    %v860 = vpop.f32.mrf.mxu0
    %v861 = vadd.f32 %v380, %v860
    %862 = vmatmul.bf16.gmra.mxu0 %v717
    %v863 = vpop.f32.mrf.mxu0
    %v864 = vadd.f32 %v385, %v863
    %v865 = vpop.f32.mrf.mxu0
    %v866 = vadd.f32 %v390, %v865
    %867 = vmatmul.bf16.gmra.mxu0 %v720
    %v868 = vpop.f32.mrf.mxu0
    %v869 = vadd.f32 %v395, %v868
    %v870 = vpop.f32.mrf.mxu0
    %v871 = vadd.f32 %v400, %v870
    %872 = vmatmul.bf16.gmra.mxu0 %v723
    %v873 = vpop.f32.mrf.mxu0
    %v874 = vadd.f32 %v405, %v873
    %v875 = vpop.f32.mrf.mxu0
    %v876 = vadd.f32 %v410, %v875
    %877 = vmatmul.bf16.gmra.mxu0 %v726
    %v878 = vpop.f32.mrf.mxu0
    %v879 = vadd.f32 %v415, %v878
    %v880 = vpop.f32.mrf.mxu0
    %v881 = vadd.f32 %v420, %v880
    %882 = vmatmul.bf16.gmra.mxu0 %v729
    %v883 = vpop.f32.mrf.mxu0
    %v884 = vadd.f32 %v425, %v883
    %v885 = vpop.f32.mrf.mxu0
    %v886 = vadd.f32 %v430, %v885
    %887 = vmatmul.bf16.gmra.mxu0 %v732
    %v888 = vpop.f32.mrf.mxu0
    %v889 = vadd.f32 %v435, %v888
    %v890 = vpop.f32.mrf.mxu0
    %v891 = vadd.f32 %v440, %v890
    %892 = vmatmul.bf16.gmra.mxu0 %v735
    %v893 = vpop.f32.mrf.mxu0
    %v894 = vadd.f32 %v445, %v893
    %v895 = vpop.f32.mrf.mxu0
    %v896 = vadd.f32 %v450, %v895
    %897 = vmatmul.bf16.gmra.mxu0 %v738
    %v898 = vpop.f32.mrf.mxu0
    %v899 = vadd.f32 %v455, %v898
    %v900 = vpop.f32.mrf.mxu0
    %v901 = vadd.f32 %v460, %v900
    %902 = vmatmul.bf16.gmra.mxu0 %v741
    %v903 = vpop.f32.mrf.mxu0
    %v904 = vadd.f32 %v465, %v903
    %v905 = vpop.f32.mrf.mxu0
    %v906 = vadd.f32 %v470, %v905
    %907 = vmatmul.bf16.gmra.mxu0 %v744
    %v908 = vpop.f32.mrf.mxu0
    %v909 = vadd.f32 %v475, %v908
    %v910 = vpop.f32.mrf.mxu0
    %v911 = vadd.f32 %v480, %v910
    %912 = vmatmul.bf16.gmra.mxu0 %v747
    %v913 = vpop.f32.mrf.mxu0
    %v914 = vadd.f32 %v485, %v913
    %v915 = vpop.f32.mrf.mxu0
    %v916 = vadd.f32 %v490, %v915
    %917 = vdwg.mxu0
    %v918 = vmax.f32 %v759, 0.0
    %v919 = vmax.f32 %v761, 0.0
    %v920 = vmax.f32 %v764, 0.0
    %v921 = vmax.f32 %v766, 0.0
    %v922 = vmax.f32 %v769, 0.0
    %v923 = vmax.f32 %v771, 0.0
    %v924 = vmax.f32 %v774, 0.0
    %v925 = vmax.f32 %v776, 0.0
    %v926 = vmax.f32 %v779, 0.0
    %v927 = vmax.f32 %v781, 0.0
    %v928 = vmax.f32 %v784, 0.0
    %v929 = vmax.f32 %v786, 0.0
    %v930 = vmax.f32 %v789, 0.0
    %v931 = vmax.f32 %v791, 0.0
    %v932 = vmax.f32 %v794, 0.0
    %v933 = vmax.f32 %v796, 0.0
    %v934 = vmax.f32 %v799, 0.0
    %v935 = vmax.f32 %v801, 0.0
    %v936 = vmax.f32 %v804, 0.0
    %v937 = vmax.f32 %v806, 0.0
    %v938 = vmax.f32 %v809, 0.0
    %v939 = vmax.f32 %v811, 0.0
    %v940 = vmax.f32 %v814, 0.0
    %v941 = vmax.f32 %v816, 0.0
    %v942 = vmax.f32 %v819, 0.0
    %v943 = vmax.f32 %v821, 0.0
    %v944 = vmax.f32 %v824, 0.0
    %v945 = vmax.f32 %v826, 0.0
    %v946 = vmax.f32 %v829, 0.0
    %v947 = vmax.f32 %v831, 0.0
    %v948 = vmax.f32 %v834, 0.0
    %v949 = vmax.f32 %v836, 0.0
    %v950 = vmax.f32 %v839, 0.0
    %v951 = vmax.f32 %v841, 0.0
    %v952 = vmax.f32 %v844, 0.0
    %v953 = vmax.f32 %v846, 0.0
    %v954 = vmax.f32 %v849, 0.0
    %v955 = vmax.f32 %v851, 0.0
    %v956 = vmax.f32 %v854, 0.0
    %v957 = vmax.f32 %v856, 0.0
    %v958 = vmax.f32 %v859, 0.0
    %v959 = vmax.f32 %v861, 0.0
    %v960 = vmax.f32 %v864, 0.0
    %v961 = vmax.f32 %v866, 0.0
    %v962 = vmax.f32 %v869, 0.0
    %v963 = vmax.f32 %v871, 0.0
    %v964 = vmax.f32 %v874, 0.0
    %v965 = vmax.f32 %v876, 0.0
    %v966 = vmax.f32 %v879, 0.0
    %v967 = vmax.f32 %v881, 0.0
    %v968 = vmax.f32 %v884, 0.0
    %v969 = vmax.f32 %v886, 0.0
    %v970 = vmax.f32 %v889, 0.0
    %v971 = vmax.f32 %v891, 0.0
    %v972 = vmax.f32 %v894, 0.0
    %v973 = vmax.f32 %v896, 0.0
    %v974 = vmax.f32 %v899, 0.0
    %v975 = vmax.f32 %v901, 0.0
    %v976 = vmax.f32 %v904, 0.0
    %v977 = vmax.f32 %v906, 0.0
    %v978 = vmax.f32 %v909, 0.0
    %v979 = vmax.f32 %v911, 0.0
    %v980 = vmax.f32 %v914, 0.0
    %v981 = vmax.f32 %v916, 0.0
    %v982 = vpack.c.bf16 %v919, %v918
    %v983 = vpack.c.bf16 %v921, %v920
    %v984 = vpack.c.bf16 %v923, %v922
    %v985 = vpack.c.bf16 %v925, %v924
    %v986 = vpack.c.bf16 %v927, %v926
    %v987 = vpack.c.bf16 %v929, %v928
    %v988 = vpack.c.bf16 %v931, %v930
    %v989 = vpack.c.bf16 %v933, %v932
    %v990 = vpack.c.bf16 %v935, %v934
    %v991 = vpack.c.bf16 %v937, %v936
    %v992 = vpack.c.bf16 %v939, %v938
    %v993 = vpack.c.bf16 %v941, %v940
    %v994 = vpack.c.bf16 %v943, %v942
    %v995 = vpack.c.bf16 %v945, %v944
    %v996 = vpack.c.bf16 %v947, %v946
    %v997 = vpack.c.bf16 %v949, %v948
    %v998 = vpack.c.bf16 %v951, %v950
    %v999 = vpack.c.bf16 %v953, %v952
    %v1000 = vpack.c.bf16 %v955, %v954
    %v1001 = vpack.c.bf16 %v957, %v956
    %v1002 = vpack.c.bf16 %v959, %v958
    %v1003 = vpack.c.bf16 %v961, %v960
    %v1004 = vpack.c.bf16 %v963, %v962
    %v1005 = vpack.c.bf16 %v965, %v964
    %v1006 = vpack.c.bf16 %v967, %v966
    %v1007 = vpack.c.bf16 %v969, %v968
    %v1008 = vpack.c.bf16 %v971, %v970
    %v1009 = vpack.c.bf16 %v973, %v972
    %v1010 = vpack.c.bf16 %v975, %v974
    %v1011 = vpack.c.bf16 %v977, %v976
    %v1012 = vpack.c.bf16 %v979, %v978
    %v1013 = vpack.c.bf16 %v981, %v980
    %v1014 = vld [vmem:[%s4] sm:$0xff]
    %v1015 = vld [vmem:[%s4 + $0x8] sm:$0xff]
    %v1016 = vld [vmem:[%s4 + $0x10] sm:$0xff]
    %v1017 = vld [vmem:[%s4 + $0x18] sm:$0xff]
    %v1018 = vld [vmem:[%s4 + $0x20] sm:$0xff]
    %v1019 = vld [vmem:[%s4 + $0x28] sm:$0xff]
    %v1020 = vld [vmem:[%s4 + $0x30] sm:$0xff]
    %v1021 = vld [vmem:[%s4 + $0x38] sm:$0xff]
    %v1022 = vld [vmem:[%s4 + $0x40] sm:$0xff]
    %v1023 = vld [vmem:[%s4 + $0x48] sm:$0xff]
    %v1024 = vld [vmem:[%s4 + $0x50] sm:$0xff]
    %v1025 = vld [vmem:[%s4 + $0x58] sm:$0xff]
    %v1026 = vld [vmem:[%s4 + $0x60] sm:$0xff]
    %v1027 = vld [vmem:[%s4 + $0x68] sm:$0xff]
    %v1028 = vld [vmem:[%s4 + $0x70] sm:$0xff]
    %v1029 = vld [vmem:[%s4 + $0x78] sm:$0xff]
    %v1030 = vld [vmem:[%s4 + $0x80] sm:$0xff]
    %v1031 = vld [vmem:[%s4 + $0x88] sm:$0xff]
    %v1032 = vld [vmem:[%s4 + $0x90] sm:$0xff]
    %v1033 = vld [vmem:[%s4 + $0x98] sm:$0xff]
    %v1034 = vld [vmem:[%s4 + $0xa0] sm:$0xff]
    %v1035 = vld [vmem:[%s4 + $0xa8] sm:$0xff]
    %v1036 = vld [vmem:[%s4 + $0xb0] sm:$0xff]
    %v1037 = vld [vmem:[%s4 + $0xb8] sm:$0xff]
    %v1038 = vld [vmem:[%s4 + $0xc0] sm:$0xff]
    %v1039 = vld [vmem:[%s4 + $0xc8] sm:$0xff]
    %v1040 = vld [vmem:[%s4 + $0xd0] sm:$0xff]
    %v1041 = vld [vmem:[%s4 + $0xd8] sm:$0xff]
    %v1042 = vld [vmem:[%s4 + $0xe0] sm:$0xff]
    %v1043 = vld [vmem:[%s4 + $0xe8] sm:$0xff]
    %v1044 = vld [vmem:[%s4 + $0xf0] sm:$0xff]
    %v1045 = vld [vmem:[%s4 + $0xf8] sm:$0xff]
    %v1046 = vld [vmem:[%s4 + $0x100] sm:$0xff]
    %v1047 = vld [vmem:[%s4 + $0x108] sm:$0xff]
    %v1048 = vld [vmem:[%s4 + $0x110] sm:$0xff]
    %v1049 = vld [vmem:[%s4 + $0x118] sm:$0xff]
    %v1050 = vld [vmem:[%s4 + $0x120] sm:$0xff]
    %v1051 = vld [vmem:[%s4 + $0x128] sm:$0xff]
    %v1052 = vld [vmem:[%s4 + $0x130] sm:$0xff]
    %v1053 = vld [vmem:[%s4 + $0x138] sm:$0xff]
    %v1054 = vld [vmem:[%s4 + $0x140] sm:$0xff]
    %v1055 = vld [vmem:[%s4 + $0x148] sm:$0xff]
    %v1056 = vld [vmem:[%s4 + $0x150] sm:$0xff]
    %v1057 = vld [vmem:[%s4 + $0x158] sm:$0xff]
    %v1058 = vld [vmem:[%s4 + $0x160] sm:$0xff]
    %v1059 = vld [vmem:[%s4 + $0x168] sm:$0xff]
    %v1060 = vld [vmem:[%s4 + $0x170] sm:$0xff]
    %v1061 = vld [vmem:[%s4 + $0x178] sm:$0xff]
    %v1062 = vld [vmem:[%s4 + $0x180] sm:$0xff]
    %v1063 = vld [vmem:[%s4 + $0x188] sm:$0xff]
    %v1064 = vld [vmem:[%s4 + $0x190] sm:$0xff]
    %v1065 = vld [vmem:[%s4 + $0x198] sm:$0xff]
    %v1066 = vld [vmem:[%s4 + $0x1a0] sm:$0xff]
    %v1067 = vld [vmem:[%s4 + $0x1a8] sm:$0xff]
    %v1068 = vld [vmem:[%s4 + $0x1b0] sm:$0xff]
    %v1069 = vld [vmem:[%s4 + $0x1b8] sm:$0xff]
    %v1070 = vld [vmem:[%s4 + $0x1c0] sm:$0xff]
    %v1071 = vld [vmem:[%s4 + $0x1c8] sm:$0xff]
    %v1072 = vld [vmem:[%s4 + $0x1d0] sm:$0xff]
    %v1073 = vld [vmem:[%s4 + $0x1d8] sm:$0xff]
    %v1074 = vld [vmem:[%s4 + $0x1e0] sm:$0xff]
    %v1075 = vld [vmem:[%s4 + $0x1e8] sm:$0xff]
    %v1076 = vld [vmem:[%s4 + $0x1f0] sm:$0xff]
    %v1077 = vld [vmem:[%s4 + $0x1f8] sm:$0xff]
    %v1078 = vld [vmem:[%s4 + $0x200] sm:$0xff]
    %v1079 = vld [vmem:[%s4 + $0x208] sm:$0xff]
    %v1080 = vld [vmem:[%s4 + $0x210] sm:$0xff]
    %v1081 = vld [vmem:[%s4 + $0x218] sm:$0xff]
    %v1082 = vld [vmem:[%s4 + $0x220] sm:$0xff]
    %v1083 = vld [vmem:[%s4 + $0x228] sm:$0xff]
    %v1084 = vld [vmem:[%s4 + $0x230] sm:$0xff]
    %v1085 = vld [vmem:[%s4 + $0x238] sm:$0xff]
    %v1086 = vld [vmem:[%s4 + $0x240] sm:$0xff]
    %v1087 = vld [vmem:[%s4 + $0x248] sm:$0xff]
    %v1088 = vld [vmem:[%s4 + $0x250] sm:$0xff]
    %v1089 = vld [vmem:[%s4 + $0x258] sm:$0xff]
    %v1090 = vld [vmem:[%s4 + $0x260] sm:$0xff]
    %v1091 = vld [vmem:[%s4 + $0x268] sm:$0xff]
    %v1092 = vld [vmem:[%s4 + $0x270] sm:$0xff]
    %v1093 = vld [vmem:[%s4 + $0x278] sm:$0xff]
    %v1094 = vld [vmem:[%s4 + $0x280] sm:$0xff]
    %v1095 = vld [vmem:[%s4 + $0x288] sm:$0xff]
    %v1096 = vld [vmem:[%s4 + $0x290] sm:$0xff]
    %v1097 = vld [vmem:[%s4 + $0x298] sm:$0xff]
    %v1098 = vld [vmem:[%s4 + $0x2a0] sm:$0xff]
    %v1099 = vld [vmem:[%s4 + $0x2a8] sm:$0xff]
    %v1100 = vld [vmem:[%s4 + $0x2b0] sm:$0xff]
    %v1101 = vld [vmem:[%s4 + $0x2b8] sm:$0xff]
    %v1102 = vld [vmem:[%s4 + $0x2c0] sm:$0xff]
    %v1103 = vld [vmem:[%s4 + $0x2c8] sm:$0xff]
    %v1104 = vld [vmem:[%s4 + $0x2d0] sm:$0xff]
    %v1105 = vld [vmem:[%s4 + $0x2d8] sm:$0xff]
    %v1106 = vld [vmem:[%s4 + $0x2e0] sm:$0xff]
    %v1107 = vld [vmem:[%s4 + $0x2e8] sm:$0xff]
    %v1108 = vld [vmem:[%s4 + $0x2f0] sm:$0xff]
    %v1109 = vld [vmem:[%s4 + $0x2f8] sm:$0xff]
    %v1110 = vld [vmem:[%s6] sm:$0xff]
    %v1111 = vld [vmem:[%s6 + $0x8] sm:$0xff]
    %v1112 = vld [vmem:[%s6 + $0x10] sm:$0xff]
    %v1113 = vld [vmem:[%s6 + $0x18] sm:$0xff]
    %v1114 = vld [vmem:[%s6 + $0x20] sm:$0xff]
    %v1115 = vld [vmem:[%s6 + $0x28] sm:$0xff]
    %v1116 = vld [vmem:[%s6 + $0x30] sm:$0xff]
    %v1117 = vld [vmem:[%s6 + $0x38] sm:$0xff]
    %v1118 = vld [vmem:[%s6 + $0x40] sm:$0xff]
    %v1119 = vld [vmem:[%s6 + $0x48] sm:$0xff]
    %v1120 = vld [vmem:[%s6 + $0x50] sm:$0xff]
    %v1121 = vld [vmem:[%s6 + $0x58] sm:$0xff]
    %v1122 = vld [vmem:[%s6 + $0x60] sm:$0xff]
    %v1123 = vld [vmem:[%s6 + $0x68] sm:$0xff]
    %v1124 = vld [vmem:[%s6 + $0x70] sm:$0xff]
    %v1125 = vld [vmem:[%s6 + $0x78] sm:$0xff]
    %v1126 = vld [vmem:[%s6 + $0x80] sm:$0xff]
    %v1127 = vld [vmem:[%s6 + $0x88] sm:$0xff]
    %v1128 = vld [vmem:[%s6 + $0x90] sm:$0xff]
    %v1129 = vld [vmem:[%s6 + $0x98] sm:$0xff]
    %v1130 = vld [vmem:[%s6 + $0xa0] sm:$0xff]
    %v1131 = vld [vmem:[%s6 + $0xa8] sm:$0xff]
    %v1132 = vld [vmem:[%s6 + $0xb0] sm:$0xff]
    %v1133 = vld [vmem:[%s6 + $0xb8] sm:$0xff]
    %v1134 = vld [vmem:[%s6 + $0xc0] sm:$0xff]
    %v1135 = vld [vmem:[%s6 + $0xc8] sm:$0xff]
    %v1136 = vld [vmem:[%s6 + $0xd0] sm:$0xff]
    %v1137 = vld [vmem:[%s6 + $0xd8] sm:$0xff]
    %v1138 = vld [vmem:[%s6 + $0xe0] sm:$0xff]
    %v1139 = vld [vmem:[%s6 + $0xe8] sm:$0xff]
    %v1140 = vld [vmem:[%s6 + $0xf0] sm:$0xff]
    %v1141 = vld [vmem:[%s6 + $0xf8] sm:$0xff]
    %v1142 = vld [vmem:[%s6 + $0x100] sm:$0xff]
    %v1143 = vld [vmem:[%s6 + $0x108] sm:$0xff]
    %v1144 = vld [vmem:[%s6 + $0x110] sm:$0xff]
    %v1145 = vld [vmem:[%s6 + $0x118] sm:$0xff]
    %v1146 = vld [vmem:[%s6 + $0x120] sm:$0xff]
    %v1147 = vld [vmem:[%s6 + $0x128] sm:$0xff]
    %v1148 = vld [vmem:[%s6 + $0x130] sm:$0xff]
    %v1149 = vld [vmem:[%s6 + $0x138] sm:$0xff]
    %v1150 = vld [vmem:[%s6 + $0x140] sm:$0xff]
    %v1151 = vld [vmem:[%s6 + $0x148] sm:$0xff]
    %v1152 = vld [vmem:[%s6 + $0x150] sm:$0xff]
    %v1153 = vld [vmem:[%s6 + $0x158] sm:$0xff]
    %v1154 = vld [vmem:[%s6 + $0x160] sm:$0xff]
    %v1155 = vld [vmem:[%s6 + $0x168] sm:$0xff]
    %v1156 = vld [vmem:[%s6 + $0x170] sm:$0xff]
    %v1157 = vld [vmem:[%s6 + $0x178] sm:$0xff]
    %1159 = vset.pattern.permute.xlu0 0
    %1160 = vperm.xlu0 %1159, %v1110
    %v1161 = vpop.permute.xlu0 %1160
    %1164 = vset.pattern.permute.xlu0 0
    %1165 = vperm.xlu0 %1164, %v1111
    %v1166 = vpop.permute.xlu0 %1165
    %1169 = vset.pattern.permute.xlu0 0
    %1170 = vperm.xlu0 %1169, %v1112
    %v1171 = vpop.permute.xlu0 %1170
    %1174 = vset.pattern.permute.xlu0 0
    %1175 = vperm.xlu0 %1174, %v1113
    %v1176 = vpop.permute.xlu0 %1175
    %1179 = vset.pattern.permute.xlu0 0
    %1180 = vperm.xlu0 %1179, %v1114
    %v1181 = vpop.permute.xlu0 %1180
    %1184 = vset.pattern.permute.xlu0 0
    %1185 = vperm.xlu0 %1184, %v1115
    %v1186 = vpop.permute.xlu0 %1185
    %1189 = vset.pattern.permute.xlu0 0
    %1190 = vperm.xlu0 %1189, %v1116
    %v1191 = vpop.permute.xlu0 %1190
    %1194 = vset.pattern.permute.xlu0 0
    %1195 = vperm.xlu0 %1194, %v1117
    %v1196 = vpop.permute.xlu0 %1195
    %1199 = vset.pattern.permute.xlu0 0
    %1200 = vperm.xlu0 %1199, %v1118
    %v1201 = vpop.permute.xlu0 %1200
    %1204 = vset.pattern.permute.xlu0 0
    %1205 = vperm.xlu0 %1204, %v1119
    %v1206 = vpop.permute.xlu0 %1205
    %1209 = vset.pattern.permute.xlu0 0
    %1210 = vperm.xlu0 %1209, %v1120
    %v1211 = vpop.permute.xlu0 %1210
    %1214 = vset.pattern.permute.xlu0 0
    %1215 = vperm.xlu0 %1214, %v1121
    %v1216 = vpop.permute.xlu0 %1215
    %1219 = vset.pattern.permute.xlu0 0
    %1220 = vperm.xlu0 %1219, %v1122
    %v1221 = vpop.permute.xlu0 %1220
    %1224 = vset.pattern.permute.xlu0 0
    %1225 = vperm.xlu0 %1224, %v1123
    %v1226 = vpop.permute.xlu0 %1225
    %1229 = vset.pattern.permute.xlu0 0
    %1230 = vperm.xlu0 %1229, %v1124
    %v1231 = vpop.permute.xlu0 %1230
    %1234 = vset.pattern.permute.xlu0 0
    %1235 = vperm.xlu0 %1234, %v1125
    %v1236 = vpop.permute.xlu0 %1235
    %1239 = vset.pattern.permute.xlu0 0
    %1240 = vperm.xlu0 %1239, %v1126
    %v1241 = vpop.permute.xlu0 %1240
    %1244 = vset.pattern.permute.xlu0 0
    %1245 = vperm.xlu0 %1244, %v1127
    %v1246 = vpop.permute.xlu0 %1245
    %1249 = vset.pattern.permute.xlu0 0
    %1250 = vperm.xlu0 %1249, %v1128
    %v1251 = vpop.permute.xlu0 %1250
    %1254 = vset.pattern.permute.xlu0 0
    %1255 = vperm.xlu0 %1254, %v1129
    %v1256 = vpop.permute.xlu0 %1255
    %1259 = vset.pattern.permute.xlu0 0
    %1260 = vperm.xlu0 %1259, %v1130
    %v1261 = vpop.permute.xlu0 %1260
    %1264 = vset.pattern.permute.xlu0 0
    %1265 = vperm.xlu0 %1264, %v1131
    %v1266 = vpop.permute.xlu0 %1265
    %1269 = vset.pattern.permute.xlu0 0
    %1270 = vperm.xlu0 %1269, %v1132
    %v1271 = vpop.permute.xlu0 %1270
    %1274 = vset.pattern.permute.xlu0 0
    %1275 = vperm.xlu0 %1274, %v1133
    %v1276 = vpop.permute.xlu0 %1275
    %1279 = vset.pattern.permute.xlu0 0
    %1280 = vperm.xlu0 %1279, %v1134
    %v1281 = vpop.permute.xlu0 %1280
    %1284 = vset.pattern.permute.xlu0 0
    %1285 = vperm.xlu0 %1284, %v1135
    %v1286 = vpop.permute.xlu0 %1285
    %1289 = vset.pattern.permute.xlu0 0
    %1290 = vperm.xlu0 %1289, %v1136
    %v1291 = vpop.permute.xlu0 %1290
    %1294 = vset.pattern.permute.xlu0 0
    %1295 = vperm.xlu0 %1294, %v1137
    %v1296 = vpop.permute.xlu0 %1295
    %1299 = vset.pattern.permute.xlu0 0
    %1300 = vperm.xlu0 %1299, %v1138
    %v1301 = vpop.permute.xlu0 %1300
    %1304 = vset.pattern.permute.xlu0 0
    %1305 = vperm.xlu0 %1304, %v1139
    %v1306 = vpop.permute.xlu0 %1305
    %1309 = vset.pattern.permute.xlu0 0
    %1310 = vperm.xlu0 %1309, %v1140
    %v1311 = vpop.permute.xlu0 %1310
    %1314 = vset.pattern.permute.xlu0 0
    %1315 = vperm.xlu0 %1314, %v1141
    %v1316 = vpop.permute.xlu0 %1315
    %1319 = vset.pattern.permute.xlu0 0
    %1320 = vperm.xlu0 %1319, %v1142
    %v1321 = vpop.permute.xlu0 %1320
    %1324 = vset.pattern.permute.xlu0 0
    %1325 = vperm.xlu0 %1324, %v1143
    %v1326 = vpop.permute.xlu0 %1325
    %1329 = vset.pattern.permute.xlu0 0
    %1330 = vperm.xlu0 %1329, %v1144
    %v1331 = vpop.permute.xlu0 %1330
    %1334 = vset.pattern.permute.xlu0 0
    %1335 = vperm.xlu0 %1334, %v1145
    %v1336 = vpop.permute.xlu0 %1335
    %1339 = vset.pattern.permute.xlu0 0
    %1340 = vperm.xlu0 %1339, %v1146
    %v1341 = vpop.permute.xlu0 %1340
    %1344 = vset.pattern.permute.xlu0 0
    %1345 = vperm.xlu0 %1344, %v1147
    %v1346 = vpop.permute.xlu0 %1345
    %1349 = vset.pattern.permute.xlu0 0
    %1350 = vperm.xlu0 %1349, %v1148
    %v1351 = vpop.permute.xlu0 %1350
    %1354 = vset.pattern.permute.xlu0 0
    %1355 = vperm.xlu0 %1354, %v1149
    %v1356 = vpop.permute.xlu0 %1355
    %1359 = vset.pattern.permute.xlu0 0
    %1360 = vperm.xlu0 %1359, %v1150
    %v1361 = vpop.permute.xlu0 %1360
    %1364 = vset.pattern.permute.xlu0 0
    %1365 = vperm.xlu0 %1364, %v1151
    %v1366 = vpop.permute.xlu0 %1365
    %1369 = vset.pattern.permute.xlu0 0
    %1370 = vperm.xlu0 %1369, %v1152
    %v1371 = vpop.permute.xlu0 %1370
    %1374 = vset.pattern.permute.xlu0 0
    %1375 = vperm.xlu0 %1374, %v1153
    %v1376 = vpop.permute.xlu0 %1375
    %1379 = vset.pattern.permute.xlu0 0
    %1380 = vperm.xlu0 %1379, %v1154
    %v1381 = vpop.permute.xlu0 %1380
    %1384 = vset.pattern.permute.xlu0 0
    %1385 = vperm.xlu0 %1384, %v1155
    %v1386 = vpop.permute.xlu0 %1385
    %1389 = vset.pattern.permute.xlu0 0
    %1390 = vperm.xlu0 %1389, %v1156
    %v1391 = vpop.permute.xlu0 %1390
    %1394 = vset.pattern.permute.xlu0 0
    %1395 = vperm.xlu0 %1394, %v1157
    %v1396 = vpop.permute.xlu0 %1395
    %v1494 = vunpack.c.l.b16 %v1014
    %v1495 = vunpack.c.h.b16 %v1014
    %v1496 = vunpack.c.l.b16 %v1015
    %v1497 = vunpack.c.h.b16 %v1015
    %v1498 = vunpack.c.l.b16 %v1016
    %v1499 = vunpack.c.h.b16 %v1016
    %v1500 = vunpack.c.l.b16 %v1017
    %v1501 = vunpack.c.h.b16 %v1017
    %v1502 = vunpack.c.l.b16 %v1018
    %v1503 = vunpack.c.h.b16 %v1018
    %v1504 = vunpack.c.l.b16 %v1019
    %v1505 = vunpack.c.h.b16 %v1019
    %v1506 = vunpack.c.l.b16 %v1020
    %v1507 = vunpack.c.h.b16 %v1020
    %v1508 = vunpack.c.l.b16 %v1021
    %v1509 = vunpack.c.h.b16 %v1021
    %v1510 = vunpack.c.l.b16 %v1022
    %v1511 = vunpack.c.h.b16 %v1022
    %v1512 = vunpack.c.l.b16 %v1023
    %v1513 = vunpack.c.h.b16 %v1023
    %v1514 = vunpack.c.l.b16 %v1024
    %v1515 = vunpack.c.h.b16 %v1024
    %v1516 = vunpack.c.l.b16 %v1025
    %v1517 = vunpack.c.h.b16 %v1025
    %v1518 = vunpack.c.l.b16 %v1026
    %v1519 = vunpack.c.h.b16 %v1026
    %v1520 = vunpack.c.l.b16 %v1027
    %v1521 = vunpack.c.h.b16 %v1027
    %v1522 = vunpack.c.l.b16 %v1028
    %v1523 = vunpack.c.h.b16 %v1028
    %v1524 = vunpack.c.l.b16 %v1029
    %v1525 = vunpack.c.h.b16 %v1029
    %v1526 = vunpack.c.l.b16 %v1030
    %v1527 = vunpack.c.h.b16 %v1030
    %v1528 = vunpack.c.l.b16 %v1031
    %v1529 = vunpack.c.h.b16 %v1031
    %v1530 = vunpack.c.l.b16 %v1032
    %v1531 = vunpack.c.h.b16 %v1032
    %v1532 = vunpack.c.l.b16 %v1033
    %v1533 = vunpack.c.h.b16 %v1033
    %v1534 = vunpack.c.l.b16 %v1034
    %v1535 = vunpack.c.h.b16 %v1034
    %v1536 = vunpack.c.l.b16 %v1035
    %v1537 = vunpack.c.h.b16 %v1035
    %v1538 = vunpack.c.l.b16 %v1036
    %v1539 = vunpack.c.h.b16 %v1036
    %v1540 = vunpack.c.l.b16 %v1037
    %v1541 = vunpack.c.h.b16 %v1037
    %v1542 = vunpack.c.l.b16 %v1038
    %v1543 = vunpack.c.h.b16 %v1038
    %v1544 = vunpack.c.l.b16 %v1039
    %v1545 = vunpack.c.h.b16 %v1039
    %v1546 = vunpack.c.l.b16 %v1040
    %v1547 = vunpack.c.h.b16 %v1040
    %v1548 = vunpack.c.l.b16 %v1041
    %v1549 = vunpack.c.h.b16 %v1041
    %v1550 = vunpack.c.l.b16 %v1042
    %v1551 = vunpack.c.h.b16 %v1042
    %v1552 = vunpack.c.l.b16 %v1043
    %v1553 = vunpack.c.h.b16 %v1043
    %v1554 = vunpack.c.l.b16 %v1044
    %v1555 = vunpack.c.h.b16 %v1044
    %v1556 = vunpack.c.l.b16 %v1045
    %v1557 = vunpack.c.h.b16 %v1045
    %v1558 = vunpack.c.l.b16 %v1046
    %v1559 = vunpack.c.h.b16 %v1046
    %v1560 = vunpack.c.l.b16 %v1047
    %v1561 = vunpack.c.h.b16 %v1047
    %v1562 = vunpack.c.l.b16 %v1048
    %v1563 = vunpack.c.h.b16 %v1048
    %v1564 = vunpack.c.l.b16 %v1049
    %v1565 = vunpack.c.h.b16 %v1049
    %v1566 = vunpack.c.l.b16 %v1050
    %v1567 = vunpack.c.h.b16 %v1050
    %v1568 = vunpack.c.l.b16 %v1051
    %v1569 = vunpack.c.h.b16 %v1051
    %v1570 = vunpack.c.l.b16 %v1052
    %v1571 = vunpack.c.h.b16 %v1052
    %v1572 = vunpack.c.l.b16 %v1053
    %v1573 = vunpack.c.h.b16 %v1053
    %v1574 = vunpack.c.l.b16 %v1054
    %v1575 = vunpack.c.h.b16 %v1054
    %v1576 = vunpack.c.l.b16 %v1055
    %v1577 = vunpack.c.h.b16 %v1055
    %v1578 = vunpack.c.l.b16 %v1056
    %v1579 = vunpack.c.h.b16 %v1056
    %v1580 = vunpack.c.l.b16 %v1057
    %v1581 = vunpack.c.h.b16 %v1057
    %v1582 = vunpack.c.l.b16 %v1058
    %v1583 = vunpack.c.h.b16 %v1058
    %v1584 = vunpack.c.l.b16 %v1059
    %v1585 = vunpack.c.h.b16 %v1059
    %v1586 = vunpack.c.l.b16 %v1060
    %v1587 = vunpack.c.h.b16 %v1060
    %v1588 = vunpack.c.l.b16 %v1061
    %v1589 = vunpack.c.h.b16 %v1061
    %v1590 = vunpack.c.l.b16 %v1062
    %v1591 = vunpack.c.h.b16 %v1062
    %v1592 = vunpack.c.l.b16 %v1063
    %v1593 = vunpack.c.h.b16 %v1063
    %v1594 = vunpack.c.l.b16 %v1064
    %v1595 = vunpack.c.h.b16 %v1064
    %v1596 = vunpack.c.l.b16 %v1065
    %v1597 = vunpack.c.h.b16 %v1065
    %v1598 = vunpack.c.l.b16 %v1066
    %v1599 = vunpack.c.h.b16 %v1066
    %v1600 = vunpack.c.l.b16 %v1067
    %v1601 = vunpack.c.h.b16 %v1067
    %v1602 = vunpack.c.l.b16 %v1068
    %v1603 = vunpack.c.h.b16 %v1068
    %v1604 = vunpack.c.l.b16 %v1069
    %v1605 = vunpack.c.h.b16 %v1069
    %v1606 = vunpack.c.l.b16 %v1070
    %v1607 = vunpack.c.h.b16 %v1070
    %v1608 = vunpack.c.l.b16 %v1071
    %v1609 = vunpack.c.h.b16 %v1071
    %v1610 = vunpack.c.l.b16 %v1072
    %v1611 = vunpack.c.h.b16 %v1072
    %v1612 = vunpack.c.l.b16 %v1073
    %v1613 = vunpack.c.h.b16 %v1073
    %v1614 = vunpack.c.l.b16 %v1074
    %v1615 = vunpack.c.h.b16 %v1074
    %v1616 = vunpack.c.l.b16 %v1075
    %v1617 = vunpack.c.h.b16 %v1075
    %v1618 = vunpack.c.l.b16 %v1076
    %v1619 = vunpack.c.h.b16 %v1076
    %v1620 = vunpack.c.l.b16 %v1077
    %v1621 = vunpack.c.h.b16 %v1077
    %v1622 = vunpack.c.l.b16 %v1078
    %v1623 = vunpack.c.h.b16 %v1078
    %v1624 = vunpack.c.l.b16 %v1079
    %v1625 = vunpack.c.h.b16 %v1079
    %v1626 = vunpack.c.l.b16 %v1080
    %v1627 = vunpack.c.h.b16 %v1080
    %v1628 = vunpack.c.l.b16 %v1081
    %v1629 = vunpack.c.h.b16 %v1081
    %v1630 = vunpack.c.l.b16 %v1082
    %v1631 = vunpack.c.h.b16 %v1082
    %v1632 = vunpack.c.l.b16 %v1083
    %v1633 = vunpack.c.h.b16 %v1083
    %v1634 = vunpack.c.l.b16 %v1084
    %v1635 = vunpack.c.h.b16 %v1084
    %v1636 = vunpack.c.l.b16 %v1085
    %v1637 = vunpack.c.h.b16 %v1085
    %v1638 = vunpack.c.l.b16 %v1086
    %v1639 = vunpack.c.h.b16 %v1086
    %v1640 = vunpack.c.l.b16 %v1087
    %v1641 = vunpack.c.h.b16 %v1087
    %v1642 = vunpack.c.l.b16 %v1088
    %v1643 = vunpack.c.h.b16 %v1088
    %v1644 = vunpack.c.l.b16 %v1089
    %v1645 = vunpack.c.h.b16 %v1089
    %v1646 = vunpack.c.l.b16 %v1090
    %v1647 = vunpack.c.h.b16 %v1090
    %v1648 = vunpack.c.l.b16 %v1091
    %v1649 = vunpack.c.h.b16 %v1091
    %v1650 = vunpack.c.l.b16 %v1092
    %v1651 = vunpack.c.h.b16 %v1092
    %v1652 = vunpack.c.l.b16 %v1093
    %v1653 = vunpack.c.h.b16 %v1093
    %v1654 = vunpack.c.l.b16 %v1094
    %v1655 = vunpack.c.h.b16 %v1094
    %v1656 = vunpack.c.l.b16 %v1095
    %v1657 = vunpack.c.h.b16 %v1095
    %v1658 = vunpack.c.l.b16 %v1096
    %v1659 = vunpack.c.h.b16 %v1096
    %v1660 = vunpack.c.l.b16 %v1097
    %v1661 = vunpack.c.h.b16 %v1097
    %v1662 = vunpack.c.l.b16 %v1098
    %v1663 = vunpack.c.h.b16 %v1098
    %v1664 = vunpack.c.l.b16 %v1099
    %v1665 = vunpack.c.h.b16 %v1099
    %v1666 = vunpack.c.l.b16 %v1100
    %v1667 = vunpack.c.h.b16 %v1100
    %v1668 = vunpack.c.l.b16 %v1101
    %v1669 = vunpack.c.h.b16 %v1101
    %v1670 = vunpack.c.l.b16 %v1102
    %v1671 = vunpack.c.h.b16 %v1102
    %v1672 = vunpack.c.l.b16 %v1103
    %v1673 = vunpack.c.h.b16 %v1103
    %v1674 = vunpack.c.l.b16 %v1104
    %v1675 = vunpack.c.h.b16 %v1104
    %v1676 = vunpack.c.l.b16 %v1105
    %v1677 = vunpack.c.h.b16 %v1105
    %v1678 = vunpack.c.l.b16 %v1106
    %v1679 = vunpack.c.h.b16 %v1106
    %v1680 = vunpack.c.l.b16 %v1107
    %v1681 = vunpack.c.h.b16 %v1107
    %v1682 = vunpack.c.l.b16 %v1108
    %v1683 = vunpack.c.h.b16 %v1108
    %v1684 = vunpack.c.l.b16 %v1109
    %v1685 = vunpack.c.h.b16 %v1109
    %v1686 = vpack.c.b16 %v1498, %v1494
    %v1687 = vpack.c.b16 %v1499, %v1495
    %v1688 = vpack.c.b16 %v1500, %v1496
    %v1689 = vpack.c.b16 %v1501, %v1497
    %v1690 = vpack.c.b16 %v1506, %v1502
    %v1691 = vpack.c.b16 %v1507, %v1503
    %v1692 = vpack.c.b16 %v1508, %v1504
    %v1693 = vpack.c.b16 %v1509, %v1505
    %v1694 = vpack.c.b16 %v1514, %v1510
    %v1695 = vpack.c.b16 %v1515, %v1511
    %v1696 = vpack.c.b16 %v1516, %v1512
    %v1697 = vpack.c.b16 %v1517, %v1513
    %v1698 = vpack.c.b16 %v1522, %v1518
    %v1699 = vpack.c.b16 %v1523, %v1519
    %v1700 = vpack.c.b16 %v1524, %v1520
    %v1701 = vpack.c.b16 %v1525, %v1521
    %v1702 = vpack.c.b16 %v1530, %v1526
    %v1703 = vpack.c.b16 %v1531, %v1527
    %v1704 = vpack.c.b16 %v1532, %v1528
    %v1705 = vpack.c.b16 %v1533, %v1529
    %v1706 = vpack.c.b16 %v1538, %v1534
    %v1707 = vpack.c.b16 %v1539, %v1535
    %v1708 = vpack.c.b16 %v1540, %v1536
    %v1709 = vpack.c.b16 %v1541, %v1537
    %v1710 = vpack.c.b16 %v1546, %v1542
    %v1711 = vpack.c.b16 %v1547, %v1543
    %v1712 = vpack.c.b16 %v1548, %v1544
    %v1713 = vpack.c.b16 %v1549, %v1545
    %v1714 = vpack.c.b16 %v1554, %v1550
    %v1715 = vpack.c.b16 %v1555, %v1551
    %v1716 = vpack.c.b16 %v1556, %v1552
    %v1717 = vpack.c.b16 %v1557, %v1553
    %v1718 = vpack.c.b16 %v1562, %v1558
    %v1719 = vpack.c.b16 %v1563, %v1559
    %v1720 = vpack.c.b16 %v1564, %v1560
    %v1721 = vpack.c.b16 %v1565, %v1561
    %v1722 = vpack.c.b16 %v1570, %v1566
    %v1723 = vpack.c.b16 %v1571, %v1567
    %v1724 = vpack.c.b16 %v1572, %v1568
    %v1725 = vpack.c.b16 %v1573, %v1569
    %v1726 = vpack.c.b16 %v1578, %v1574
    %v1727 = vpack.c.b16 %v1579, %v1575
    %v1728 = vpack.c.b16 %v1580, %v1576
    %v1729 = vpack.c.b16 %v1581, %v1577
    %v1730 = vpack.c.b16 %v1586, %v1582
    %v1731 = vpack.c.b16 %v1587, %v1583
    %v1732 = vpack.c.b16 %v1588, %v1584
    %v1733 = vpack.c.b16 %v1589, %v1585
    %v1734 = vpack.c.b16 %v1594, %v1590
    %v1735 = vpack.c.b16 %v1595, %v1591
    %v1736 = vpack.c.b16 %v1596, %v1592
    %v1737 = vpack.c.b16 %v1597, %v1593
    %v1738 = vpack.c.b16 %v1602, %v1598
    %v1739 = vpack.c.b16 %v1603, %v1599
    %v1740 = vpack.c.b16 %v1604, %v1600
    %v1741 = vpack.c.b16 %v1605, %v1601
    %v1742 = vpack.c.b16 %v1610, %v1606
    %v1743 = vpack.c.b16 %v1611, %v1607
    %v1744 = vpack.c.b16 %v1612, %v1608
    %v1745 = vpack.c.b16 %v1613, %v1609
    %v1746 = vpack.c.b16 %v1618, %v1614
    %v1747 = vpack.c.b16 %v1619, %v1615
    %v1748 = vpack.c.b16 %v1620, %v1616
    %v1749 = vpack.c.b16 %v1621, %v1617
    %v1750 = vpack.c.b16 %v1626, %v1622
    %v1751 = vpack.c.b16 %v1627, %v1623
    %v1752 = vpack.c.b16 %v1628, %v1624
    %v1753 = vpack.c.b16 %v1629, %v1625
    %v1754 = vpack.c.b16 %v1634, %v1630
    %v1755 = vpack.c.b16 %v1635, %v1631
    %v1756 = vpack.c.b16 %v1636, %v1632
    %v1757 = vpack.c.b16 %v1637, %v1633
    %v1758 = vpack.c.b16 %v1642, %v1638
    %v1759 = vpack.c.b16 %v1643, %v1639
    %v1760 = vpack.c.b16 %v1644, %v1640
    %v1761 = vpack.c.b16 %v1645, %v1641
    %v1762 = vpack.c.b16 %v1650, %v1646
    %v1763 = vpack.c.b16 %v1651, %v1647
    %v1764 = vpack.c.b16 %v1652, %v1648
    %v1765 = vpack.c.b16 %v1653, %v1649
    %v1766 = vpack.c.b16 %v1658, %v1654
    %v1767 = vpack.c.b16 %v1659, %v1655
    %v1768 = vpack.c.b16 %v1660, %v1656
    %v1769 = vpack.c.b16 %v1661, %v1657
    %v1770 = vpack.c.b16 %v1666, %v1662
    %v1771 = vpack.c.b16 %v1667, %v1663
    %v1772 = vpack.c.b16 %v1668, %v1664
    %v1773 = vpack.c.b16 %v1669, %v1665
    %v1774 = vpack.c.b16 %v1674, %v1670
    %v1775 = vpack.c.b16 %v1675, %v1671
    %v1776 = vpack.c.b16 %v1676, %v1672
    %v1777 = vpack.c.b16 %v1677, %v1673
    %v1778 = vpack.c.b16 %v1682, %v1678
    %v1779 = vpack.c.b16 %v1683, %v1679
    %v1780 = vpack.c.b16 %v1684, %v1680
    %v1781 = vpack.c.b16 %v1685, %v1681
    %1878 = vmatpush.bf16.msra.mxu0 %v989
    %1879 = vmatpush.bf16.msra.mxu0 %v988
    %1880 = vmatpush.bf16.msra.mxu0 %v987
    %1881 = vmatpush.bf16.msra.mxu0 %v986
    %1882 = vmatpush.bf16.msra.mxu0 %v985
    %1883 = vmatpush.bf16.msra.mxu0 %v984
    %1884 = vmatpush.bf16.msra.mxu0 %v983
    %1885 = vmatpush.bf16.msra.mxu0 %v982
    %1886 = vmatmul.bf16.gmra.mxu0 %v1686
    %v1887 = vpop.f32.mrf.mxu0
    %v1888 = vadd.f32 %v1161, %v1887
    %v1889 = vpop.f32.mrf.mxu0
    %v1890 = vadd.f32 %v1166, %v1889
    %1891 = vmatmul.bf16.gmra.mxu0 %v1690
    %v1892 = vpop.f32.mrf.mxu0
    %v1893 = vadd.f32 %v1171, %v1892
    %v1894 = vpop.f32.mrf.mxu0
    %v1895 = vadd.f32 %v1176, %v1894
    %1896 = vmatmul.bf16.gmra.mxu0 %v1694
    %v1897 = vpop.f32.mrf.mxu0
    %v1898 = vadd.f32 %v1181, %v1897
    %v1899 = vpop.f32.mrf.mxu0
    %v1900 = vadd.f32 %v1186, %v1899
    %1901 = vmatmul.bf16.gmra.mxu0 %v1698
    %v1902 = vpop.f32.mrf.mxu0
    %v1903 = vadd.f32 %v1191, %v1902
    %v1904 = vpop.f32.mrf.mxu0
    %v1905 = vadd.f32 %v1196, %v1904
    %1906 = vmatmul.bf16.gmra.mxu0 %v1702
    %v1907 = vpop.f32.mrf.mxu0
    %v1908 = vadd.f32 %v1201, %v1907
    %v1909 = vpop.f32.mrf.mxu0
    %v1910 = vadd.f32 %v1206, %v1909
    %1911 = vmatmul.bf16.gmra.mxu0 %v1706
    %v1912 = vpop.f32.mrf.mxu0
    %v1913 = vadd.f32 %v1211, %v1912
    %v1914 = vpop.f32.mrf.mxu0
    %v1915 = vadd.f32 %v1216, %v1914
    %1916 = vmatmul.bf16.gmra.mxu0 %v1710
    %v1917 = vpop.f32.mrf.mxu0
    %v1918 = vadd.f32 %v1221, %v1917
    %v1919 = vpop.f32.mrf.mxu0
    %v1920 = vadd.f32 %v1226, %v1919
    %1921 = vmatmul.bf16.gmra.mxu0 %v1714
    %v1922 = vpop.f32.mrf.mxu0
    %v1923 = vadd.f32 %v1231, %v1922
    %v1924 = vpop.f32.mrf.mxu0
    %v1925 = vadd.f32 %v1236, %v1924
    %1926 = vmatmul.bf16.gmra.mxu0 %v1718
    %v1927 = vpop.f32.mrf.mxu0
    %v1928 = vadd.f32 %v1241, %v1927
    %v1929 = vpop.f32.mrf.mxu0
    %v1930 = vadd.f32 %v1246, %v1929
    %1931 = vmatmul.bf16.gmra.mxu0 %v1722
    %v1932 = vpop.f32.mrf.mxu0
    %v1933 = vadd.f32 %v1251, %v1932
    %v1934 = vpop.f32.mrf.mxu0
    %v1935 = vadd.f32 %v1256, %v1934
    %1936 = vmatmul.bf16.gmra.mxu0 %v1726
    %v1937 = vpop.f32.mrf.mxu0
    %v1938 = vadd.f32 %v1261, %v1937
    %v1939 = vpop.f32.mrf.mxu0
    %v1940 = vadd.f32 %v1266, %v1939
    %1941 = vmatmul.bf16.gmra.mxu0 %v1730
    %v1942 = vpop.f32.mrf.mxu0
    %v1943 = vadd.f32 %v1271, %v1942
    %v1944 = vpop.f32.mrf.mxu0
    %v1945 = vadd.f32 %v1276, %v1944
    %1946 = vmatmul.bf16.gmra.mxu0 %v1734
    %v1947 = vpop.f32.mrf.mxu0
    %v1948 = vadd.f32 %v1281, %v1947
    %v1949 = vpop.f32.mrf.mxu0
    %v1950 = vadd.f32 %v1286, %v1949
    %1951 = vmatmul.bf16.gmra.mxu0 %v1738
    %v1952 = vpop.f32.mrf.mxu0
    %v1953 = vadd.f32 %v1291, %v1952
    %v1954 = vpop.f32.mrf.mxu0
    %v1955 = vadd.f32 %v1296, %v1954
    %1956 = vmatmul.bf16.gmra.mxu0 %v1742
    %v1957 = vpop.f32.mrf.mxu0
    %v1958 = vadd.f32 %v1301, %v1957
    %v1959 = vpop.f32.mrf.mxu0
    %v1960 = vadd.f32 %v1306, %v1959
    %1961 = vmatmul.bf16.gmra.mxu0 %v1746
    %v1962 = vpop.f32.mrf.mxu0
    %v1963 = vadd.f32 %v1311, %v1962
    %v1964 = vpop.f32.mrf.mxu0
    %v1965 = vadd.f32 %v1316, %v1964
    %1966 = vmatmul.bf16.gmra.mxu0 %v1750
    %v1967 = vpop.f32.mrf.mxu0
    %v1968 = vadd.f32 %v1321, %v1967
    %v1969 = vpop.f32.mrf.mxu0
    %v1970 = vadd.f32 %v1326, %v1969
    %1971 = vmatmul.bf16.gmra.mxu0 %v1754
    %v1972 = vpop.f32.mrf.mxu0
    %v1973 = vadd.f32 %v1331, %v1972
    %v1974 = vpop.f32.mrf.mxu0
    %v1975 = vadd.f32 %v1336, %v1974
    %1976 = vmatmul.bf16.gmra.mxu0 %v1758
    %v1977 = vpop.f32.mrf.mxu0
    %v1978 = vadd.f32 %v1341, %v1977
    %v1979 = vpop.f32.mrf.mxu0
    %v1980 = vadd.f32 %v1346, %v1979
    %1981 = vmatmul.bf16.gmra.mxu0 %v1762
    %v1982 = vpop.f32.mrf.mxu0
    %v1983 = vadd.f32 %v1351, %v1982
    %v1984 = vpop.f32.mrf.mxu0
    %v1985 = vadd.f32 %v1356, %v1984
    %1986 = vmatmul.bf16.gmra.mxu0 %v1766
    %v1987 = vpop.f32.mrf.mxu0
    %v1988 = vadd.f32 %v1361, %v1987
    %v1989 = vpop.f32.mrf.mxu0
    %v1990 = vadd.f32 %v1366, %v1989
    %1991 = vmatmul.bf16.gmra.mxu0 %v1770
    %v1992 = vpop.f32.mrf.mxu0
    %v1993 = vadd.f32 %v1371, %v1992
    %v1994 = vpop.f32.mrf.mxu0
    %v1995 = vadd.f32 %v1376, %v1994
    %1996 = vmatmul.bf16.gmra.mxu0 %v1774
    %v1997 = vpop.f32.mrf.mxu0
    %v1998 = vadd.f32 %v1381, %v1997
    %v1999 = vpop.f32.mrf.mxu0
    %v2000 = vadd.f32 %v1386, %v1999
    %2001 = vmatmul.bf16.gmra.mxu0 %v1778
    %v2002 = vpop.f32.mrf.mxu0
    %v2003 = vadd.f32 %v1391, %v2002
    %v2004 = vpop.f32.mrf.mxu0
    %v2005 = vadd.f32 %v1396, %v2004
    %2006 = vdwg.mxu0
    %2007 = vmatpush.bf16.msra.mxu0 %v997
    %2008 = vmatpush.bf16.msra.mxu0 %v996
    %2009 = vmatpush.bf16.msra.mxu0 %v995
    %2010 = vmatpush.bf16.msra.mxu0 %v994
    %2011 = vmatpush.bf16.msra.mxu0 %v993
    %2012 = vmatpush.bf16.msra.mxu0 %v992
    %2013 = vmatpush.bf16.msra.mxu0 %v991
    %2014 = vmatpush.bf16.msra.mxu0 %v990
    %2015 = vmatmul.bf16.gmra.mxu0 %v1687
    %v2016 = vpop.f32.mrf.mxu0
    %v2017 = vadd.f32 %v1888, %v2016
    %v2018 = vpop.f32.mrf.mxu0
    %v2019 = vadd.f32 %v1890, %v2018
    %2020 = vmatmul.bf16.gmra.mxu0 %v1691
    %v2021 = vpop.f32.mrf.mxu0
    %v2022 = vadd.f32 %v1893, %v2021
    %v2023 = vpop.f32.mrf.mxu0
    %v2024 = vadd.f32 %v1895, %v2023
    %2025 = vmatmul.bf16.gmra.mxu0 %v1695
    %v2026 = vpop.f32.mrf.mxu0
    %v2027 = vadd.f32 %v1898, %v2026
    %v2028 = vpop.f32.mrf.mxu0
    %v2029 = vadd.f32 %v1900, %v2028
    %2030 = vmatmul.bf16.gmra.mxu0 %v1699
    %v2031 = vpop.f32.mrf.mxu0
    %v2032 = vadd.f32 %v1903, %v2031
    %v2033 = vpop.f32.mrf.mxu0
    %v2034 = vadd.f32 %v1905, %v2033
    %2035 = vmatmul.bf16.gmra.mxu0 %v1703
    %v2036 = vpop.f32.mrf.mxu0
    %v2037 = vadd.f32 %v1908, %v2036
    %v2038 = vpop.f32.mrf.mxu0
    %v2039 = vadd.f32 %v1910, %v2038
    %2040 = vmatmul.bf16.gmra.mxu0 %v1707
    %v2041 = vpop.f32.mrf.mxu0
    %v2042 = vadd.f32 %v1913, %v2041
    %v2043 = vpop.f32.mrf.mxu0
    %v2044 = vadd.f32 %v1915, %v2043
    %2045 = vmatmul.bf16.gmra.mxu0 %v1711
    %v2046 = vpop.f32.mrf.mxu0
    %v2047 = vadd.f32 %v1918, %v2046
    %v2048 = vpop.f32.mrf.mxu0
    %v2049 = vadd.f32 %v1920, %v2048
    %2050 = vmatmul.bf16.gmra.mxu0 %v1715
    %v2051 = vpop.f32.mrf.mxu0
    %v2052 = vadd.f32 %v1923, %v2051
    %v2053 = vpop.f32.mrf.mxu0
    %v2054 = vadd.f32 %v1925, %v2053
    %2055 = vmatmul.bf16.gmra.mxu0 %v1719
    %v2056 = vpop.f32.mrf.mxu0
    %v2057 = vadd.f32 %v1928, %v2056
    %v2058 = vpop.f32.mrf.mxu0
    %v2059 = vadd.f32 %v1930, %v2058
    %2060 = vmatmul.bf16.gmra.mxu0 %v1723
    %v2061 = vpop.f32.mrf.mxu0
    %v2062 = vadd.f32 %v1933, %v2061
    %v2063 = vpop.f32.mrf.mxu0
    %v2064 = vadd.f32 %v1935, %v2063
    %2065 = vmatmul.bf16.gmra.mxu0 %v1727
    %v2066 = vpop.f32.mrf.mxu0
    %v2067 = vadd.f32 %v1938, %v2066
    %v2068 = vpop.f32.mrf.mxu0
    %v2069 = vadd.f32 %v1940, %v2068
    %2070 = vmatmul.bf16.gmra.mxu0 %v1731
    %v2071 = vpop.f32.mrf.mxu0
    %v2072 = vadd.f32 %v1943, %v2071
    %v2073 = vpop.f32.mrf.mxu0
    %v2074 = vadd.f32 %v1945, %v2073
    %2075 = vmatmul.bf16.gmra.mxu0 %v1735
    %v2076 = vpop.f32.mrf.mxu0
    %v2077 = vadd.f32 %v1948, %v2076
    %v2078 = vpop.f32.mrf.mxu0
    %v2079 = vadd.f32 %v1950, %v2078
    %2080 = vmatmul.bf16.gmra.mxu0 %v1739
    %v2081 = vpop.f32.mrf.mxu0
    %v2082 = vadd.f32 %v1953, %v2081
    %v2083 = vpop.f32.mrf.mxu0
    %v2084 = vadd.f32 %v1955, %v2083
    %2085 = vmatmul.bf16.gmra.mxu0 %v1743
    %v2086 = vpop.f32.mrf.mxu0
    %v2087 = vadd.f32 %v1958, %v2086
    %v2088 = vpop.f32.mrf.mxu0
    %v2089 = vadd.f32 %v1960, %v2088
    %2090 = vmatmul.bf16.gmra.mxu0 %v1747
    %v2091 = vpop.f32.mrf.mxu0
    %v2092 = vadd.f32 %v1963, %v2091
    %v2093 = vpop.f32.mrf.mxu0
    %v2094 = vadd.f32 %v1965, %v2093
    %2095 = vmatmul.bf16.gmra.mxu0 %v1751
    %v2096 = vpop.f32.mrf.mxu0
    %v2097 = vadd.f32 %v1968, %v2096
    %v2098 = vpop.f32.mrf.mxu0
    %v2099 = vadd.f32 %v1970, %v2098
    %2100 = vmatmul.bf16.gmra.mxu0 %v1755
    %v2101 = vpop.f32.mrf.mxu0
    %v2102 = vadd.f32 %v1973, %v2101
    %v2103 = vpop.f32.mrf.mxu0
    %v2104 = vadd.f32 %v1975, %v2103
    %2105 = vmatmul.bf16.gmra.mxu0 %v1759
    %v2106 = vpop.f32.mrf.mxu0
    %v2107 = vadd.f32 %v1978, %v2106
    %v2108 = vpop.f32.mrf.mxu0
    %v2109 = vadd.f32 %v1980, %v2108
    %2110 = vmatmul.bf16.gmra.mxu0 %v1763
    %v2111 = vpop.f32.mrf.mxu0
    %v2112 = vadd.f32 %v1983, %v2111
    %v2113 = vpop.f32.mrf.mxu0
    %v2114 = vadd.f32 %v1985, %v2113
    %2115 = vmatmul.bf16.gmra.mxu0 %v1767
    %v2116 = vpop.f32.mrf.mxu0
    %v2117 = vadd.f32 %v1988, %v2116
    %v2118 = vpop.f32.mrf.mxu0
    %v2119 = vadd.f32 %v1990, %v2118
    %2120 = vmatmul.bf16.gmra.mxu0 %v1771
    %v2121 = vpop.f32.mrf.mxu0
    %v2122 = vadd.f32 %v1993, %v2121
    %v2123 = vpop.f32.mrf.mxu0
    %v2124 = vadd.f32 %v1995, %v2123
    %2125 = vmatmul.bf16.gmra.mxu0 %v1775
    %v2126 = vpop.f32.mrf.mxu0
    %v2127 = vadd.f32 %v1998, %v2126
    %v2128 = vpop.f32.mrf.mxu0
    %v2129 = vadd.f32 %v2000, %v2128
    %2130 = vmatmul.bf16.gmra.mxu0 %v1779
    %v2131 = vpop.f32.mrf.mxu0
    %v2132 = vadd.f32 %v2003, %v2131
    %v2133 = vpop.f32.mrf.mxu0
    %v2134 = vadd.f32 %v2005, %v2133
    %2135 = vdwg.mxu0
    %2136 = vmatpush.bf16.msra.mxu0 %v1005
    %2137 = vmatpush.bf16.msra.mxu0 %v1004
    %2138 = vmatpush.bf16.msra.mxu0 %v1003
    %2139 = vmatpush.bf16.msra.mxu0 %v1002
    %2140 = vmatpush.bf16.msra.mxu0 %v1001
    %2141 = vmatpush.bf16.msra.mxu0 %v1000
    %2142 = vmatpush.bf16.msra.mxu0 %v999
    %2143 = vmatpush.bf16.msra.mxu0 %v998
    %2144 = vmatmul.bf16.gmra.mxu0 %v1688
    %v2145 = vpop.f32.mrf.mxu0
    %v2146 = vadd.f32 %v2017, %v2145
    %v2147 = vpop.f32.mrf.mxu0
    %v2148 = vadd.f32 %v2019, %v2147
    %2149 = vmatmul.bf16.gmra.mxu0 %v1692
    %v2150 = vpop.f32.mrf.mxu0
    %v2151 = vadd.f32 %v2022, %v2150
    %v2152 = vpop.f32.mrf.mxu0
    %v2153 = vadd.f32 %v2024, %v2152
    %2154 = vmatmul.bf16.gmra.mxu0 %v1696
    %v2155 = vpop.f32.mrf.mxu0
    %v2156 = vadd.f32 %v2027, %v2155
    %v2157 = vpop.f32.mrf.mxu0
    %v2158 = vadd.f32 %v2029, %v2157
    %2159 = vmatmul.bf16.gmra.mxu0 %v1700
    %v2160 = vpop.f32.mrf.mxu0
    %v2161 = vadd.f32 %v2032, %v2160
    %v2162 = vpop.f32.mrf.mxu0
    %v2163 = vadd.f32 %v2034, %v2162
    %2164 = vmatmul.bf16.gmra.mxu0 %v1704
    %v2165 = vpop.f32.mrf.mxu0
    %v2166 = vadd.f32 %v2037, %v2165
    %v2167 = vpop.f32.mrf.mxu0
    %v2168 = vadd.f32 %v2039, %v2167
    %2169 = vmatmul.bf16.gmra.mxu0 %v1708
    %v2170 = vpop.f32.mrf.mxu0
    %v2171 = vadd.f32 %v2042, %v2170
    %v2172 = vpop.f32.mrf.mxu0
    %v2173 = vadd.f32 %v2044, %v2172
    %2174 = vmatmul.bf16.gmra.mxu0 %v1712
    %v2175 = vpop.f32.mrf.mxu0
    %v2176 = vadd.f32 %v2047, %v2175
    %v2177 = vpop.f32.mrf.mxu0
    %v2178 = vadd.f32 %v2049, %v2177
    %2179 = vmatmul.bf16.gmra.mxu0 %v1716
    %v2180 = vpop.f32.mrf.mxu0
    %v2181 = vadd.f32 %v2052, %v2180
    %v2182 = vpop.f32.mrf.mxu0
    %v2183 = vadd.f32 %v2054, %v2182
    %2184 = vmatmul.bf16.gmra.mxu0 %v1720
    %v2185 = vpop.f32.mrf.mxu0
    %v2186 = vadd.f32 %v2057, %v2185
    %v2187 = vpop.f32.mrf.mxu0
    %v2188 = vadd.f32 %v2059, %v2187
    %2189 = vmatmul.bf16.gmra.mxu0 %v1724
    %v2190 = vpop.f32.mrf.mxu0
    %v2191 = vadd.f32 %v2062, %v2190
    %v2192 = vpop.f32.mrf.mxu0
    %v2193 = vadd.f32 %v2064, %v2192
    %2194 = vmatmul.bf16.gmra.mxu0 %v1728
    %v2195 = vpop.f32.mrf.mxu0
    %v2196 = vadd.f32 %v2067, %v2195
    %v2197 = vpop.f32.mrf.mxu0
    %v2198 = vadd.f32 %v2069, %v2197
    %2199 = vmatmul.bf16.gmra.mxu0 %v1732
    %v2200 = vpop.f32.mrf.mxu0
    %v2201 = vadd.f32 %v2072, %v2200
    %v2202 = vpop.f32.mrf.mxu0
    %v2203 = vadd.f32 %v2074, %v2202
    %2204 = vmatmul.bf16.gmra.mxu0 %v1736
    %v2205 = vpop.f32.mrf.mxu0
    %v2206 = vadd.f32 %v2077, %v2205
    %v2207 = vpop.f32.mrf.mxu0
    %v2208 = vadd.f32 %v2079, %v2207
    %2209 = vmatmul.bf16.gmra.mxu0 %v1740
    %v2210 = vpop.f32.mrf.mxu0
    %v2211 = vadd.f32 %v2082, %v2210
    %v2212 = vpop.f32.mrf.mxu0
    %v2213 = vadd.f32 %v2084, %v2212
    %2214 = vmatmul.bf16.gmra.mxu0 %v1744
    %v2215 = vpop.f32.mrf.mxu0
    %v2216 = vadd.f32 %v2087, %v2215
    %v2217 = vpop.f32.mrf.mxu0
    %v2218 = vadd.f32 %v2089, %v2217
    %2219 = vmatmul.bf16.gmra.mxu0 %v1748
    %v2220 = vpop.f32.mrf.mxu0
    %v2221 = vadd.f32 %v2092, %v2220
    %v2222 = vpop.f32.mrf.mxu0
    %v2223 = vadd.f32 %v2094, %v2222
    %2224 = vmatmul.bf16.gmra.mxu0 %v1752
    %v2225 = vpop.f32.mrf.mxu0
    %v2226 = vadd.f32 %v2097, %v2225
    %v2227 = vpop.f32.mrf.mxu0
    %v2228 = vadd.f32 %v2099, %v2227
    %2229 = vmatmul.bf16.gmra.mxu0 %v1756
    %v2230 = vpop.f32.mrf.mxu0
    %v2231 = vadd.f32 %v2102, %v2230
    %v2232 = vpop.f32.mrf.mxu0
    %v2233 = vadd.f32 %v2104, %v2232
    %2234 = vmatmul.bf16.gmra.mxu0 %v1760
    %v2235 = vpop.f32.mrf.mxu0
    %v2236 = vadd.f32 %v2107, %v2235
    %v2237 = vpop.f32.mrf.mxu0
    %v2238 = vadd.f32 %v2109, %v2237
    %2239 = vmatmul.bf16.gmra.mxu0 %v1764
    %v2240 = vpop.f32.mrf.mxu0
    %v2241 = vadd.f32 %v2112, %v2240
    %v2242 = vpop.f32.mrf.mxu0
    %v2243 = vadd.f32 %v2114, %v2242
    %2244 = vmatmul.bf16.gmra.mxu0 %v1768
    %v2245 = vpop.f32.mrf.mxu0
    %v2246 = vadd.f32 %v2117, %v2245
    %v2247 = vpop.f32.mrf.mxu0
    %v2248 = vadd.f32 %v2119, %v2247
    %2249 = vmatmul.bf16.gmra.mxu0 %v1772
    %v2250 = vpop.f32.mrf.mxu0
    %v2251 = vadd.f32 %v2122, %v2250
    %v2252 = vpop.f32.mrf.mxu0
    %v2253 = vadd.f32 %v2124, %v2252
    %2254 = vmatmul.bf16.gmra.mxu0 %v1776
    %v2255 = vpop.f32.mrf.mxu0
    %v2256 = vadd.f32 %v2127, %v2255
    %v2257 = vpop.f32.mrf.mxu0
    %v2258 = vadd.f32 %v2129, %v2257
    %2259 = vmatmul.bf16.gmra.mxu0 %v1780
    %v2260 = vpop.f32.mrf.mxu0
    %v2261 = vadd.f32 %v2132, %v2260
    %v2262 = vpop.f32.mrf.mxu0
    %v2263 = vadd.f32 %v2134, %v2262
    %2264 = vdwg.mxu0
    %2265 = vmatpush.bf16.msra.mxu0 %v1013
    %2266 = vmatpush.bf16.msra.mxu0 %v1012
    %2267 = vmatpush.bf16.msra.mxu0 %v1011
    %2268 = vmatpush.bf16.msra.mxu0 %v1010
    %2269 = vmatpush.bf16.msra.mxu0 %v1009
    %2270 = vmatpush.bf16.msra.mxu0 %v1008
    %2271 = vmatpush.bf16.msra.mxu0 %v1007
    %2272 = vmatpush.bf16.msra.mxu0 %v1006
    %2273 = vmatmul.bf16.gmra.mxu0 %v1689
    %v2274 = vpop.f32.mrf.mxu0
    %v2275 = vadd.f32 %v2146, %v2274
    %v2276 = vpop.f32.mrf.mxu0
    %v2277 = vadd.f32 %v2148, %v2276
    %2278 = vmatmul.bf16.gmra.mxu0 %v1693
    %v2279 = vpop.f32.mrf.mxu0
    %v2280 = vadd.f32 %v2151, %v2279
    %v2281 = vpop.f32.mrf.mxu0
    %v2282 = vadd.f32 %v2153, %v2281
    %2283 = vmatmul.bf16.gmra.mxu0 %v1697
    %v2284 = vpop.f32.mrf.mxu0
    %v2285 = vadd.f32 %v2156, %v2284
    %v2286 = vpop.f32.mrf.mxu0
    %v2287 = vadd.f32 %v2158, %v2286
    %2288 = vmatmul.bf16.gmra.mxu0 %v1701
    %v2289 = vpop.f32.mrf.mxu0
    %v2290 = vadd.f32 %v2161, %v2289
    %v2291 = vpop.f32.mrf.mxu0
    %v2292 = vadd.f32 %v2163, %v2291
    %2293 = vmatmul.bf16.gmra.mxu0 %v1705
    %v2294 = vpop.f32.mrf.mxu0
    %v2295 = vadd.f32 %v2166, %v2294
    %v2296 = vpop.f32.mrf.mxu0
    %v2297 = vadd.f32 %v2168, %v2296
    %2298 = vmatmul.bf16.gmra.mxu0 %v1709
    %v2299 = vpop.f32.mrf.mxu0
    %v2300 = vadd.f32 %v2171, %v2299
    %v2301 = vpop.f32.mrf.mxu0
    %v2302 = vadd.f32 %v2173, %v2301
    %2303 = vmatmul.bf16.gmra.mxu0 %v1713
    %v2304 = vpop.f32.mrf.mxu0
    %v2305 = vadd.f32 %v2176, %v2304
    %v2306 = vpop.f32.mrf.mxu0
    %v2307 = vadd.f32 %v2178, %v2306
    %2308 = vmatmul.bf16.gmra.mxu0 %v1717
    %v2309 = vpop.f32.mrf.mxu0
    %v2310 = vadd.f32 %v2181, %v2309
    %v2311 = vpop.f32.mrf.mxu0
    %v2312 = vadd.f32 %v2183, %v2311
    %2313 = vmatmul.bf16.gmra.mxu0 %v1721
    %v2314 = vpop.f32.mrf.mxu0
    %v2315 = vadd.f32 %v2186, %v2314
    %v2316 = vpop.f32.mrf.mxu0
    %v2317 = vadd.f32 %v2188, %v2316
    %2318 = vmatmul.bf16.gmra.mxu0 %v1725
    %v2319 = vpop.f32.mrf.mxu0
    %v2320 = vadd.f32 %v2191, %v2319
    %v2321 = vpop.f32.mrf.mxu0
    %v2322 = vadd.f32 %v2193, %v2321
    %2323 = vmatmul.bf16.gmra.mxu0 %v1729
    %v2324 = vpop.f32.mrf.mxu0
    %v2325 = vadd.f32 %v2196, %v2324
    %v2326 = vpop.f32.mrf.mxu0
    %v2327 = vadd.f32 %v2198, %v2326
    %2328 = vmatmul.bf16.gmra.mxu0 %v1733
    %v2329 = vpop.f32.mrf.mxu0
    %v2330 = vadd.f32 %v2201, %v2329
    %v2331 = vpop.f32.mrf.mxu0
    %v2332 = vadd.f32 %v2203, %v2331
    %2333 = vmatmul.bf16.gmra.mxu0 %v1737
    %v2334 = vpop.f32.mrf.mxu0
    %v2335 = vadd.f32 %v2206, %v2334
    %v2336 = vpop.f32.mrf.mxu0
    %v2337 = vadd.f32 %v2208, %v2336
    %2338 = vmatmul.bf16.gmra.mxu0 %v1741
    %v2339 = vpop.f32.mrf.mxu0
    %v2340 = vadd.f32 %v2211, %v2339
    %v2341 = vpop.f32.mrf.mxu0
    %v2342 = vadd.f32 %v2213, %v2341
    %2343 = vmatmul.bf16.gmra.mxu0 %v1745
    %v2344 = vpop.f32.mrf.mxu0
    %v2345 = vadd.f32 %v2216, %v2344
    %v2346 = vpop.f32.mrf.mxu0
    %v2347 = vadd.f32 %v2218, %v2346
    %2348 = vmatmul.bf16.gmra.mxu0 %v1749
    %v2349 = vpop.f32.mrf.mxu0
    %v2350 = vadd.f32 %v2221, %v2349
    %v2351 = vpop.f32.mrf.mxu0
    %v2352 = vadd.f32 %v2223, %v2351
    %2353 = vmatmul.bf16.gmra.mxu0 %v1753
    %v2354 = vpop.f32.mrf.mxu0
    %v2355 = vadd.f32 %v2226, %v2354
    %v2356 = vpop.f32.mrf.mxu0
    %v2357 = vadd.f32 %v2228, %v2356
    %2358 = vmatmul.bf16.gmra.mxu0 %v1757
    %v2359 = vpop.f32.mrf.mxu0
    %v2360 = vadd.f32 %v2231, %v2359
    %v2361 = vpop.f32.mrf.mxu0
    %v2362 = vadd.f32 %v2233, %v2361
    %2363 = vmatmul.bf16.gmra.mxu0 %v1761
    %v2364 = vpop.f32.mrf.mxu0
    %v2365 = vadd.f32 %v2236, %v2364
    %v2366 = vpop.f32.mrf.mxu0
    %v2367 = vadd.f32 %v2238, %v2366
    %2368 = vmatmul.bf16.gmra.mxu0 %v1765
    %v2369 = vpop.f32.mrf.mxu0
    %v2370 = vadd.f32 %v2241, %v2369
    %v2371 = vpop.f32.mrf.mxu0
    %v2372 = vadd.f32 %v2243, %v2371
    %2373 = vmatmul.bf16.gmra.mxu0 %v1769
    %v2374 = vpop.f32.mrf.mxu0
    %v2375 = vadd.f32 %v2246, %v2374
    %v2376 = vpop.f32.mrf.mxu0
    %v2377 = vadd.f32 %v2248, %v2376
    %2378 = vmatmul.bf16.gmra.mxu0 %v1773
    %v2379 = vpop.f32.mrf.mxu0
    %v2380 = vadd.f32 %v2251, %v2379
    %v2381 = vpop.f32.mrf.mxu0
    %v2382 = vadd.f32 %v2253, %v2381
    %2383 = vmatmul.bf16.gmra.mxu0 %v1777
    %v2384 = vpop.f32.mrf.mxu0
    %v2385 = vadd.f32 %v2256, %v2384
    %v2386 = vpop.f32.mrf.mxu0
    %v2387 = vadd.f32 %v2258, %v2386
    %2388 = vmatmul.bf16.gmra.mxu0 %v1781
    %v2389 = vpop.f32.mrf.mxu0
    %v2390 = vadd.f32 %v2261, %v2389
    %v2391 = vpop.f32.mrf.mxu0
    %v2392 = vadd.f32 %v2263, %v2391
    %2393 = vdwg.mxu0
    %v2394 = vld [vmem:[%s1] sm:$0xf]
    %v2395 = vld [vmem:[%s5] sm:$0xff]
    %v2396 = vld [vmem:[%s5 + $0x8] sm:$0xff]
    %v2397 = vld [vmem:[%s5 + $0x10] sm:$0xff]
    %v2398 = vld [vmem:[%s5 + $0x18] sm:$0xff]
    %v2399 = vld [vmem:[%s5 + $0x20] sm:$0xff]
    %v2400 = vld [vmem:[%s5 + $0x28] sm:$0xff]
    %v2401 = vld [vmem:[%s5 + $0x30] sm:$0xff]
    %v2402 = vld [vmem:[%s5 + $0x38] sm:$0xff]
    %v2403 = vld [vmem:[%s5 + $0x40] sm:$0xff]
    %v2404 = vld [vmem:[%s5 + $0x48] sm:$0xff]
    %v2405 = vld [vmem:[%s5 + $0x50] sm:$0xff]
    %v2406 = vld [vmem:[%s5 + $0x58] sm:$0xff]
    %v2407 = vld [vmem:[%s5 + $0x60] sm:$0xff]
    %v2408 = vld [vmem:[%s5 + $0x68] sm:$0xff]
    %v2409 = vld [vmem:[%s5 + $0x70] sm:$0xff]
    %v2410 = vld [vmem:[%s5 + $0x78] sm:$0xff]
    %v2411 = vld [vmem:[%s5 + $0x80] sm:$0xff]
    %v2412 = vld [vmem:[%s5 + $0x88] sm:$0xff]
    %v2413 = vld [vmem:[%s5 + $0x90] sm:$0xff]
    %v2414 = vld [vmem:[%s5 + $0x98] sm:$0xff]
    %v2415 = vld [vmem:[%s5 + $0xa0] sm:$0xff]
    %v2416 = vld [vmem:[%s5 + $0xa8] sm:$0xff]
    %v2417 = vld [vmem:[%s5 + $0xb0] sm:$0xff]
    %v2418 = vld [vmem:[%s5 + $0xb8] sm:$0xff]
    %v2419 = vld [vmem:[%s5 + $0xc0] sm:$0xff]
    %v2420 = vld [vmem:[%s5 + $0xc8] sm:$0xff]
    %v2421 = vld [vmem:[%s5 + $0xd0] sm:$0xff]
    %v2422 = vld [vmem:[%s5 + $0xd8] sm:$0xff]
    %v2423 = vld [vmem:[%s5 + $0xe0] sm:$0xff]
    %v2424 = vld [vmem:[%s5 + $0xe8] sm:$0xff]
    %v2425 = vld [vmem:[%s5 + $0xf0] sm:$0xff]
    %v2426 = vld [vmem:[%s5 + $0xf8] sm:$0xff]
    %v2427 = vld [vmem:[%s5 + $0x100] sm:$0xff]
    %v2428 = vld [vmem:[%s5 + $0x108] sm:$0xff]
    %v2429 = vld [vmem:[%s5 + $0x110] sm:$0xff]
    %v2430 = vld [vmem:[%s5 + $0x118] sm:$0xff]
    %v2431 = vld [vmem:[%s5 + $0x120] sm:$0xff]
    %v2432 = vld [vmem:[%s5 + $0x128] sm:$0xff]
    %v2433 = vld [vmem:[%s5 + $0x130] sm:$0xff]
    %v2434 = vld [vmem:[%s5 + $0x138] sm:$0xff]
    %v2435 = vld [vmem:[%s5 + $0x140] sm:$0xff]
    %v2436 = vld [vmem:[%s5 + $0x148] sm:$0xff]
    %v2437 = vld [vmem:[%s5 + $0x150] sm:$0xff]
    %v2438 = vld [vmem:[%s5 + $0x158] sm:$0xff]
    %v2439 = vld [vmem:[%s5 + $0x160] sm:$0xff]
    %v2440 = vld [vmem:[%s5 + $0x168] sm:$0xff]
    %v2441 = vld [vmem:[%s5 + $0x170] sm:$0xff]
    %v2442 = vld [vmem:[%s5 + $0x178] sm:$0xff]
    %2444 = vset.pattern.permute.xlu0 0
    %2445 = vperm.xlu0 %2444, %v2395
    %v2446 = vpop.permute.xlu0 %2445
    %2449 = vset.pattern.permute.xlu0 0
    %2450 = vperm.xlu0 %2449, %v2396
    %v2451 = vpop.permute.xlu0 %2450
    %2454 = vset.pattern.permute.xlu0 0
    %2455 = vperm.xlu0 %2454, %v2397
    %v2456 = vpop.permute.xlu0 %2455
    %2459 = vset.pattern.permute.xlu0 0
    %2460 = vperm.xlu0 %2459, %v2398
    %v2461 = vpop.permute.xlu0 %2460
    %2464 = vset.pattern.permute.xlu0 0
    %2465 = vperm.xlu0 %2464, %v2399
    %v2466 = vpop.permute.xlu0 %2465
    %2469 = vset.pattern.permute.xlu0 0
    %2470 = vperm.xlu0 %2469, %v2400
    %v2471 = vpop.permute.xlu0 %2470
    %2474 = vset.pattern.permute.xlu0 0
    %2475 = vperm.xlu0 %2474, %v2401
    %v2476 = vpop.permute.xlu0 %2475
    %2479 = vset.pattern.permute.xlu0 0
    %2480 = vperm.xlu0 %2479, %v2402
    %v2481 = vpop.permute.xlu0 %2480
    %2484 = vset.pattern.permute.xlu0 0
    %2485 = vperm.xlu0 %2484, %v2403
    %v2486 = vpop.permute.xlu0 %2485
    %2489 = vset.pattern.permute.xlu0 0
    %2490 = vperm.xlu0 %2489, %v2404
    %v2491 = vpop.permute.xlu0 %2490
    %2494 = vset.pattern.permute.xlu0 0
    %2495 = vperm.xlu0 %2494, %v2405
    %v2496 = vpop.permute.xlu0 %2495
    %2499 = vset.pattern.permute.xlu0 0
    %2500 = vperm.xlu0 %2499, %v2406
    %v2501 = vpop.permute.xlu0 %2500
    %2504 = vset.pattern.permute.xlu0 0
    %2505 = vperm.xlu0 %2504, %v2407
    %v2506 = vpop.permute.xlu0 %2505
    %2509 = vset.pattern.permute.xlu0 0
    %2510 = vperm.xlu0 %2509, %v2408
    %v2511 = vpop.permute.xlu0 %2510
    %2514 = vset.pattern.permute.xlu0 0
    %2515 = vperm.xlu0 %2514, %v2409
    %v2516 = vpop.permute.xlu0 %2515
    %2519 = vset.pattern.permute.xlu0 0
    %2520 = vperm.xlu0 %2519, %v2410
    %v2521 = vpop.permute.xlu0 %2520
    %2524 = vset.pattern.permute.xlu0 0
    %2525 = vperm.xlu0 %2524, %v2411
    %v2526 = vpop.permute.xlu0 %2525
    %2529 = vset.pattern.permute.xlu0 0
    %2530 = vperm.xlu0 %2529, %v2412
    %v2531 = vpop.permute.xlu0 %2530
    %2534 = vset.pattern.permute.xlu0 0
    %2535 = vperm.xlu0 %2534, %v2413
    %v2536 = vpop.permute.xlu0 %2535
    %2539 = vset.pattern.permute.xlu0 0
    %2540 = vperm.xlu0 %2539, %v2414
    %v2541 = vpop.permute.xlu0 %2540
    %2544 = vset.pattern.permute.xlu0 0
    %2545 = vperm.xlu0 %2544, %v2415
    %v2546 = vpop.permute.xlu0 %2545
    %2549 = vset.pattern.permute.xlu0 0
    %2550 = vperm.xlu0 %2549, %v2416
    %v2551 = vpop.permute.xlu0 %2550
    %2554 = vset.pattern.permute.xlu0 0
    %2555 = vperm.xlu0 %2554, %v2417
    %v2556 = vpop.permute.xlu0 %2555
    %2559 = vset.pattern.permute.xlu0 0
    %2560 = vperm.xlu0 %2559, %v2418
    %v2561 = vpop.permute.xlu0 %2560
    %2564 = vset.pattern.permute.xlu0 0
    %2565 = vperm.xlu0 %2564, %v2419
    %v2566 = vpop.permute.xlu0 %2565
    %2569 = vset.pattern.permute.xlu0 0
    %2570 = vperm.xlu0 %2569, %v2420
    %v2571 = vpop.permute.xlu0 %2570
    %2574 = vset.pattern.permute.xlu0 0
    %2575 = vperm.xlu0 %2574, %v2421
    %v2576 = vpop.permute.xlu0 %2575
    %2579 = vset.pattern.permute.xlu0 0
    %2580 = vperm.xlu0 %2579, %v2422
    %v2581 = vpop.permute.xlu0 %2580
    %2584 = vset.pattern.permute.xlu0 0
    %2585 = vperm.xlu0 %2584, %v2423
    %v2586 = vpop.permute.xlu0 %2585
    %2589 = vset.pattern.permute.xlu0 0
    %2590 = vperm.xlu0 %2589, %v2424
    %v2591 = vpop.permute.xlu0 %2590
    %2594 = vset.pattern.permute.xlu0 0
    %2595 = vperm.xlu0 %2594, %v2425
    %v2596 = vpop.permute.xlu0 %2595
    %2599 = vset.pattern.permute.xlu0 0
    %2600 = vperm.xlu0 %2599, %v2426
    %v2601 = vpop.permute.xlu0 %2600
    %2604 = vset.pattern.permute.xlu0 0
    %2605 = vperm.xlu0 %2604, %v2427
    %v2606 = vpop.permute.xlu0 %2605
    %2609 = vset.pattern.permute.xlu0 0
    %2610 = vperm.xlu0 %2609, %v2428
    %v2611 = vpop.permute.xlu0 %2610
    %2614 = vset.pattern.permute.xlu0 0
    %2615 = vperm.xlu0 %2614, %v2429
    %v2616 = vpop.permute.xlu0 %2615
    %2619 = vset.pattern.permute.xlu0 0
    %2620 = vperm.xlu0 %2619, %v2430
    %v2621 = vpop.permute.xlu0 %2620
    %2624 = vset.pattern.permute.xlu0 0
    %2625 = vperm.xlu0 %2624, %v2431
    %v2626 = vpop.permute.xlu0 %2625
    %2629 = vset.pattern.permute.xlu0 0
    %2630 = vperm.xlu0 %2629, %v2432
    %v2631 = vpop.permute.xlu0 %2630
    %2634 = vset.pattern.permute.xlu0 0
    %2635 = vperm.xlu0 %2634, %v2433
    %v2636 = vpop.permute.xlu0 %2635
    %2639 = vset.pattern.permute.xlu0 0
    %2640 = vperm.xlu0 %2639, %v2434
    %v2641 = vpop.permute.xlu0 %2640
    %2644 = vset.pattern.permute.xlu0 0
    %2645 = vperm.xlu0 %2644, %v2435
    %v2646 = vpop.permute.xlu0 %2645
    %2649 = vset.pattern.permute.xlu0 0
    %2650 = vperm.xlu0 %2649, %v2436
    %v2651 = vpop.permute.xlu0 %2650
    %2654 = vset.pattern.permute.xlu0 0
    %2655 = vperm.xlu0 %2654, %v2437
    %v2656 = vpop.permute.xlu0 %2655
    %2659 = vset.pattern.permute.xlu0 0
    %2660 = vperm.xlu0 %2659, %v2438
    %v2661 = vpop.permute.xlu0 %2660
    %2664 = vset.pattern.permute.xlu0 0
    %2665 = vperm.xlu0 %2664, %v2439
    %v2666 = vpop.permute.xlu0 %2665
    %2669 = vset.pattern.permute.xlu0 0
    %2670 = vperm.xlu0 %2669, %v2440
    %v2671 = vpop.permute.xlu0 %2670
    %2674 = vset.pattern.permute.xlu0 0
    %2675 = vperm.xlu0 %2674, %v2441
    %v2676 = vpop.permute.xlu0 %2675
    %2679 = vset.pattern.permute.xlu0 0
    %2680 = vperm.xlu0 %2679, %v2442
    %v2681 = vpop.permute.xlu0 %2680
    %v2683 = vperm.slane %v2394, 0
    %v2684 = vmul.f32 %v2446, %v2683
    %v2685 = vmul.f32 %v2451, %v2683
    %v2686 = vmul.f32 %v2456, %v2683
    %v2687 = vmul.f32 %v2461, %v2683
    %v2688 = vmul.f32 %v2466, %v2683
    %v2689 = vmul.f32 %v2471, %v2683
    %v2690 = vmul.f32 %v2476, %v2683
    %v2691 = vmul.f32 %v2481, %v2683
    %v2692 = vmul.f32 %v2486, %v2683
    %v2693 = vmul.f32 %v2491, %v2683
    %v2694 = vmul.f32 %v2496, %v2683
    %v2695 = vmul.f32 %v2501, %v2683
    %v2696 = vmul.f32 %v2506, %v2683
    %v2697 = vmul.f32 %v2511, %v2683
    %v2698 = vmul.f32 %v2516, %v2683
    %v2699 = vmul.f32 %v2521, %v2683
    %v2700 = vmul.f32 %v2526, %v2683
    %v2701 = vmul.f32 %v2531, %v2683
    %v2702 = vmul.f32 %v2536, %v2683
    %v2703 = vmul.f32 %v2541, %v2683
    %v2704 = vmul.f32 %v2546, %v2683
    %v2705 = vmul.f32 %v2551, %v2683
    %v2706 = vmul.f32 %v2556, %v2683
    %v2707 = vmul.f32 %v2561, %v2683
    %v2708 = vmul.f32 %v2566, %v2683
    %v2709 = vmul.f32 %v2571, %v2683
    %v2710 = vmul.f32 %v2576, %v2683
    %v2711 = vmul.f32 %v2581, %v2683
    %v2712 = vmul.f32 %v2586, %v2683
    %v2713 = vmul.f32 %v2591, %v2683
    %v2714 = vmul.f32 %v2596, %v2683
    %v2715 = vmul.f32 %v2601, %v2683
    %v2716 = vmul.f32 %v2606, %v2683
    %v2717 = vmul.f32 %v2611, %v2683
    %v2718 = vmul.f32 %v2616, %v2683
    %v2719 = vmul.f32 %v2621, %v2683
    %v2720 = vmul.f32 %v2626, %v2683
    %v2721 = vmul.f32 %v2631, %v2683
    %v2722 = vmul.f32 %v2636, %v2683
    %v2723 = vmul.f32 %v2641, %v2683
    %v2724 = vmul.f32 %v2646, %v2683
    %v2725 = vmul.f32 %v2651, %v2683
    %v2726 = vmul.f32 %v2656, %v2683
    %v2727 = vmul.f32 %v2661, %v2683
    %v2728 = vmul.f32 %v2666, %v2683
    %v2729 = vmul.f32 %v2671, %v2683
    %v2730 = vmul.f32 %v2676, %v2683
    %v2731 = vmul.f32 %v2681, %v2683
    %v2732 = vadd.f32 %v2275, %v2684
    %v2733 = vadd.f32 %v2277, %v2685
    %v2734 = vadd.f32 %v2280, %v2686
    %v2735 = vadd.f32 %v2282, %v2687
    %v2736 = vadd.f32 %v2285, %v2688
    %v2737 = vadd.f32 %v2287, %v2689
    %v2738 = vadd.f32 %v2290, %v2690
    %v2739 = vadd.f32 %v2292, %v2691
    %v2740 = vadd.f32 %v2295, %v2692
    %v2741 = vadd.f32 %v2297, %v2693
    %v2742 = vadd.f32 %v2300, %v2694
    %v2743 = vadd.f32 %v2302, %v2695
    %v2744 = vadd.f32 %v2305, %v2696
    %v2745 = vadd.f32 %v2307, %v2697
    %v2746 = vadd.f32 %v2310, %v2698
    %v2747 = vadd.f32 %v2312, %v2699
    %v2748 = vadd.f32 %v2315, %v2700
    %v2749 = vadd.f32 %v2317, %v2701
    %v2750 = vadd.f32 %v2320, %v2702
    %v2751 = vadd.f32 %v2322, %v2703
    %v2752 = vadd.f32 %v2325, %v2704
    %v2753 = vadd.f32 %v2327, %v2705
    %v2754 = vadd.f32 %v2330, %v2706
    %v2755 = vadd.f32 %v2332, %v2707
    %v2756 = vadd.f32 %v2335, %v2708
    %v2757 = vadd.f32 %v2337, %v2709
    %v2758 = vadd.f32 %v2340, %v2710
    %v2759 = vadd.f32 %v2342, %v2711
    %v2760 = vadd.f32 %v2345, %v2712
    %v2761 = vadd.f32 %v2347, %v2713
    %v2762 = vadd.f32 %v2350, %v2714
    %v2763 = vadd.f32 %v2352, %v2715
    %v2764 = vadd.f32 %v2355, %v2716
    %v2765 = vadd.f32 %v2357, %v2717
    %v2766 = vadd.f32 %v2360, %v2718
    %v2767 = vadd.f32 %v2362, %v2719
    %v2768 = vadd.f32 %v2365, %v2720
    %v2769 = vadd.f32 %v2367, %v2721
    %v2770 = vadd.f32 %v2370, %v2722
    %v2771 = vadd.f32 %v2372, %v2723
    %v2772 = vadd.f32 %v2375, %v2724
    %v2773 = vadd.f32 %v2377, %v2725
    %v2774 = vadd.f32 %v2380, %v2726
    %v2775 = vadd.f32 %v2382, %v2727
    %v2776 = vadd.f32 %v2385, %v2728
    %v2777 = vadd.f32 %v2387, %v2729
    %v2778 = vadd.f32 %v2390, %v2730
    %v2779 = vadd.f32 %v2392, %v2731
    %2780 = vset.pattern.permute.xlu0 1
    %2781 = vperm.xlu0 %2780, %v2395
    %v2782 = vpop.permute.xlu0 %2781
    %2784 = vset.pattern.permute.xlu0 1
    %2785 = vperm.xlu0 %2784, %v2396
    %v2786 = vpop.permute.xlu0 %2785
    %2788 = vset.pattern.permute.xlu0 1
    %2789 = vperm.xlu0 %2788, %v2397
    %v2790 = vpop.permute.xlu0 %2789
    %2792 = vset.pattern.permute.xlu0 1
    %2793 = vperm.xlu0 %2792, %v2398
    %v2794 = vpop.permute.xlu0 %2793
    %2796 = vset.pattern.permute.xlu0 1
    %2797 = vperm.xlu0 %2796, %v2399
    %v2798 = vpop.permute.xlu0 %2797
    %2800 = vset.pattern.permute.xlu0 1
    %2801 = vperm.xlu0 %2800, %v2400
    %v2802 = vpop.permute.xlu0 %2801
    %2804 = vset.pattern.permute.xlu0 1
    %2805 = vperm.xlu0 %2804, %v2401
    %v2806 = vpop.permute.xlu0 %2805
    %2808 = vset.pattern.permute.xlu0 1
    %2809 = vperm.xlu0 %2808, %v2402
    %v2810 = vpop.permute.xlu0 %2809
    %2812 = vset.pattern.permute.xlu0 1
    %2813 = vperm.xlu0 %2812, %v2403
    %v2814 = vpop.permute.xlu0 %2813
    %2816 = vset.pattern.permute.xlu0 1
    %2817 = vperm.xlu0 %2816, %v2404
    %v2818 = vpop.permute.xlu0 %2817
    %2820 = vset.pattern.permute.xlu0 1
    %2821 = vperm.xlu0 %2820, %v2405
    %v2822 = vpop.permute.xlu0 %2821
    %2824 = vset.pattern.permute.xlu0 1
    %2825 = vperm.xlu0 %2824, %v2406
    %v2826 = vpop.permute.xlu0 %2825
    %2828 = vset.pattern.permute.xlu0 1
    %2829 = vperm.xlu0 %2828, %v2407
    %v2830 = vpop.permute.xlu0 %2829
    %2832 = vset.pattern.permute.xlu0 1
    %2833 = vperm.xlu0 %2832, %v2408
    %v2834 = vpop.permute.xlu0 %2833
    %2836 = vset.pattern.permute.xlu0 1
    %2837 = vperm.xlu0 %2836, %v2409
    %v2838 = vpop.permute.xlu0 %2837
    %2840 = vset.pattern.permute.xlu0 1
    %2841 = vperm.xlu0 %2840, %v2410
    %v2842 = vpop.permute.xlu0 %2841
    %2844 = vset.pattern.permute.xlu0 1
    %2845 = vperm.xlu0 %2844, %v2411
    %v2846 = vpop.permute.xlu0 %2845
    %2848 = vset.pattern.permute.xlu0 1
    %2849 = vperm.xlu0 %2848, %v2412
    %v2850 = vpop.permute.xlu0 %2849
    %2852 = vset.pattern.permute.xlu0 1
    %2853 = vperm.xlu0 %2852, %v2413
    %v2854 = vpop.permute.xlu0 %2853
    %2856 = vset.pattern.permute.xlu0 1
    %2857 = vperm.xlu0 %2856, %v2414
    %v2858 = vpop.permute.xlu0 %2857
    %2860 = vset.pattern.permute.xlu0 1
    %2861 = vperm.xlu0 %2860, %v2415
    %v2862 = vpop.permute.xlu0 %2861
    %2864 = vset.pattern.permute.xlu0 1
    %2865 = vperm.xlu0 %2864, %v2416
    %v2866 = vpop.permute.xlu0 %2865
    %2868 = vset.pattern.permute.xlu0 1
    %2869 = vperm.xlu0 %2868, %v2417
    %v2870 = vpop.permute.xlu0 %2869
    %2872 = vset.pattern.permute.xlu0 1
    %2873 = vperm.xlu0 %2872, %v2418
    %v2874 = vpop.permute.xlu0 %2873
    %2876 = vset.pattern.permute.xlu0 1
    %2877 = vperm.xlu0 %2876, %v2419
    %v2878 = vpop.permute.xlu0 %2877
    %2880 = vset.pattern.permute.xlu0 1
    %2881 = vperm.xlu0 %2880, %v2420
    %v2882 = vpop.permute.xlu0 %2881
    %2884 = vset.pattern.permute.xlu0 1
    %2885 = vperm.xlu0 %2884, %v2421
    %v2886 = vpop.permute.xlu0 %2885
    %2888 = vset.pattern.permute.xlu0 1
    %2889 = vperm.xlu0 %2888, %v2422
    %v2890 = vpop.permute.xlu0 %2889
    %2892 = vset.pattern.permute.xlu0 1
    %2893 = vperm.xlu0 %2892, %v2423
    %v2894 = vpop.permute.xlu0 %2893
    %2896 = vset.pattern.permute.xlu0 1
    %2897 = vperm.xlu0 %2896, %v2424
    %v2898 = vpop.permute.xlu0 %2897
    %2900 = vset.pattern.permute.xlu0 1
    %2901 = vperm.xlu0 %2900, %v2425
    %v2902 = vpop.permute.xlu0 %2901
    %2904 = vset.pattern.permute.xlu0 1
    %2905 = vperm.xlu0 %2904, %v2426
    %v2906 = vpop.permute.xlu0 %2905
    %2908 = vset.pattern.permute.xlu0 1
    %2909 = vperm.xlu0 %2908, %v2427
    %v2910 = vpop.permute.xlu0 %2909
    %2912 = vset.pattern.permute.xlu0 1
    %2913 = vperm.xlu0 %2912, %v2428
    %v2914 = vpop.permute.xlu0 %2913
    %2916 = vset.pattern.permute.xlu0 1
    %2917 = vperm.xlu0 %2916, %v2429
    %v2918 = vpop.permute.xlu0 %2917
    %2920 = vset.pattern.permute.xlu0 1
    %2921 = vperm.xlu0 %2920, %v2430
    %v2922 = vpop.permute.xlu0 %2921
    %2924 = vset.pattern.permute.xlu0 1
    %2925 = vperm.xlu0 %2924, %v2431
    %v2926 = vpop.permute.xlu0 %2925
    %2928 = vset.pattern.permute.xlu0 1
    %2929 = vperm.xlu0 %2928, %v2432
    %v2930 = vpop.permute.xlu0 %2929
    %2932 = vset.pattern.permute.xlu0 1
    %2933 = vperm.xlu0 %2932, %v2433
    %v2934 = vpop.permute.xlu0 %2933
    %2936 = vset.pattern.permute.xlu0 1
    %2937 = vperm.xlu0 %2936, %v2434
    %v2938 = vpop.permute.xlu0 %2937
    %2940 = vset.pattern.permute.xlu0 1
    %2941 = vperm.xlu0 %2940, %v2435
    %v2942 = vpop.permute.xlu0 %2941
    %2944 = vset.pattern.permute.xlu0 1
    %2945 = vperm.xlu0 %2944, %v2436
    %v2946 = vpop.permute.xlu0 %2945
    %2948 = vset.pattern.permute.xlu0 1
    %2949 = vperm.xlu0 %2948, %v2437
    %v2950 = vpop.permute.xlu0 %2949
    %2952 = vset.pattern.permute.xlu0 1
    %2953 = vperm.xlu0 %2952, %v2438
    %v2954 = vpop.permute.xlu0 %2953
    %2956 = vset.pattern.permute.xlu0 1
    %2957 = vperm.xlu0 %2956, %v2439
    %v2958 = vpop.permute.xlu0 %2957
    %2960 = vset.pattern.permute.xlu0 1
    %2961 = vperm.xlu0 %2960, %v2440
    %v2962 = vpop.permute.xlu0 %2961
    %2964 = vset.pattern.permute.xlu0 1
    %2965 = vperm.xlu0 %2964, %v2441
    %v2966 = vpop.permute.xlu0 %2965
    %2968 = vset.pattern.permute.xlu0 1
    %2969 = vperm.xlu0 %2968, %v2442
    %v2970 = vpop.permute.xlu0 %2969
    %v2972 = vperm.slane %v2394, 1
    %v2973 = vmul.f32 %v2782, %v2972
    %v2974 = vmul.f32 %v2786, %v2972
    %v2975 = vmul.f32 %v2790, %v2972
    %v2976 = vmul.f32 %v2794, %v2972
    %v2977 = vmul.f32 %v2798, %v2972
    %v2978 = vmul.f32 %v2802, %v2972
    %v2979 = vmul.f32 %v2806, %v2972
    %v2980 = vmul.f32 %v2810, %v2972
    %v2981 = vmul.f32 %v2814, %v2972
    %v2982 = vmul.f32 %v2818, %v2972
    %v2983 = vmul.f32 %v2822, %v2972
    %v2984 = vmul.f32 %v2826, %v2972
    %v2985 = vmul.f32 %v2830, %v2972
    %v2986 = vmul.f32 %v2834, %v2972
    %v2987 = vmul.f32 %v2838, %v2972
    %v2988 = vmul.f32 %v2842, %v2972
    %v2989 = vmul.f32 %v2846, %v2972
    %v2990 = vmul.f32 %v2850, %v2972
    %v2991 = vmul.f32 %v2854, %v2972
    %v2992 = vmul.f32 %v2858, %v2972
    %v2993 = vmul.f32 %v2862, %v2972
    %v2994 = vmul.f32 %v2866, %v2972
    %v2995 = vmul.f32 %v2870, %v2972
    %v2996 = vmul.f32 %v2874, %v2972
    %v2997 = vmul.f32 %v2878, %v2972
    %v2998 = vmul.f32 %v2882, %v2972
    %v2999 = vmul.f32 %v2886, %v2972
    %v3000 = vmul.f32 %v2890, %v2972
    %v3001 = vmul.f32 %v2894, %v2972
    %v3002 = vmul.f32 %v2898, %v2972
    %v3003 = vmul.f32 %v2902, %v2972
    %v3004 = vmul.f32 %v2906, %v2972
    %v3005 = vmul.f32 %v2910, %v2972
    %v3006 = vmul.f32 %v2914, %v2972
    %v3007 = vmul.f32 %v2918, %v2972
    %v3008 = vmul.f32 %v2922, %v2972
    %v3009 = vmul.f32 %v2926, %v2972
    %v3010 = vmul.f32 %v2930, %v2972
    %v3011 = vmul.f32 %v2934, %v2972
    %v3012 = vmul.f32 %v2938, %v2972
    %v3013 = vmul.f32 %v2942, %v2972
    %v3014 = vmul.f32 %v2946, %v2972
    %v3015 = vmul.f32 %v2950, %v2972
    %v3016 = vmul.f32 %v2954, %v2972
    %v3017 = vmul.f32 %v2958, %v2972
    %v3018 = vmul.f32 %v2962, %v2972
    %v3019 = vmul.f32 %v2966, %v2972
    %v3020 = vmul.f32 %v2970, %v2972
    %v3021 = vadd.f32 %v2732, %v2973
    %v3022 = vadd.f32 %v2733, %v2974
    %v3023 = vadd.f32 %v2734, %v2975
    %v3024 = vadd.f32 %v2735, %v2976
    %v3025 = vadd.f32 %v2736, %v2977
    %v3026 = vadd.f32 %v2737, %v2978
    %v3027 = vadd.f32 %v2738, %v2979
    %v3028 = vadd.f32 %v2739, %v2980
    %v3029 = vadd.f32 %v2740, %v2981
    %v3030 = vadd.f32 %v2741, %v2982
    %v3031 = vadd.f32 %v2742, %v2983
    %v3032 = vadd.f32 %v2743, %v2984
    %v3033 = vadd.f32 %v2744, %v2985
    %v3034 = vadd.f32 %v2745, %v2986
    %v3035 = vadd.f32 %v2746, %v2987
    %v3036 = vadd.f32 %v2747, %v2988
    %v3037 = vadd.f32 %v2748, %v2989
    %v3038 = vadd.f32 %v2749, %v2990
    %v3039 = vadd.f32 %v2750, %v2991
    %v3040 = vadd.f32 %v2751, %v2992
    %v3041 = vadd.f32 %v2752, %v2993
    %v3042 = vadd.f32 %v2753, %v2994
    %v3043 = vadd.f32 %v2754, %v2995
    %v3044 = vadd.f32 %v2755, %v2996
    %v3045 = vadd.f32 %v2756, %v2997
    %v3046 = vadd.f32 %v2757, %v2998
    %v3047 = vadd.f32 %v2758, %v2999
    %v3048 = vadd.f32 %v2759, %v3000
    %v3049 = vadd.f32 %v2760, %v3001
    %v3050 = vadd.f32 %v2761, %v3002
    %v3051 = vadd.f32 %v2762, %v3003
    %v3052 = vadd.f32 %v2763, %v3004
    %v3053 = vadd.f32 %v2764, %v3005
    %v3054 = vadd.f32 %v2765, %v3006
    %v3055 = vadd.f32 %v2766, %v3007
    %v3056 = vadd.f32 %v2767, %v3008
    %v3057 = vadd.f32 %v2768, %v3009
    %v3058 = vadd.f32 %v2769, %v3010
    %v3059 = vadd.f32 %v2770, %v3011
    %v3060 = vadd.f32 %v2771, %v3012
    %v3061 = vadd.f32 %v2772, %v3013
    %v3062 = vadd.f32 %v2773, %v3014
    %v3063 = vadd.f32 %v2774, %v3015
    %v3064 = vadd.f32 %v2775, %v3016
    %v3065 = vadd.f32 %v2776, %v3017
    %v3066 = vadd.f32 %v2777, %v3018
    %v3067 = vadd.f32 %v2778, %v3019
    %v3068 = vadd.f32 %v2779, %v3020
    %3069 = vset.pattern.permute.xlu0 2
    %3070 = vperm.xlu0 %3069, %v2395
    %v3071 = vpop.permute.xlu0 %3070
    %3073 = vset.pattern.permute.xlu0 2
    %3074 = vperm.xlu0 %3073, %v2396
    %v3075 = vpop.permute.xlu0 %3074
    %3077 = vset.pattern.permute.xlu0 2
    %3078 = vperm.xlu0 %3077, %v2397
    %v3079 = vpop.permute.xlu0 %3078
    %3081 = vset.pattern.permute.xlu0 2
    %3082 = vperm.xlu0 %3081, %v2398
    %v3083 = vpop.permute.xlu0 %3082
    %3085 = vset.pattern.permute.xlu0 2
    %3086 = vperm.xlu0 %3085, %v2399
    %v3087 = vpop.permute.xlu0 %3086
    %3089 = vset.pattern.permute.xlu0 2
    %3090 = vperm.xlu0 %3089, %v2400
    %v3091 = vpop.permute.xlu0 %3090
    %3093 = vset.pattern.permute.xlu0 2
    %3094 = vperm.xlu0 %3093, %v2401
    %v3095 = vpop.permute.xlu0 %3094
    %3097 = vset.pattern.permute.xlu0 2
    %3098 = vperm.xlu0 %3097, %v2402
    %v3099 = vpop.permute.xlu0 %3098
    %3101 = vset.pattern.permute.xlu0 2
    %3102 = vperm.xlu0 %3101, %v2403
    %v3103 = vpop.permute.xlu0 %3102
    %3105 = vset.pattern.permute.xlu0 2
    %3106 = vperm.xlu0 %3105, %v2404
    %v3107 = vpop.permute.xlu0 %3106
    %3109 = vset.pattern.permute.xlu0 2
    %3110 = vperm.xlu0 %3109, %v2405
    %v3111 = vpop.permute.xlu0 %3110
    %3113 = vset.pattern.permute.xlu0 2
    %3114 = vperm.xlu0 %3113, %v2406
    %v3115 = vpop.permute.xlu0 %3114
    %3117 = vset.pattern.permute.xlu0 2
    %3118 = vperm.xlu0 %3117, %v2407
    %v3119 = vpop.permute.xlu0 %3118
    %3121 = vset.pattern.permute.xlu0 2
    %3122 = vperm.xlu0 %3121, %v2408
    %v3123 = vpop.permute.xlu0 %3122
    %3125 = vset.pattern.permute.xlu0 2
    %3126 = vperm.xlu0 %3125, %v2409
    %v3127 = vpop.permute.xlu0 %3126
    %3129 = vset.pattern.permute.xlu0 2
    %3130 = vperm.xlu0 %3129, %v2410
    %v3131 = vpop.permute.xlu0 %3130
    %3133 = vset.pattern.permute.xlu0 2
    %3134 = vperm.xlu0 %3133, %v2411
    %v3135 = vpop.permute.xlu0 %3134
    %3137 = vset.pattern.permute.xlu0 2
    %3138 = vperm.xlu0 %3137, %v2412
    %v3139 = vpop.permute.xlu0 %3138
    %3141 = vset.pattern.permute.xlu0 2
    %3142 = vperm.xlu0 %3141, %v2413
    %v3143 = vpop.permute.xlu0 %3142
    %3145 = vset.pattern.permute.xlu0 2
    %3146 = vperm.xlu0 %3145, %v2414
    %v3147 = vpop.permute.xlu0 %3146
    %3149 = vset.pattern.permute.xlu0 2
    %3150 = vperm.xlu0 %3149, %v2415
    %v3151 = vpop.permute.xlu0 %3150
    %3153 = vset.pattern.permute.xlu0 2
    %3154 = vperm.xlu0 %3153, %v2416
    %v3155 = vpop.permute.xlu0 %3154
    %3157 = vset.pattern.permute.xlu0 2
    %3158 = vperm.xlu0 %3157, %v2417
    %v3159 = vpop.permute.xlu0 %3158
    %3161 = vset.pattern.permute.xlu0 2
    %3162 = vperm.xlu0 %3161, %v2418
    %v3163 = vpop.permute.xlu0 %3162
    %3165 = vset.pattern.permute.xlu0 2
    %3166 = vperm.xlu0 %3165, %v2419
    %v3167 = vpop.permute.xlu0 %3166
    %3169 = vset.pattern.permute.xlu0 2
    %3170 = vperm.xlu0 %3169, %v2420
    %v3171 = vpop.permute.xlu0 %3170
    %3173 = vset.pattern.permute.xlu0 2
    %3174 = vperm.xlu0 %3173, %v2421
    %v3175 = vpop.permute.xlu0 %3174
    %3177 = vset.pattern.permute.xlu0 2
    %3178 = vperm.xlu0 %3177, %v2422
    %v3179 = vpop.permute.xlu0 %3178
    %3181 = vset.pattern.permute.xlu0 2
    %3182 = vperm.xlu0 %3181, %v2423
    %v3183 = vpop.permute.xlu0 %3182
    %3185 = vset.pattern.permute.xlu0 2
    %3186 = vperm.xlu0 %3185, %v2424
    %v3187 = vpop.permute.xlu0 %3186
    %3189 = vset.pattern.permute.xlu0 2
    %3190 = vperm.xlu0 %3189, %v2425
    %v3191 = vpop.permute.xlu0 %3190
    %3193 = vset.pattern.permute.xlu0 2
    %3194 = vperm.xlu0 %3193, %v2426
    %v3195 = vpop.permute.xlu0 %3194
    %3197 = vset.pattern.permute.xlu0 2
    %3198 = vperm.xlu0 %3197, %v2427
    %v3199 = vpop.permute.xlu0 %3198
    %3201 = vset.pattern.permute.xlu0 2
    %3202 = vperm.xlu0 %3201, %v2428
    %v3203 = vpop.permute.xlu0 %3202
    %3205 = vset.pattern.permute.xlu0 2
    %3206 = vperm.xlu0 %3205, %v2429
    %v3207 = vpop.permute.xlu0 %3206
    %3209 = vset.pattern.permute.xlu0 2
    %3210 = vperm.xlu0 %3209, %v2430
    %v3211 = vpop.permute.xlu0 %3210
    %3213 = vset.pattern.permute.xlu0 2
    %3214 = vperm.xlu0 %3213, %v2431
    %v3215 = vpop.permute.xlu0 %3214
    %3217 = vset.pattern.permute.xlu0 2
    %3218 = vperm.xlu0 %3217, %v2432
    %v3219 = vpop.permute.xlu0 %3218
    %3221 = vset.pattern.permute.xlu0 2
    %3222 = vperm.xlu0 %3221, %v2433
    %v3223 = vpop.permute.xlu0 %3222
    %3225 = vset.pattern.permute.xlu0 2
    %3226 = vperm.xlu0 %3225, %v2434
    %v3227 = vpop.permute.xlu0 %3226
    %3229 = vset.pattern.permute.xlu0 2
    %3230 = vperm.xlu0 %3229, %v2435
    %v3231 = vpop.permute.xlu0 %3230
    %3233 = vset.pattern.permute.xlu0 2
    %3234 = vperm.xlu0 %3233, %v2436
    %v3235 = vpop.permute.xlu0 %3234
    %3237 = vset.pattern.permute.xlu0 2
    %3238 = vperm.xlu0 %3237, %v2437
    %v3239 = vpop.permute.xlu0 %3238
    %3241 = vset.pattern.permute.xlu0 2
    %3242 = vperm.xlu0 %3241, %v2438
    %v3243 = vpop.permute.xlu0 %3242
    %3245 = vset.pattern.permute.xlu0 2
    %3246 = vperm.xlu0 %3245, %v2439
    %v3247 = vpop.permute.xlu0 %3246
    %3249 = vset.pattern.permute.xlu0 2
    %3250 = vperm.xlu0 %3249, %v2440
    %v3251 = vpop.permute.xlu0 %3250
    %3253 = vset.pattern.permute.xlu0 2
    %3254 = vperm.xlu0 %3253, %v2441
    %v3255 = vpop.permute.xlu0 %3254
    %3257 = vset.pattern.permute.xlu0 2
    %3258 = vperm.xlu0 %3257, %v2442
    %v3259 = vpop.permute.xlu0 %3258
    %v3261 = vperm.slane %v2394, 2
    %v3262 = vmul.f32 %v3071, %v3261
    %v3263 = vmul.f32 %v3075, %v3261
    %v3264 = vmul.f32 %v3079, %v3261
    %v3265 = vmul.f32 %v3083, %v3261
    %v3266 = vmul.f32 %v3087, %v3261
    %v3267 = vmul.f32 %v3091, %v3261
    %v3268 = vmul.f32 %v3095, %v3261
    %v3269 = vmul.f32 %v3099, %v3261
    %v3270 = vmul.f32 %v3103, %v3261
    %v3271 = vmul.f32 %v3107, %v3261
    %v3272 = vmul.f32 %v3111, %v3261
    %v3273 = vmul.f32 %v3115, %v3261
    %v3274 = vmul.f32 %v3119, %v3261
    %v3275 = vmul.f32 %v3123, %v3261
    %v3276 = vmul.f32 %v3127, %v3261
    %v3277 = vmul.f32 %v3131, %v3261
    %v3278 = vmul.f32 %v3135, %v3261
    %v3279 = vmul.f32 %v3139, %v3261
    %v3280 = vmul.f32 %v3143, %v3261
    %v3281 = vmul.f32 %v3147, %v3261
    %v3282 = vmul.f32 %v3151, %v3261
    %v3283 = vmul.f32 %v3155, %v3261
    %v3284 = vmul.f32 %v3159, %v3261
    %v3285 = vmul.f32 %v3163, %v3261
    %v3286 = vmul.f32 %v3167, %v3261
    %v3287 = vmul.f32 %v3171, %v3261
    %v3288 = vmul.f32 %v3175, %v3261
    %v3289 = vmul.f32 %v3179, %v3261
    %v3290 = vmul.f32 %v3183, %v3261
    %v3291 = vmul.f32 %v3187, %v3261
    %v3292 = vmul.f32 %v3191, %v3261
    %v3293 = vmul.f32 %v3195, %v3261
    %v3294 = vmul.f32 %v3199, %v3261
    %v3295 = vmul.f32 %v3203, %v3261
    %v3296 = vmul.f32 %v3207, %v3261
    %v3297 = vmul.f32 %v3211, %v3261
    %v3298 = vmul.f32 %v3215, %v3261
    %v3299 = vmul.f32 %v3219, %v3261
    %v3300 = vmul.f32 %v3223, %v3261
    %v3301 = vmul.f32 %v3227, %v3261
    %v3302 = vmul.f32 %v3231, %v3261
    %v3303 = vmul.f32 %v3235, %v3261
    %v3304 = vmul.f32 %v3239, %v3261
    %v3305 = vmul.f32 %v3243, %v3261
    %v3306 = vmul.f32 %v3247, %v3261
    %v3307 = vmul.f32 %v3251, %v3261
    %v3308 = vmul.f32 %v3255, %v3261
    %v3309 = vmul.f32 %v3259, %v3261
    %v3310 = vadd.f32 %v3021, %v3262
    %v3311 = vadd.f32 %v3022, %v3263
    %v3312 = vadd.f32 %v3023, %v3264
    %v3313 = vadd.f32 %v3024, %v3265
    %v3314 = vadd.f32 %v3025, %v3266
    %v3315 = vadd.f32 %v3026, %v3267
    %v3316 = vadd.f32 %v3027, %v3268
    %v3317 = vadd.f32 %v3028, %v3269
    %v3318 = vadd.f32 %v3029, %v3270
    %v3319 = vadd.f32 %v3030, %v3271
    %v3320 = vadd.f32 %v3031, %v3272
    %v3321 = vadd.f32 %v3032, %v3273
    %v3322 = vadd.f32 %v3033, %v3274
    %v3323 = vadd.f32 %v3034, %v3275
    %v3324 = vadd.f32 %v3035, %v3276
    %v3325 = vadd.f32 %v3036, %v3277
    %v3326 = vadd.f32 %v3037, %v3278
    %v3327 = vadd.f32 %v3038, %v3279
    %v3328 = vadd.f32 %v3039, %v3280
    %v3329 = vadd.f32 %v3040, %v3281
    %v3330 = vadd.f32 %v3041, %v3282
    %v3331 = vadd.f32 %v3042, %v3283
    %v3332 = vadd.f32 %v3043, %v3284
    %v3333 = vadd.f32 %v3044, %v3285
    %v3334 = vadd.f32 %v3045, %v3286
    %v3335 = vadd.f32 %v3046, %v3287
    %v3336 = vadd.f32 %v3047, %v3288
    %v3337 = vadd.f32 %v3048, %v3289
    %v3338 = vadd.f32 %v3049, %v3290
    %v3339 = vadd.f32 %v3050, %v3291
    %v3340 = vadd.f32 %v3051, %v3292
    %v3341 = vadd.f32 %v3052, %v3293
    %v3342 = vadd.f32 %v3053, %v3294
    %v3343 = vadd.f32 %v3054, %v3295
    %v3344 = vadd.f32 %v3055, %v3296
    %v3345 = vadd.f32 %v3056, %v3297
    %v3346 = vadd.f32 %v3057, %v3298
    %v3347 = vadd.f32 %v3058, %v3299
    %v3348 = vadd.f32 %v3059, %v3300
    %v3349 = vadd.f32 %v3060, %v3301
    %v3350 = vadd.f32 %v3061, %v3302
    %v3351 = vadd.f32 %v3062, %v3303
    %v3352 = vadd.f32 %v3063, %v3304
    %v3353 = vadd.f32 %v3064, %v3305
    %v3354 = vadd.f32 %v3065, %v3306
    %v3355 = vadd.f32 %v3066, %v3307
    %v3356 = vadd.f32 %v3067, %v3308
    %v3357 = vadd.f32 %v3068, %v3309
    %3358 = vset.pattern.permute.xlu0 3
    %3359 = vperm.xlu0 %3358, %v2395
    %v3360 = vpop.permute.xlu0 %3359
    %3362 = vset.pattern.permute.xlu0 3
    %3363 = vperm.xlu0 %3362, %v2396
    %v3364 = vpop.permute.xlu0 %3363
    %3366 = vset.pattern.permute.xlu0 3
    %3367 = vperm.xlu0 %3366, %v2397
    %v3368 = vpop.permute.xlu0 %3367
    %3370 = vset.pattern.permute.xlu0 3
    %3371 = vperm.xlu0 %3370, %v2398
    %v3372 = vpop.permute.xlu0 %3371
    %3374 = vset.pattern.permute.xlu0 3
    %3375 = vperm.xlu0 %3374, %v2399
    %v3376 = vpop.permute.xlu0 %3375
    %3378 = vset.pattern.permute.xlu0 3
    %3379 = vperm.xlu0 %3378, %v2400
    %v3380 = vpop.permute.xlu0 %3379
    %3382 = vset.pattern.permute.xlu0 3
    %3383 = vperm.xlu0 %3382, %v2401
    %v3384 = vpop.permute.xlu0 %3383
    %3386 = vset.pattern.permute.xlu0 3
    %3387 = vperm.xlu0 %3386, %v2402
    %v3388 = vpop.permute.xlu0 %3387
    %3390 = vset.pattern.permute.xlu0 3
    %3391 = vperm.xlu0 %3390, %v2403
    %v3392 = vpop.permute.xlu0 %3391
    %3394 = vset.pattern.permute.xlu0 3
    %3395 = vperm.xlu0 %3394, %v2404
    %v3396 = vpop.permute.xlu0 %3395
    %3398 = vset.pattern.permute.xlu0 3
    %3399 = vperm.xlu0 %3398, %v2405
    %v3400 = vpop.permute.xlu0 %3399
    %3402 = vset.pattern.permute.xlu0 3
    %3403 = vperm.xlu0 %3402, %v2406
    %v3404 = vpop.permute.xlu0 %3403
    %3406 = vset.pattern.permute.xlu0 3
    %3407 = vperm.xlu0 %3406, %v2407
    %v3408 = vpop.permute.xlu0 %3407
    %3410 = vset.pattern.permute.xlu0 3
    %3411 = vperm.xlu0 %3410, %v2408
    %v3412 = vpop.permute.xlu0 %3411
    %3414 = vset.pattern.permute.xlu0 3
    %3415 = vperm.xlu0 %3414, %v2409
    %v3416 = vpop.permute.xlu0 %3415
    %3418 = vset.pattern.permute.xlu0 3
    %3419 = vperm.xlu0 %3418, %v2410
    %v3420 = vpop.permute.xlu0 %3419
    %3422 = vset.pattern.permute.xlu0 3
    %3423 = vperm.xlu0 %3422, %v2411
    %v3424 = vpop.permute.xlu0 %3423
    %3426 = vset.pattern.permute.xlu0 3
    %3427 = vperm.xlu0 %3426, %v2412
    %v3428 = vpop.permute.xlu0 %3427
    %3430 = vset.pattern.permute.xlu0 3
    %3431 = vperm.xlu0 %3430, %v2413
    %v3432 = vpop.permute.xlu0 %3431
    %3434 = vset.pattern.permute.xlu0 3
    %3435 = vperm.xlu0 %3434, %v2414
    %v3436 = vpop.permute.xlu0 %3435
    %3438 = vset.pattern.permute.xlu0 3
    %3439 = vperm.xlu0 %3438, %v2415
    %v3440 = vpop.permute.xlu0 %3439
    %3442 = vset.pattern.permute.xlu0 3
    %3443 = vperm.xlu0 %3442, %v2416
    %v3444 = vpop.permute.xlu0 %3443
    %3446 = vset.pattern.permute.xlu0 3
    %3447 = vperm.xlu0 %3446, %v2417
    %v3448 = vpop.permute.xlu0 %3447
    %3450 = vset.pattern.permute.xlu0 3
    %3451 = vperm.xlu0 %3450, %v2418
    %v3452 = vpop.permute.xlu0 %3451
    %3454 = vset.pattern.permute.xlu0 3
    %3455 = vperm.xlu0 %3454, %v2419
    %v3456 = vpop.permute.xlu0 %3455
    %3458 = vset.pattern.permute.xlu0 3
    %3459 = vperm.xlu0 %3458, %v2420
    %v3460 = vpop.permute.xlu0 %3459
    %3462 = vset.pattern.permute.xlu0 3
    %3463 = vperm.xlu0 %3462, %v2421
    %v3464 = vpop.permute.xlu0 %3463
    %3466 = vset.pattern.permute.xlu0 3
    %3467 = vperm.xlu0 %3466, %v2422
    %v3468 = vpop.permute.xlu0 %3467
    %3470 = vset.pattern.permute.xlu0 3
    %3471 = vperm.xlu0 %3470, %v2423
    %v3472 = vpop.permute.xlu0 %3471
    %3474 = vset.pattern.permute.xlu0 3
    %3475 = vperm.xlu0 %3474, %v2424
    %v3476 = vpop.permute.xlu0 %3475
    %3478 = vset.pattern.permute.xlu0 3
    %3479 = vperm.xlu0 %3478, %v2425
    %v3480 = vpop.permute.xlu0 %3479
    %3482 = vset.pattern.permute.xlu0 3
    %3483 = vperm.xlu0 %3482, %v2426
    %v3484 = vpop.permute.xlu0 %3483
    %3486 = vset.pattern.permute.xlu0 3
    %3487 = vperm.xlu0 %3486, %v2427
    %v3488 = vpop.permute.xlu0 %3487
    %3490 = vset.pattern.permute.xlu0 3
    %3491 = vperm.xlu0 %3490, %v2428
    %v3492 = vpop.permute.xlu0 %3491
    %3494 = vset.pattern.permute.xlu0 3
    %3495 = vperm.xlu0 %3494, %v2429
    %v3496 = vpop.permute.xlu0 %3495
    %3498 = vset.pattern.permute.xlu0 3
    %3499 = vperm.xlu0 %3498, %v2430
    %v3500 = vpop.permute.xlu0 %3499
    %3502 = vset.pattern.permute.xlu0 3
    %3503 = vperm.xlu0 %3502, %v2431
    %v3504 = vpop.permute.xlu0 %3503
    %3506 = vset.pattern.permute.xlu0 3
    %3507 = vperm.xlu0 %3506, %v2432
    %v3508 = vpop.permute.xlu0 %3507
    %3510 = vset.pattern.permute.xlu0 3
    %3511 = vperm.xlu0 %3510, %v2433
    %v3512 = vpop.permute.xlu0 %3511
    %3514 = vset.pattern.permute.xlu0 3
    %3515 = vperm.xlu0 %3514, %v2434
    %v3516 = vpop.permute.xlu0 %3515
    %3518 = vset.pattern.permute.xlu0 3
    %3519 = vperm.xlu0 %3518, %v2435
    %v3520 = vpop.permute.xlu0 %3519
    %3522 = vset.pattern.permute.xlu0 3
    %3523 = vperm.xlu0 %3522, %v2436
    %v3524 = vpop.permute.xlu0 %3523
    %3526 = vset.pattern.permute.xlu0 3
    %3527 = vperm.xlu0 %3526, %v2437
    %v3528 = vpop.permute.xlu0 %3527
    %3530 = vset.pattern.permute.xlu0 3
    %3531 = vperm.xlu0 %3530, %v2438
    %v3532 = vpop.permute.xlu0 %3531
    %3534 = vset.pattern.permute.xlu0 3
    %3535 = vperm.xlu0 %3534, %v2439
    %v3536 = vpop.permute.xlu0 %3535
    %3538 = vset.pattern.permute.xlu0 3
    %3539 = vperm.xlu0 %3538, %v2440
    %v3540 = vpop.permute.xlu0 %3539
    %3542 = vset.pattern.permute.xlu0 3
    %3543 = vperm.xlu0 %3542, %v2441
    %v3544 = vpop.permute.xlu0 %3543
    %3546 = vset.pattern.permute.xlu0 3
    %3547 = vperm.xlu0 %3546, %v2442
    %v3548 = vpop.permute.xlu0 %3547
    %v3550 = vperm.slane %v2394, 3
    %v3551 = vmul.f32 %v3360, %v3550
    %v3552 = vmul.f32 %v3364, %v3550
    %v3553 = vmul.f32 %v3368, %v3550
    %v3554 = vmul.f32 %v3372, %v3550
    %v3555 = vmul.f32 %v3376, %v3550
    %v3556 = vmul.f32 %v3380, %v3550
    %v3557 = vmul.f32 %v3384, %v3550
    %v3558 = vmul.f32 %v3388, %v3550
    %v3559 = vmul.f32 %v3392, %v3550
    %v3560 = vmul.f32 %v3396, %v3550
    %v3561 = vmul.f32 %v3400, %v3550
    %v3562 = vmul.f32 %v3404, %v3550
    %v3563 = vmul.f32 %v3408, %v3550
    %v3564 = vmul.f32 %v3412, %v3550
    %v3565 = vmul.f32 %v3416, %v3550
    %v3566 = vmul.f32 %v3420, %v3550
    %v3567 = vmul.f32 %v3424, %v3550
    %v3568 = vmul.f32 %v3428, %v3550
    %v3569 = vmul.f32 %v3432, %v3550
    %v3570 = vmul.f32 %v3436, %v3550
    %v3571 = vmul.f32 %v3440, %v3550
    %v3572 = vmul.f32 %v3444, %v3550
    %v3573 = vmul.f32 %v3448, %v3550
    %v3574 = vmul.f32 %v3452, %v3550
    %v3575 = vmul.f32 %v3456, %v3550
    %v3576 = vmul.f32 %v3460, %v3550
    %v3577 = vmul.f32 %v3464, %v3550
    %v3578 = vmul.f32 %v3468, %v3550
    %v3579 = vmul.f32 %v3472, %v3550
    %v3580 = vmul.f32 %v3476, %v3550
    %v3581 = vmul.f32 %v3480, %v3550
    %v3582 = vmul.f32 %v3484, %v3550
    %v3583 = vmul.f32 %v3488, %v3550
    %v3584 = vmul.f32 %v3492, %v3550
    %v3585 = vmul.f32 %v3496, %v3550
    %v3586 = vmul.f32 %v3500, %v3550
    %v3587 = vmul.f32 %v3504, %v3550
    %v3588 = vmul.f32 %v3508, %v3550
    %v3589 = vmul.f32 %v3512, %v3550
    %v3590 = vmul.f32 %v3516, %v3550
    %v3591 = vmul.f32 %v3520, %v3550
    %v3592 = vmul.f32 %v3524, %v3550
    %v3593 = vmul.f32 %v3528, %v3550
    %v3594 = vmul.f32 %v3532, %v3550
    %v3595 = vmul.f32 %v3536, %v3550
    %v3596 = vmul.f32 %v3540, %v3550
    %v3597 = vmul.f32 %v3544, %v3550
    %v3598 = vmul.f32 %v3548, %v3550
    %v3599 = vadd.f32 %v3310, %v3551
    %v3600 = vadd.f32 %v3311, %v3552
    %v3601 = vadd.f32 %v3312, %v3553
    %v3602 = vadd.f32 %v3313, %v3554
    %v3603 = vadd.f32 %v3314, %v3555
    %v3604 = vadd.f32 %v3315, %v3556
    %v3605 = vadd.f32 %v3316, %v3557
    %v3606 = vadd.f32 %v3317, %v3558
    %v3607 = vadd.f32 %v3318, %v3559
    %v3608 = vadd.f32 %v3319, %v3560
    %v3609 = vadd.f32 %v3320, %v3561
    %v3610 = vadd.f32 %v3321, %v3562
    %v3611 = vadd.f32 %v3322, %v3563
    %v3612 = vadd.f32 %v3323, %v3564
    %v3613 = vadd.f32 %v3324, %v3565
    %v3614 = vadd.f32 %v3325, %v3566
    %v3615 = vadd.f32 %v3326, %v3567
    %v3616 = vadd.f32 %v3327, %v3568
    %v3617 = vadd.f32 %v3328, %v3569
    %v3618 = vadd.f32 %v3329, %v3570
    %v3619 = vadd.f32 %v3330, %v3571
    %v3620 = vadd.f32 %v3331, %v3572
    %v3621 = vadd.f32 %v3332, %v3573
    %v3622 = vadd.f32 %v3333, %v3574
    %v3623 = vadd.f32 %v3334, %v3575
    %v3624 = vadd.f32 %v3335, %v3576
    %v3625 = vadd.f32 %v3336, %v3577
    %v3626 = vadd.f32 %v3337, %v3578
    %v3627 = vadd.f32 %v3338, %v3579
    %v3628 = vadd.f32 %v3339, %v3580
    %v3629 = vadd.f32 %v3340, %v3581
    %v3630 = vadd.f32 %v3341, %v3582
    %v3631 = vadd.f32 %v3342, %v3583
    %v3632 = vadd.f32 %v3343, %v3584
    %v3633 = vadd.f32 %v3344, %v3585
    %v3634 = vadd.f32 %v3345, %v3586
    %v3635 = vadd.f32 %v3346, %v3587
    %v3636 = vadd.f32 %v3347, %v3588
    %v3637 = vadd.f32 %v3348, %v3589
    %v3638 = vadd.f32 %v3349, %v3590
    %v3639 = vadd.f32 %v3350, %v3591
    %v3640 = vadd.f32 %v3351, %v3592
    %v3641 = vadd.f32 %v3352, %v3593
    %v3642 = vadd.f32 %v3353, %v3594
    %v3643 = vadd.f32 %v3354, %v3595
    %v3644 = vadd.f32 %v3355, %v3596
    %v3645 = vadd.f32 %v3356, %v3597
    %v3646 = vadd.f32 %v3357, %v3598
    %v3647 = vmax.f32 %v3599, 0.0
    %v3648 = vmax.f32 %v3600, 0.0
    %v3649 = vmax.f32 %v3601, 0.0
    %v3650 = vmax.f32 %v3602, 0.0
    %v3651 = vmax.f32 %v3603, 0.0
    %v3652 = vmax.f32 %v3604, 0.0
    %v3653 = vmax.f32 %v3605, 0.0
    %v3654 = vmax.f32 %v3606, 0.0
    %v3655 = vmax.f32 %v3607, 0.0
    %v3656 = vmax.f32 %v3608, 0.0
    %v3657 = vmax.f32 %v3609, 0.0
    %v3658 = vmax.f32 %v3610, 0.0
    %v3659 = vmax.f32 %v3611, 0.0
    %v3660 = vmax.f32 %v3612, 0.0
    %v3661 = vmax.f32 %v3613, 0.0
    %v3662 = vmax.f32 %v3614, 0.0
    %v3663 = vmax.f32 %v3615, 0.0
    %v3664 = vmax.f32 %v3616, 0.0
    %v3665 = vmax.f32 %v3617, 0.0
    %v3666 = vmax.f32 %v3618, 0.0
    %v3667 = vmax.f32 %v3619, 0.0
    %v3668 = vmax.f32 %v3620, 0.0
    %v3669 = vmax.f32 %v3621, 0.0
    %v3670 = vmax.f32 %v3622, 0.0
    %v3671 = vmax.f32 %v3623, 0.0
    %v3672 = vmax.f32 %v3624, 0.0
    %v3673 = vmax.f32 %v3625, 0.0
    %v3674 = vmax.f32 %v3626, 0.0
    %v3675 = vmax.f32 %v3627, 0.0
    %v3676 = vmax.f32 %v3628, 0.0
    %v3677 = vmax.f32 %v3629, 0.0
    %v3678 = vmax.f32 %v3630, 0.0
    %v3679 = vmax.f32 %v3631, 0.0
    %v3680 = vmax.f32 %v3632, 0.0
    %v3681 = vmax.f32 %v3633, 0.0
    %v3682 = vmax.f32 %v3634, 0.0
    %v3683 = vmax.f32 %v3635, 0.0
    %v3684 = vmax.f32 %v3636, 0.0
    %v3685 = vmax.f32 %v3637, 0.0
    %v3686 = vmax.f32 %v3638, 0.0
    %v3687 = vmax.f32 %v3639, 0.0
    %v3688 = vmax.f32 %v3640, 0.0
    %v3689 = vmax.f32 %v3641, 0.0
    %v3690 = vmax.f32 %v3642, 0.0
    %v3691 = vmax.f32 %v3643, 0.0
    %v3692 = vmax.f32 %v3644, 0.0
    %v3693 = vmax.f32 %v3645, 0.0
    %v3694 = vmax.f32 %v3646, 0.0
    %v3695 = vpack.c.bf16 %v3647, %v3647
    %v3696 = vpack.c.bf16 %v3648, %v3648
    %v3697 = vpack.c.bf16 %v3649, %v3649
    %v3698 = vpack.c.bf16 %v3650, %v3650
    %v3699 = vpack.c.bf16 %v3651, %v3651
    %v3700 = vpack.c.bf16 %v3652, %v3652
    %v3701 = vpack.c.bf16 %v3653, %v3653
    %v3702 = vpack.c.bf16 %v3654, %v3654
    %v3703 = vpack.c.bf16 %v3655, %v3655
    %v3704 = vpack.c.bf16 %v3656, %v3656
    %v3705 = vpack.c.bf16 %v3657, %v3657
    %v3706 = vpack.c.bf16 %v3658, %v3658
    %v3707 = vpack.c.bf16 %v3659, %v3659
    %v3708 = vpack.c.bf16 %v3660, %v3660
    %v3709 = vpack.c.bf16 %v3661, %v3661
    %v3710 = vpack.c.bf16 %v3662, %v3662
    %v3711 = vpack.c.bf16 %v3663, %v3663
    %v3712 = vpack.c.bf16 %v3664, %v3664
    %v3713 = vpack.c.bf16 %v3665, %v3665
    %v3714 = vpack.c.bf16 %v3666, %v3666
    %v3715 = vpack.c.bf16 %v3667, %v3667
    %v3716 = vpack.c.bf16 %v3668, %v3668
    %v3717 = vpack.c.bf16 %v3669, %v3669
    %v3718 = vpack.c.bf16 %v3670, %v3670
    %v3719 = vpack.c.bf16 %v3671, %v3671
    %v3720 = vpack.c.bf16 %v3672, %v3672
    %v3721 = vpack.c.bf16 %v3673, %v3673
    %v3722 = vpack.c.bf16 %v3674, %v3674
    %v3723 = vpack.c.bf16 %v3675, %v3675
    %v3724 = vpack.c.bf16 %v3676, %v3676
    %v3725 = vpack.c.bf16 %v3677, %v3677
    %v3726 = vpack.c.bf16 %v3678, %v3678
    %v3727 = vpack.c.bf16 %v3679, %v3679
    %v3728 = vpack.c.bf16 %v3680, %v3680
    %v3729 = vpack.c.bf16 %v3681, %v3681
    %v3730 = vpack.c.bf16 %v3682, %v3682
    %v3731 = vpack.c.bf16 %v3683, %v3683
    %v3732 = vpack.c.bf16 %v3684, %v3684
    %v3733 = vpack.c.bf16 %v3685, %v3685
    %v3734 = vpack.c.bf16 %v3686, %v3686
    %v3735 = vpack.c.bf16 %v3687, %v3687
    %v3736 = vpack.c.bf16 %v3688, %v3688
    %v3737 = vpack.c.bf16 %v3689, %v3689
    %v3738 = vpack.c.bf16 %v3690, %v3690
    %v3739 = vpack.c.bf16 %v3691, %v3691
    %v3740 = vpack.c.bf16 %v3692, %v3692
    %v3741 = vpack.c.bf16 %v3693, %v3693
    %v3742 = vpack.c.bf16 %v3694, %v3694
    %v3743 = vld [vmem:[%s7] sm:$0xf]
    %v3744 = vld [vmem:[%s7 + $0x4] sm:$0xf]
    %v3745 = vld [vmem:[%s7 + $0x8] sm:$0xf]
    %v3746 = vld [vmem:[%s7 + $0xc] sm:$0xf]
    %v3747 = vld [vmem:[%s7 + $0x10] sm:$0xf]
    %v3748 = vld [vmem:[%s7 + $0x14] sm:$0xf]
    %v3749 = vld [vmem:[%s7 + $0x18] sm:$0xf]
    %v3750 = vld [vmem:[%s7 + $0x1c] sm:$0xf]
    %v3751 = vld [vmem:[%s7 + $0x20] sm:$0xf]
    %v3752 = vld [vmem:[%s7 + $0x24] sm:$0xf]
    %v3753 = vld [vmem:[%s7 + $0x28] sm:$0xf]
    %v3754 = vld [vmem:[%s7 + $0x2c] sm:$0xf]
    %v3755 = vld [vmem:[%s7 + $0x30] sm:$0xf]
    %v3756 = vld [vmem:[%s7 + $0x34] sm:$0xf]
    %v3757 = vld [vmem:[%s7 + $0x38] sm:$0xf]
    %v3758 = vld [vmem:[%s7 + $0x3c] sm:$0xf]
    %v3759 = vld [vmem:[%s7 + $0x40] sm:$0xf]
    %v3760 = vld [vmem:[%s7 + $0x44] sm:$0xf]
    %v3761 = vld [vmem:[%s7 + $0x48] sm:$0xf]
    %v3762 = vld [vmem:[%s7 + $0x4c] sm:$0xf]
    %v3763 = vld [vmem:[%s7 + $0x50] sm:$0xf]
    %v3764 = vld [vmem:[%s7 + $0x54] sm:$0xf]
    %v3765 = vld [vmem:[%s7 + $0x58] sm:$0xf]
    %v3766 = vld [vmem:[%s7 + $0x5c] sm:$0xf]
    %v3767 = vld [vmem:[%s7 + $0x60] sm:$0xf]
    %v3768 = vld [vmem:[%s7 + $0x64] sm:$0xf]
    %v3769 = vld [vmem:[%s7 + $0x68] sm:$0xf]
    %v3770 = vld [vmem:[%s7 + $0x6c] sm:$0xf]
    %v3771 = vld [vmem:[%s7 + $0x70] sm:$0xf]
    %v3772 = vld [vmem:[%s7 + $0x74] sm:$0xf]
    %v3773 = vld [vmem:[%s7 + $0x78] sm:$0xf]
    %v3774 = vld [vmem:[%s7 + $0x7c] sm:$0xf]
    %v3775 = vld [vmem:[%s7 + $0x80] sm:$0xf]
    %v3776 = vld [vmem:[%s7 + $0x84] sm:$0xf]
    %v3777 = vld [vmem:[%s7 + $0x88] sm:$0xf]
    %v3778 = vld [vmem:[%s7 + $0x8c] sm:$0xf]
    %v3779 = vld [vmem:[%s7 + $0x90] sm:$0xf]
    %v3780 = vld [vmem:[%s7 + $0x94] sm:$0xf]
    %v3781 = vld [vmem:[%s7 + $0x98] sm:$0xf]
    %v3782 = vld [vmem:[%s7 + $0x9c] sm:$0xf]
    %v3783 = vld [vmem:[%s7 + $0xa0] sm:$0xf]
    %v3784 = vld [vmem:[%s7 + $0xa4] sm:$0xf]
    %v3785 = vld [vmem:[%s7 + $0xa8] sm:$0xf]
    %v3786 = vld [vmem:[%s7 + $0xac] sm:$0xf]
    %v3787 = vld [vmem:[%s7 + $0xb0] sm:$0xf]
    %v3788 = vld [vmem:[%s7 + $0xb4] sm:$0xf]
    %v3789 = vld [vmem:[%s7 + $0xb8] sm:$0xf]
    %v3790 = vld [vmem:[%s7 + $0xbc] sm:$0xf]
    %3792 = vset.pattern.permute.xlu0 0
    %3793 = vperm.xlu0 %3792, %v3743
    %v3794 = vpop.permute.xlu0 %3793
    %v3797 = vunpack.c.l.s4 839922192
    %v3798 = vunpack.c.0.s8 %v3797
    %v3799 = vperm.slane %v3794, %v3798
    %3801 = vset.pattern.permute.xlu0 0
    %3802 = vperm.xlu0 %3801, %v3744
    %v3803 = vpop.permute.xlu0 %3802
    %v3806 = vunpack.c.l.s4 839922192
    %v3807 = vunpack.c.0.s8 %v3806
    %v3808 = vperm.slane %v3803, %v3807
    %3810 = vset.pattern.permute.xlu0 0
    %3811 = vperm.xlu0 %3810, %v3745
    %v3812 = vpop.permute.xlu0 %3811
    %v3815 = vunpack.c.l.s4 839922192
    %v3816 = vunpack.c.0.s8 %v3815
    %v3817 = vperm.slane %v3812, %v3816
    %3819 = vset.pattern.permute.xlu0 0
    %3820 = vperm.xlu0 %3819, %v3746
    %v3821 = vpop.permute.xlu0 %3820
    %v3824 = vunpack.c.l.s4 839922192
    %v3825 = vunpack.c.0.s8 %v3824
    %v3826 = vperm.slane %v3821, %v3825
    %3828 = vset.pattern.permute.xlu0 0
    %3829 = vperm.xlu0 %3828, %v3747
    %v3830 = vpop.permute.xlu0 %3829
    %v3833 = vunpack.c.l.s4 839922192
    %v3834 = vunpack.c.0.s8 %v3833
    %v3835 = vperm.slane %v3830, %v3834
    %3837 = vset.pattern.permute.xlu0 0
    %3838 = vperm.xlu0 %3837, %v3748
    %v3839 = vpop.permute.xlu0 %3838
    %v3842 = vunpack.c.l.s4 839922192
    %v3843 = vunpack.c.0.s8 %v3842
    %v3844 = vperm.slane %v3839, %v3843
    %3846 = vset.pattern.permute.xlu0 0
    %3847 = vperm.xlu0 %3846, %v3749
    %v3848 = vpop.permute.xlu0 %3847
    %v3851 = vunpack.c.l.s4 839922192
    %v3852 = vunpack.c.0.s8 %v3851
    %v3853 = vperm.slane %v3848, %v3852
    %3855 = vset.pattern.permute.xlu0 0
    %3856 = vperm.xlu0 %3855, %v3750
    %v3857 = vpop.permute.xlu0 %3856
    %v3860 = vunpack.c.l.s4 839922192
    %v3861 = vunpack.c.0.s8 %v3860
    %v3862 = vperm.slane %v3857, %v3861
    %3864 = vset.pattern.permute.xlu0 0
    %3865 = vperm.xlu0 %3864, %v3751
    %v3866 = vpop.permute.xlu0 %3865
    %v3869 = vunpack.c.l.s4 839922192
    %v3870 = vunpack.c.0.s8 %v3869
    %v3871 = vperm.slane %v3866, %v3870
    %3873 = vset.pattern.permute.xlu0 0
    %3874 = vperm.xlu0 %3873, %v3752
    %v3875 = vpop.permute.xlu0 %3874
    %v3878 = vunpack.c.l.s4 839922192
    %v3879 = vunpack.c.0.s8 %v3878
    %v3880 = vperm.slane %v3875, %v3879
    %3882 = vset.pattern.permute.xlu0 0
    %3883 = vperm.xlu0 %3882, %v3753
    %v3884 = vpop.permute.xlu0 %3883
    %v3887 = vunpack.c.l.s4 839922192
    %v3888 = vunpack.c.0.s8 %v3887
    %v3889 = vperm.slane %v3884, %v3888
    %3891 = vset.pattern.permute.xlu0 0
    %3892 = vperm.xlu0 %3891, %v3754
    %v3893 = vpop.permute.xlu0 %3892
    %v3896 = vunpack.c.l.s4 839922192
    %v3897 = vunpack.c.0.s8 %v3896
    %v3898 = vperm.slane %v3893, %v3897
    %3900 = vset.pattern.permute.xlu0 0
    %3901 = vperm.xlu0 %3900, %v3755
    %v3902 = vpop.permute.xlu0 %3901
    %v3905 = vunpack.c.l.s4 839922192
    %v3906 = vunpack.c.0.s8 %v3905
    %v3907 = vperm.slane %v3902, %v3906
    %3909 = vset.pattern.permute.xlu0 0
    %3910 = vperm.xlu0 %3909, %v3756
    %v3911 = vpop.permute.xlu0 %3910
    %v3914 = vunpack.c.l.s4 839922192
    %v3915 = vunpack.c.0.s8 %v3914
    %v3916 = vperm.slane %v3911, %v3915
    %3918 = vset.pattern.permute.xlu0 0
    %3919 = vperm.xlu0 %3918, %v3757
    %v3920 = vpop.permute.xlu0 %3919
    %v3923 = vunpack.c.l.s4 839922192
    %v3924 = vunpack.c.0.s8 %v3923
    %v3925 = vperm.slane %v3920, %v3924
    %3927 = vset.pattern.permute.xlu0 0
    %3928 = vperm.xlu0 %3927, %v3758
    %v3929 = vpop.permute.xlu0 %3928
    %v3932 = vunpack.c.l.s4 839922192
    %v3933 = vunpack.c.0.s8 %v3932
    %v3934 = vperm.slane %v3929, %v3933
    %3936 = vset.pattern.permute.xlu0 0
    %3937 = vperm.xlu0 %3936, %v3759
    %v3938 = vpop.permute.xlu0 %3937
    %v3941 = vunpack.c.l.s4 839922192
    %v3942 = vunpack.c.0.s8 %v3941
    %v3943 = vperm.slane %v3938, %v3942
    %3945 = vset.pattern.permute.xlu0 0
    %3946 = vperm.xlu0 %3945, %v3760
    %v3947 = vpop.permute.xlu0 %3946
    %v3950 = vunpack.c.l.s4 839922192
    %v3951 = vunpack.c.0.s8 %v3950
    %v3952 = vperm.slane %v3947, %v3951
    %3954 = vset.pattern.permute.xlu0 0
    %3955 = vperm.xlu0 %3954, %v3761
    %v3956 = vpop.permute.xlu0 %3955
    %v3959 = vunpack.c.l.s4 839922192
    %v3960 = vunpack.c.0.s8 %v3959
    %v3961 = vperm.slane %v3956, %v3960
    %3963 = vset.pattern.permute.xlu0 0
    %3964 = vperm.xlu0 %3963, %v3762
    %v3965 = vpop.permute.xlu0 %3964
    %v3968 = vunpack.c.l.s4 839922192
    %v3969 = vunpack.c.0.s8 %v3968
    %v3970 = vperm.slane %v3965, %v3969
    %3972 = vset.pattern.permute.xlu0 0
    %3973 = vperm.xlu0 %3972, %v3763
    %v3974 = vpop.permute.xlu0 %3973
    %v3977 = vunpack.c.l.s4 839922192
    %v3978 = vunpack.c.0.s8 %v3977
    %v3979 = vperm.slane %v3974, %v3978
    %3981 = vset.pattern.permute.xlu0 0
    %3982 = vperm.xlu0 %3981, %v3764
    %v3983 = vpop.permute.xlu0 %3982
    %v3986 = vunpack.c.l.s4 839922192
    %v3987 = vunpack.c.0.s8 %v3986
    %v3988 = vperm.slane %v3983, %v3987
    %3990 = vset.pattern.permute.xlu0 0
    %3991 = vperm.xlu0 %3990, %v3765
    %v3992 = vpop.permute.xlu0 %3991
    %v3995 = vunpack.c.l.s4 839922192
    %v3996 = vunpack.c.0.s8 %v3995
    %v3997 = vperm.slane %v3992, %v3996
    %3999 = vset.pattern.permute.xlu0 0
    %4000 = vperm.xlu0 %3999, %v3766
    %v4001 = vpop.permute.xlu0 %4000
    %v4004 = vunpack.c.l.s4 839922192
    %v4005 = vunpack.c.0.s8 %v4004
    %v4006 = vperm.slane %v4001, %v4005
    %4008 = vset.pattern.permute.xlu0 0
    %4009 = vperm.xlu0 %4008, %v3767
    %v4010 = vpop.permute.xlu0 %4009
    %v4013 = vunpack.c.l.s4 839922192
    %v4014 = vunpack.c.0.s8 %v4013
    %v4015 = vperm.slane %v4010, %v4014
    %4017 = vset.pattern.permute.xlu0 0
    %4018 = vperm.xlu0 %4017, %v3768
    %v4019 = vpop.permute.xlu0 %4018
    %v4022 = vunpack.c.l.s4 839922192
    %v4023 = vunpack.c.0.s8 %v4022
    %v4024 = vperm.slane %v4019, %v4023
    %4026 = vset.pattern.permute.xlu0 0
    %4027 = vperm.xlu0 %4026, %v3769
    %v4028 = vpop.permute.xlu0 %4027
    %v4031 = vunpack.c.l.s4 839922192
    %v4032 = vunpack.c.0.s8 %v4031
    %v4033 = vperm.slane %v4028, %v4032
    %4035 = vset.pattern.permute.xlu0 0
    %4036 = vperm.xlu0 %4035, %v3770
    %v4037 = vpop.permute.xlu0 %4036
    %v4040 = vunpack.c.l.s4 839922192
    %v4041 = vunpack.c.0.s8 %v4040
    %v4042 = vperm.slane %v4037, %v4041
    %4044 = vset.pattern.permute.xlu0 0
    %4045 = vperm.xlu0 %4044, %v3771
    %v4046 = vpop.permute.xlu0 %4045
    %v4049 = vunpack.c.l.s4 839922192
    %v4050 = vunpack.c.0.s8 %v4049
    %v4051 = vperm.slane %v4046, %v4050
    %4053 = vset.pattern.permute.xlu0 0
    %4054 = vperm.xlu0 %4053, %v3772
    %v4055 = vpop.permute.xlu0 %4054
    %v4058 = vunpack.c.l.s4 839922192
    %v4059 = vunpack.c.0.s8 %v4058
    %v4060 = vperm.slane %v4055, %v4059
    %4062 = vset.pattern.permute.xlu0 0
    %4063 = vperm.xlu0 %4062, %v3773
    %v4064 = vpop.permute.xlu0 %4063
    %v4067 = vunpack.c.l.s4 839922192
    %v4068 = vunpack.c.0.s8 %v4067
    %v4069 = vperm.slane %v4064, %v4068
    %4071 = vset.pattern.permute.xlu0 0
    %4072 = vperm.xlu0 %4071, %v3774
    %v4073 = vpop.permute.xlu0 %4072
    %v4076 = vunpack.c.l.s4 839922192
    %v4077 = vunpack.c.0.s8 %v4076
    %v4078 = vperm.slane %v4073, %v4077
    %4080 = vset.pattern.permute.xlu0 0
    %4081 = vperm.xlu0 %4080, %v3775
    %v4082 = vpop.permute.xlu0 %4081
    %v4085 = vunpack.c.l.s4 839922192
    %v4086 = vunpack.c.0.s8 %v4085
    %v4087 = vperm.slane %v4082, %v4086
    %4089 = vset.pattern.permute.xlu0 0
    %4090 = vperm.xlu0 %4089, %v3776
    %v4091 = vpop.permute.xlu0 %4090
    %v4094 = vunpack.c.l.s4 839922192
    %v4095 = vunpack.c.0.s8 %v4094
    %v4096 = vperm.slane %v4091, %v4095
    %4098 = vset.pattern.permute.xlu0 0
    %4099 = vperm.xlu0 %4098, %v3777
    %v4100 = vpop.permute.xlu0 %4099
    %v4103 = vunpack.c.l.s4 839922192
    %v4104 = vunpack.c.0.s8 %v4103
    %v4105 = vperm.slane %v4100, %v4104
    %4107 = vset.pattern.permute.xlu0 0
    %4108 = vperm.xlu0 %4107, %v3778
    %v4109 = vpop.permute.xlu0 %4108
    %v4112 = vunpack.c.l.s4 839922192
    %v4113 = vunpack.c.0.s8 %v4112
    %v4114 = vperm.slane %v4109, %v4113
    %4116 = vset.pattern.permute.xlu0 0
    %4117 = vperm.xlu0 %4116, %v3779
    %v4118 = vpop.permute.xlu0 %4117
    %v4121 = vunpack.c.l.s4 839922192
    %v4122 = vunpack.c.0.s8 %v4121
    %v4123 = vperm.slane %v4118, %v4122
    %4125 = vset.pattern.permute.xlu0 0
    %4126 = vperm.xlu0 %4125, %v3780
    %v4127 = vpop.permute.xlu0 %4126
    %v4130 = vunpack.c.l.s4 839922192
    %v4131 = vunpack.c.0.s8 %v4130
    %v4132 = vperm.slane %v4127, %v4131
    %4134 = vset.pattern.permute.xlu0 0
    %4135 = vperm.xlu0 %4134, %v3781
    %v4136 = vpop.permute.xlu0 %4135
    %v4139 = vunpack.c.l.s4 839922192
    %v4140 = vunpack.c.0.s8 %v4139
    %v4141 = vperm.slane %v4136, %v4140
    %4143 = vset.pattern.permute.xlu0 0
    %4144 = vperm.xlu0 %4143, %v3782
    %v4145 = vpop.permute.xlu0 %4144
    %v4148 = vunpack.c.l.s4 839922192
    %v4149 = vunpack.c.0.s8 %v4148
    %v4150 = vperm.slane %v4145, %v4149
    %4152 = vset.pattern.permute.xlu0 0
    %4153 = vperm.xlu0 %4152, %v3783
    %v4154 = vpop.permute.xlu0 %4153
    %v4157 = vunpack.c.l.s4 839922192
    %v4158 = vunpack.c.0.s8 %v4157
    %v4159 = vperm.slane %v4154, %v4158
    %4161 = vset.pattern.permute.xlu0 0
    %4162 = vperm.xlu0 %4161, %v3784
    %v4163 = vpop.permute.xlu0 %4162
    %v4166 = vunpack.c.l.s4 839922192
    %v4167 = vunpack.c.0.s8 %v4166
    %v4168 = vperm.slane %v4163, %v4167
    %4170 = vset.pattern.permute.xlu0 0
    %4171 = vperm.xlu0 %4170, %v3785
    %v4172 = vpop.permute.xlu0 %4171
    %v4175 = vunpack.c.l.s4 839922192
    %v4176 = vunpack.c.0.s8 %v4175
    %v4177 = vperm.slane %v4172, %v4176
    %4179 = vset.pattern.permute.xlu0 0
    %4180 = vperm.xlu0 %4179, %v3786
    %v4181 = vpop.permute.xlu0 %4180
    %v4184 = vunpack.c.l.s4 839922192
    %v4185 = vunpack.c.0.s8 %v4184
    %v4186 = vperm.slane %v4181, %v4185
    %4188 = vset.pattern.permute.xlu0 0
    %4189 = vperm.xlu0 %4188, %v3787
    %v4190 = vpop.permute.xlu0 %4189
    %v4193 = vunpack.c.l.s4 839922192
    %v4194 = vunpack.c.0.s8 %v4193
    %v4195 = vperm.slane %v4190, %v4194
    %4197 = vset.pattern.permute.xlu0 0
    %4198 = vperm.xlu0 %4197, %v3788
    %v4199 = vpop.permute.xlu0 %4198
    %v4202 = vunpack.c.l.s4 839922192
    %v4203 = vunpack.c.0.s8 %v4202
    %v4204 = vperm.slane %v4199, %v4203
    %4206 = vset.pattern.permute.xlu0 0
    %4207 = vperm.xlu0 %4206, %v3789
    %v4208 = vpop.permute.xlu0 %4207
    %v4211 = vunpack.c.l.s4 839922192
    %v4212 = vunpack.c.0.s8 %v4211
    %v4213 = vperm.slane %v4208, %v4212
    %4215 = vset.pattern.permute.xlu0 0
    %4216 = vperm.xlu0 %4215, %v3790
    %v4217 = vpop.permute.xlu0 %4216
    %v4220 = vunpack.c.l.s4 839922192
    %v4221 = vunpack.c.0.s8 %v4220
    %v4222 = vperm.slane %v4217, %v4221
    %v4223 = vunpack.c.l.bf16 %v3695
    %v4224 = vunpack.c.l.bf16 %v3696
    %v4225 = vunpack.c.l.bf16 %v3697
    %v4226 = vunpack.c.l.bf16 %v3698
    %v4227 = vunpack.c.l.bf16 %v3699
    %v4228 = vunpack.c.l.bf16 %v3700
    %v4229 = vunpack.c.l.bf16 %v3701
    %v4230 = vunpack.c.l.bf16 %v3702
    %v4231 = vunpack.c.l.bf16 %v3703
    %v4232 = vunpack.c.l.bf16 %v3704
    %v4233 = vunpack.c.l.bf16 %v3705
    %v4234 = vunpack.c.l.bf16 %v3706
    %v4235 = vunpack.c.l.bf16 %v3707
    %v4236 = vunpack.c.l.bf16 %v3708
    %v4237 = vunpack.c.l.bf16 %v3709
    %v4238 = vunpack.c.l.bf16 %v3710
    %v4239 = vunpack.c.l.bf16 %v3711
    %v4240 = vunpack.c.l.bf16 %v3712
    %v4241 = vunpack.c.l.bf16 %v3713
    %v4242 = vunpack.c.l.bf16 %v3714
    %v4243 = vunpack.c.l.bf16 %v3715
    %v4244 = vunpack.c.l.bf16 %v3716
    %v4245 = vunpack.c.l.bf16 %v3717
    %v4246 = vunpack.c.l.bf16 %v3718
    %v4247 = vunpack.c.l.bf16 %v3719
    %v4248 = vunpack.c.l.bf16 %v3720
    %v4249 = vunpack.c.l.bf16 %v3721
    %v4250 = vunpack.c.l.bf16 %v3722
    %v4251 = vunpack.c.l.bf16 %v3723
    %v4252 = vunpack.c.l.bf16 %v3724
    %v4253 = vunpack.c.l.bf16 %v3725
    %v4254 = vunpack.c.l.bf16 %v3726
    %v4255 = vunpack.c.l.bf16 %v3727
    %v4256 = vunpack.c.l.bf16 %v3728
    %v4257 = vunpack.c.l.bf16 %v3729
    %v4258 = vunpack.c.l.bf16 %v3730
    %v4259 = vunpack.c.l.bf16 %v3731
    %v4260 = vunpack.c.l.bf16 %v3732
    %v4261 = vunpack.c.l.bf16 %v3733
    %v4262 = vunpack.c.l.bf16 %v3734
    %v4263 = vunpack.c.l.bf16 %v3735
    %v4264 = vunpack.c.l.bf16 %v3736
    %v4265 = vunpack.c.l.bf16 %v3737
    %v4266 = vunpack.c.l.bf16 %v3738
    %v4267 = vunpack.c.l.bf16 %v3739
    %v4268 = vunpack.c.l.bf16 %v3740
    %v4269 = vunpack.c.l.bf16 %v3741
    %v4270 = vunpack.c.l.bf16 %v3742
    %v4271 = vunpack.c.l.bf16 %v3799
    %v4272 = vunpack.c.l.bf16 %v3808
    %v4273 = vunpack.c.l.bf16 %v3817
    %v4274 = vunpack.c.l.bf16 %v3826
    %v4275 = vunpack.c.l.bf16 %v3835
    %v4276 = vunpack.c.l.bf16 %v3844
    %v4277 = vunpack.c.l.bf16 %v3853
    %v4278 = vunpack.c.l.bf16 %v3862
    %v4279 = vunpack.c.l.bf16 %v3871
    %v4280 = vunpack.c.l.bf16 %v3880
    %v4281 = vunpack.c.l.bf16 %v3889
    %v4282 = vunpack.c.l.bf16 %v3898
    %v4283 = vunpack.c.l.bf16 %v3907
    %v4284 = vunpack.c.l.bf16 %v3916
    %v4285 = vunpack.c.l.bf16 %v3925
    %v4286 = vunpack.c.l.bf16 %v3934
    %v4287 = vunpack.c.l.bf16 %v3943
    %v4288 = vunpack.c.l.bf16 %v3952
    %v4289 = vunpack.c.l.bf16 %v3961
    %v4290 = vunpack.c.l.bf16 %v3970
    %v4291 = vunpack.c.l.bf16 %v3979
    %v4292 = vunpack.c.l.bf16 %v3988
    %v4293 = vunpack.c.l.bf16 %v3997
    %v4294 = vunpack.c.l.bf16 %v4006
    %v4295 = vunpack.c.l.bf16 %v4015
    %v4296 = vunpack.c.l.bf16 %v4024
    %v4297 = vunpack.c.l.bf16 %v4033
    %v4298 = vunpack.c.l.bf16 %v4042
    %v4299 = vunpack.c.l.bf16 %v4051
    %v4300 = vunpack.c.l.bf16 %v4060
    %v4301 = vunpack.c.l.bf16 %v4069
    %v4302 = vunpack.c.l.bf16 %v4078
    %v4303 = vunpack.c.l.bf16 %v4087
    %v4304 = vunpack.c.l.bf16 %v4096
    %v4305 = vunpack.c.l.bf16 %v4105
    %v4306 = vunpack.c.l.bf16 %v4114
    %v4307 = vunpack.c.l.bf16 %v4123
    %v4308 = vunpack.c.l.bf16 %v4132
    %v4309 = vunpack.c.l.bf16 %v4141
    %v4310 = vunpack.c.l.bf16 %v4150
    %v4311 = vunpack.c.l.bf16 %v4159
    %v4312 = vunpack.c.l.bf16 %v4168
    %v4313 = vunpack.c.l.bf16 %v4177
    %v4314 = vunpack.c.l.bf16 %v4186
    %v4315 = vunpack.c.l.bf16 %v4195
    %v4316 = vunpack.c.l.bf16 %v4204
    %v4317 = vunpack.c.l.bf16 %v4213
    %v4318 = vunpack.c.l.bf16 %v4222
    %v4319 = vmul.f32 %v4223, %v4271
    %v4320 = vmul.f32 %v4224, %v4272
    %v4321 = vmul.f32 %v4225, %v4273
    %v4322 = vmul.f32 %v4226, %v4274
    %v4323 = vmul.f32 %v4227, %v4275
    %v4324 = vmul.f32 %v4228, %v4276
    %v4325 = vmul.f32 %v4229, %v4277
    %v4326 = vmul.f32 %v4230, %v4278
    %v4327 = vmul.f32 %v4231, %v4279
    %v4328 = vmul.f32 %v4232, %v4280
    %v4329 = vmul.f32 %v4233, %v4281
    %v4330 = vmul.f32 %v4234, %v4282
    %v4331 = vmul.f32 %v4235, %v4283
    %v4332 = vmul.f32 %v4236, %v4284
    %v4333 = vmul.f32 %v4237, %v4285
    %v4334 = vmul.f32 %v4238, %v4286
    %v4335 = vmul.f32 %v4239, %v4287
    %v4336 = vmul.f32 %v4240, %v4288
    %v4337 = vmul.f32 %v4241, %v4289
    %v4338 = vmul.f32 %v4242, %v4290
    %v4339 = vmul.f32 %v4243, %v4291
    %v4340 = vmul.f32 %v4244, %v4292
    %v4341 = vmul.f32 %v4245, %v4293
    %v4342 = vmul.f32 %v4246, %v4294
    %v4343 = vmul.f32 %v4247, %v4295
    %v4344 = vmul.f32 %v4248, %v4296
    %v4345 = vmul.f32 %v4249, %v4297
    %v4346 = vmul.f32 %v4250, %v4298
    %v4347 = vmul.f32 %v4251, %v4299
    %v4348 = vmul.f32 %v4252, %v4300
    %v4349 = vmul.f32 %v4253, %v4301
    %v4350 = vmul.f32 %v4254, %v4302
    %v4351 = vmul.f32 %v4255, %v4303
    %v4352 = vmul.f32 %v4256, %v4304
    %v4353 = vmul.f32 %v4257, %v4305
    %v4354 = vmul.f32 %v4258, %v4306
    %v4355 = vmul.f32 %v4259, %v4307
    %v4356 = vmul.f32 %v4260, %v4308
    %v4357 = vmul.f32 %v4261, %v4309
    %v4358 = vmul.f32 %v4262, %v4310
    %v4359 = vmul.f32 %v4263, %v4311
    %v4360 = vmul.f32 %v4264, %v4312
    %v4361 = vmul.f32 %v4265, %v4313
    %v4362 = vmul.f32 %v4266, %v4314
    %v4363 = vmul.f32 %v4267, %v4315
    %v4364 = vmul.f32 %v4268, %v4316
    %v4365 = vmul.f32 %v4269, %v4317
    %v4366 = vmul.f32 %v4270, %v4318
    %v4367 = vpack.c.bf16 %v4320, %v4319
    %v4368 = vpack.c.bf16 %v4322, %v4321
    %v4369 = vpack.c.bf16 %v4324, %v4323
    %v4370 = vpack.c.bf16 %v4326, %v4325
    %v4371 = vpack.c.bf16 %v4328, %v4327
    %v4372 = vpack.c.bf16 %v4330, %v4329
    %v4373 = vpack.c.bf16 %v4332, %v4331
    %v4374 = vpack.c.bf16 %v4334, %v4333
    %v4375 = vpack.c.bf16 %v4336, %v4335
    %v4376 = vpack.c.bf16 %v4338, %v4337
    %v4377 = vpack.c.bf16 %v4340, %v4339
    %v4378 = vpack.c.bf16 %v4342, %v4341
    %v4379 = vpack.c.bf16 %v4344, %v4343
    %v4380 = vpack.c.bf16 %v4346, %v4345
    %v4381 = vpack.c.bf16 %v4348, %v4347
    %v4382 = vpack.c.bf16 %v4350, %v4349
    %v4383 = vpack.c.bf16 %v4352, %v4351
    %v4384 = vpack.c.bf16 %v4354, %v4353
    %v4385 = vpack.c.bf16 %v4356, %v4355
    %v4386 = vpack.c.bf16 %v4358, %v4357
    %v4387 = vpack.c.bf16 %v4360, %v4359
    %v4388 = vpack.c.bf16 %v4362, %v4361
    %v4389 = vpack.c.bf16 %v4364, %v4363
    %v4390 = vpack.c.bf16 %v4366, %v4365
    %v4391 = vunpack.c.l.bf16 %v4367
    %v4392 = vunpack.c.h.bf16 %v4367
    %v4393 = vunpack.c.l.bf16 %v4368
    %v4394 = vunpack.c.h.bf16 %v4368
    %v4395 = vunpack.c.l.bf16 %v4369
    %v4396 = vunpack.c.h.bf16 %v4369
    %v4397 = vunpack.c.l.bf16 %v4370
    %v4398 = vunpack.c.h.bf16 %v4370
    %v4399 = vunpack.c.l.bf16 %v4371
    %v4400 = vunpack.c.h.bf16 %v4371
    %v4401 = vunpack.c.l.bf16 %v4372
    %v4402 = vunpack.c.h.bf16 %v4372
    %v4403 = vunpack.c.l.bf16 %v4373
    %v4404 = vunpack.c.h.bf16 %v4373
    %v4405 = vunpack.c.l.bf16 %v4374
    %v4406 = vunpack.c.h.bf16 %v4374
    %v4407 = vunpack.c.l.bf16 %v4375
    %v4408 = vunpack.c.h.bf16 %v4375
    %v4409 = vunpack.c.l.bf16 %v4376
    %v4410 = vunpack.c.h.bf16 %v4376
    %v4411 = vunpack.c.l.bf16 %v4377
    %v4412 = vunpack.c.h.bf16 %v4377
    %v4413 = vunpack.c.l.bf16 %v4378
    %v4414 = vunpack.c.h.bf16 %v4378
    %v4415 = vunpack.c.l.bf16 %v4379
    %v4416 = vunpack.c.h.bf16 %v4379
    %v4417 = vunpack.c.l.bf16 %v4380
    %v4418 = vunpack.c.h.bf16 %v4380
    %v4419 = vunpack.c.l.bf16 %v4381
    %v4420 = vunpack.c.h.bf16 %v4381
    %v4421 = vunpack.c.l.bf16 %v4382
    %v4422 = vunpack.c.h.bf16 %v4382
    %v4423 = vunpack.c.l.bf16 %v4383
    %v4424 = vunpack.c.h.bf16 %v4383
    %v4425 = vunpack.c.l.bf16 %v4384
    %v4426 = vunpack.c.h.bf16 %v4384
    %v4427 = vunpack.c.l.bf16 %v4385
    %v4428 = vunpack.c.h.bf16 %v4385
    %v4429 = vunpack.c.l.bf16 %v4386
    %v4430 = vunpack.c.h.bf16 %v4386
    %v4431 = vunpack.c.l.bf16 %v4387
    %v4432 = vunpack.c.h.bf16 %v4387
    %v4433 = vunpack.c.l.bf16 %v4388
    %v4434 = vunpack.c.h.bf16 %v4388
    %v4435 = vunpack.c.l.bf16 %v4389
    %v4436 = vunpack.c.h.bf16 %v4389
    %v4437 = vunpack.c.l.bf16 %v4390
    %v4438 = vunpack.c.h.bf16 %v4390
    %v4439 = vadd.f32 %v4391, %v4392
    %v4440 = vadd.f32 %v4439, %v4393
    %v4441 = vadd.f32 %v4440, %v4394
    %v4442 = vadd.f32 %v4441, %v4395
    %v4443 = vadd.f32 %v4442, %v4396
    %v4444 = vadd.f32 %v4443, %v4397
    %v4445 = vadd.f32 %v4444, %v4398
    %v4446 = vadd.f32 %v4445, %v4399
    %v4447 = vadd.f32 %v4446, %v4400
    %v4448 = vadd.f32 %v4447, %v4401
    %v4449 = vadd.f32 %v4448, %v4402
    %v4450 = vadd.f32 %v4449, %v4403
    %v4451 = vadd.f32 %v4450, %v4404
    %v4452 = vadd.f32 %v4451, %v4405
    %v4453 = vadd.f32 %v4452, %v4406
    %v4454 = vadd.f32 %v4453, %v4407
    %v4455 = vadd.f32 %v4454, %v4408
    %v4456 = vadd.f32 %v4455, %v4409
    %v4457 = vadd.f32 %v4456, %v4410
    %v4458 = vadd.f32 %v4457, %v4411
    %v4459 = vadd.f32 %v4458, %v4412
    %v4460 = vadd.f32 %v4459, %v4413
    %v4461 = vadd.f32 %v4460, %v4414
    %v4462 = vadd.f32 %v4461, %v4415
    %v4463 = vadd.f32 %v4462, %v4416
    %v4464 = vadd.f32 %v4463, %v4417
    %v4465 = vadd.f32 %v4464, %v4418
    %v4466 = vadd.f32 %v4465, %v4419
    %v4467 = vadd.f32 %v4466, %v4420
    %v4468 = vadd.f32 %v4467, %v4421
    %v4469 = vadd.f32 %v4468, %v4422
    %v4470 = vadd.f32 %v4469, %v4423
    %v4471 = vadd.f32 %v4470, %v4424
    %v4472 = vadd.f32 %v4471, %v4425
    %v4473 = vadd.f32 %v4472, %v4426
    %v4474 = vadd.f32 %v4473, %v4427
    %v4475 = vadd.f32 %v4474, %v4428
    %v4476 = vadd.f32 %v4475, %v4429
    %v4477 = vadd.f32 %v4476, %v4430
    %v4478 = vadd.f32 %v4477, %v4431
    %v4479 = vadd.f32 %v4478, %v4432
    %v4480 = vadd.f32 %v4479, %v4433
    %v4481 = vadd.f32 %v4480, %v4434
    %v4482 = vadd.f32 %v4481, %v4435
    %v4483 = vadd.f32 %v4482, %v4436
    %v4484 = vadd.f32 %v4483, %v4437
    %v4485 = vadd.f32 %v4484, %v4438
    %v4486 = vrot.slane %v4485, 4
    %v4487 = vadd.f32 %v4485, %v4486
    %v4488 = vrot.slane %v4487, 2
    %v4489 = vadd.f32 %v4487, %v4488
    %v4490 = vrot.slane %v4489, 1
    %v4491 = vadd.f32 %v4489, %v4490
    %s4492 = sld [smem:[#allocation2]]
    %v4493 = vstv %s4492
    %v4494 = vadd.f32 %v4491, %v4493
    %4495 = vst [vmem:[#allocation3] sm:$0x1] %v4494
    // Predicated region
    $region38: #{tpu_custom_call.1} parent=1 // pred_check
      _
    $region39: #{tpu_custom_call.1} parent=1 // pred_check_branch
      %4497 = sbr.rel (0) target = $region41
    $region40: #{tpu_custom_call.1} parent=1 // pred_region
      %4499 = vsyncadd [#allocation4], 0
      %s4501 = sshll.u32 [#allocation3], 4
      %s4502 = int_to_ptr.vmem [resolvable:$true] %s4501
      %s4503 = sshll.u32 %s9, 4
      %s4504 = int_to_ptr.hbm [resolvable:$true] %s4503
      %4506 = dma.vmem_to_hbm [thread:$0]  %s4502, 16, %s4504, [#allocation4]
    $region41: #{tpu_custom_call.1} parent=1 // pred_fallthru
      _
    // Predicated region
    $region42: #{tpu_custom_call.1} parent=1 // pred_check
      _
    $region43: #{tpu_custom_call.1} parent=1 // pred_check_branch
      %4508 = sbr.rel (0) target = $region45
    $region44: #{tpu_custom_call.1} parent=1 // pred_region
      %4510 = dma.done [#allocation4], 16
    $region45: #{tpu_custom_call.1} parent=1 // pred_fallthru
      _
    %4511 = vsyncpa [#allocation4], 1

</llo_original>
